<compile_context>
chip_gen: v6e
topology: v6e:2x2x1
jax: 0.10.0
libtpu: 0.0.40
codegen_flags: <defaults>
</compile_context>

<pallas_src>
import jax
import jax.numpy as jnp
from jax import lax
from jax.experimental import pallas as pl

# ----------------------- config (small, consistent with the module) ------------
B, T, V, D = 2, 8, 16, 1        # batch, time steps, nodes, input features
C, d, L = 8, 4, 3               # hidden channels, pos-emb dim, layers (C*(L+1)==4C)
t_size = 3                      # temporal receptive size
beta = t_size - 1               # temporal zero padding
P = 4                           # num_prediction
NF = D                          # num_features (=1 -> OutputLayer reshape branch skipped)
C4 = (L + 1) * C                # == 4*C
BV = B * V                      # batch folded into rows
TC = T * C                      # canonical activation lane width
OUTW = 128                      # lane-dense (zero-padded) output width


# ----------------------------- fused Pallas kernel ------------------------------
def _stpgcn_fused_kernel(x_ref,                       # (BV, TC)  input repeated over channel
                         wi_ref, bi_ref,              # (1, TC)   input Linear(D=1->C) tiled over t
                         esc_ref,                     # (L, t_size, BV, TC) exp(temporal gaussians)*padmask
                         smask_ref,                   # (L, BV, t_size*BV)  batch-block-diag exp(spatial)*mask
                         wfs_ref, bfs_ref,            # (L+1, TC, 2C), (L+1, 1, 2C)  folded GFS
                         wxblk_ref,                   # (L, TC, 2*TC) block-diag x_proj (split-halves cols)
                         add_ref,                     # (L, BV, 2*TC) se + te + bias (split-halves lanes)
                         gmat_ref,                    # (2*TC, 2*TC)  grouped-LN averaging matrix
                         lng_ref, lnb_ref,            # (L, 1, 2*TC)  LN gamma/beta tiled
                         wg_ref, bg_ref,              # (C4, 2*C4), (1, 2*C4)  head GLU
                         wo_ref, bo_ref,              # (C4, OUTW), (1, OUTW)  padded output conv
                         o_ref):                      # (BV, OUTW)
    f32 = jnp.float32

    def gfs(act, idx):
        # GFS: fc conv + GLU linear folded into one matmul, then the gate.
        g = jnp.dot(act, wfs_ref[idx], preferred_element_type=f32) + bfs_ref[idx]
        return g[:, :C] * jax.nn.sigmoid(g[:, C:])                 # (BV, C)

    def shift_right(a, k):
        # temporally padded window: lanes [0,k) <- zeros, lanes [k,TC) <- a[:, :TC-k]
        if k == 0:
            return a
        return jnp.concatenate([jnp.zeros((BV, k), f32), a[:, :TC - k]], axis=-1)

    # ---- input layer: Linear(D=1 -> C) == broadcast scale, canonical (BV, T*C) layout
    act = x_ref[...] * wi_ref[...] + bi_ref[...]                   # (BV, TC)
    skips = [gfs(act, 0)]

    gmat = gmat_ref[...]
    for l in range(L):
        # ---- STPRI + bmm(S, x): one K = t_size*BV matmul on esc-scaled shifted windows
        win = jnp.concatenate(
            [shift_right(act, (beta - dt) * C) * esc_ref[l, dt] for dt in range(t_size)],
            axis=0)                                                # (t_size*BV, TC)
        out_all = jnp.dot(smask_ref[l], win, preferred_element_type=f32)   # (BV, TC)

        # ---- STPGConv tail for all T steps at once ("split halves" lane layout:
        #      lanes [0,TC) = GLU lhs channels, lanes [TC,2TC) = GLU rhs channels)
        z = (jnp.dot(out_all, wxblk_ref[l], preferred_element_type=f32)
             + add_ref[l])                                         # (BV, 2*TC)
        stats = jnp.dot(jnp.concatenate([z, z * z], axis=0), gmat,
                        preferred_element_type=f32)                # grouped E[z] / E[z^2]
        mu = stats[:BV]
        var = stats[BV:] - mu * mu
        zn = (z - mu) * lax.rsqrt(var + 1e-5) * lng_ref[l] + lnb_ref[l]
        act = zn[:, :TC] * jax.nn.sigmoid(zn[:, TC:])              # (BV, TC) new hidden state

        skips.append(gfs(act, l + 1))

    # ---- head: GLU(4C) + 1x1 output conv (columns zero-padded -> lane-dense store)
    s = jnp.concatenate(skips, axis=-1)                            # (BV, C4)
    g = jnp.dot(s, wg_ref[...], preferred_element_type=f32) + bg_ref[...]
    hg = g[:, :C4] * jax.nn.sigmoid(g[:, C4:])
    o_ref[...] = (jnp.dot(hg, wo_ref[...], preferred_element_type=f32)
                  + bo_ref[...]).astype(o_ref.dtype)


# ----------------------------- JAX glue -----------------------------------------
def gauss(emb, mu, inv_sigma):
    # Gaussian_component: sum_d( -0.5*(emb-mu)^2 * inv_sigma^2 )
    return jnp.sum(-0.5 * (emb - mu) ** 2 * inv_sigma ** 2, axis=-1)


def stpgcns_forward(params, x, sape, tape, srpe, trpe, zeros_x, zeros_tape, range_mask):
    del zeros_x  # the temporal zero padding is rebuilt inside the fused kernel
    f32 = jnp.float32

    tape_sq = tape[:, :, 0, :]                                          # (B, T, d)
    tape_pad = jnp.concatenate([zeros_tape, tape], axis=1)[:, :, 0, :]  # (B, Tp, d)
    trpe_sq = trpe[:, 0, :]                                             # (t_size, d)
    # mask3[dt, n, m] = range_mask[n, dt*V + m]  (n = output node, m = source node)
    mask3 = jnp.transpose(range_mask.reshape(V, t_size, V), (1, 0, 2))

    eye_b = jnp.eye(B, dtype=f32)
    eye_t = jnp.eye(T, dtype=f32)
    # window element (t, dt) reads the temporal zero padding when t + dt < beta
    padmask = (jnp.arange(T)[:, None] + jnp.arange(t_size)[None, :] >= beta).astype(f32)

    smask_l, esc_l, wxblk_l, add_l, lng_l, lnb_l = [], [], [], [], [], []
    for i in range(L):
        ri = params["ri"][i]
        sapei_g = gauss(sape, ri["mu"][0], ri["isg"][0])        # (V,)  source node m
        sapej_g = gauss(sape, ri["mu"][1], ri["isg"][1])        # (V,)  output node n
        tapei_g = gauss(tape_sq, ri["mu"][2], ri["isg"][2])     # (B, T)
        tapejp_g = gauss(tape_pad, ri["mu"][3], ri["isg"][3])   # (B, Tp)
        srpe_g = gauss(srpe, ri["mu"][4], ri["isg"][4])         # (V, V) [m, n]
        trpe_g = gauss(trpe_sq, ri["mu"][5], ri["isg"][5])      # (t_size,)

        # batch-block-diagonal spatial relation: row = b*V + n, col = dt*B*V + b*V + m
        spat = jnp.exp(sapej_g[:, None] + sapei_g[None, :] + srpe_g.T)   # [n, m]
        sm = spat[None, :, :] * mask3                                    # [dt, n, m]
        smask_l.append(jnp.einsum('dnm,bp->bndpm', sm, eye_b).reshape(BV, t_size * BV))

        # temporal relation factor (zeroed where the window reads padding),
        # expanded to window rows (b*V + m) and activation lanes (t*C + c)
        tapej_win = jnp.stack([tapejp_g[:, t:t + t_size] for t in range(T)], axis=1)  # (B,T,t_size)
        e = jnp.exp(tapei_g[:, :, None] + tapej_win + trpe_g[None, None, :]) * padmask[None]
        e = jnp.transpose(e, (2, 0, 1))                                  # (t_size, B, T)
        e = jnp.repeat(e[:, :, None, :], V, axis=2).reshape(t_size, BV, T)
        esc_l.append(jnp.repeat(e, C, axis=-1))                          # (t_size, BV, TC)

        # STPGConv tail weights, "split halves" lane layout:
        # lanes [t*C + c] carry channel c (GLU lhs), lanes [TC + t*C + c] carry channel C+c.
        g = params["gc"][i]
        wxA = jnp.einsum('ts,ij->tisj', eye_t, g["wx"][:, :C]).reshape(TC, TC)
        wxB = jnp.einsum('ts,ij->tisj', eye_t, g["wx"][:, C:]).reshape(TC, TC)
        wxblk_l.append(jnp.concatenate([wxA, wxB], axis=-1))             # (TC, 2*TC)

        se = sape @ g["wse"]                                             # (V, 2C)
        te = tape_sq @ g["wte"]                                          # (B, T, 2C)
        addf = (se[None, :, None, :] + g["bx"][None, None, None, :]
                + te[:, None, :, :])                                     # (B, V, T, 2C)
        add_l.append(jnp.concatenate(
            [addf[..., :C].reshape(B, V, TC), addf[..., C:].reshape(B, V, TC)],
            axis=-1).reshape(BV, 2 * TC))

        lng_l.append(jnp.concatenate([jnp.tile(g["gamma"][:C], T),
                                      jnp.tile(g["gamma"][C:], T)])[None, :])
        lnb_l.append(jnp.concatenate([jnp.tile(g["beta"][:C], T),
                                      jnp.tile(g["beta"][C:], T)])[None, :])

    smask = jnp.stack(smask_l)        # (L, BV, t_size*BV)
    esc = jnp.stack(esc_l)            # (L, t_size, BV, TC)
    wxblk = jnp.stack(wxblk_l)        # (L, TC, 2*TC)
    add = jnp.stack(add_l)            # (L, BV, 2*TC)
    lng = jnp.stack(lng_l)            # (L, 1, 2*TC)
    lnb = jnp.stack(lnb_l)            # (L, 1, 2*TC)

    # grouped-LayerNorm averaging matrix (per-time groups of 2C lanes, split-halves layout)
    lane_group = jnp.tile(jnp.repeat(jnp.arange(T), C), 2)               # (2*TC,)
    gmat = (lane_group[:, None] == lane_group[None, :]).astype(f32) / (2 * C)

    # input layer (Linear D=1 -> C) as a broadcast scale in canonical (BV, T*C) layout
    x_rep = jnp.repeat(jnp.transpose(x[..., 0], (0, 2, 1)), C, axis=-1).reshape(BV, TC)
    wi_rep = jnp.tile(params["wi"][0], T)[None, :]                       # (1, TC)
    bi_rep = jnp.tile(params["bi"], T)[None, :]                          # (1, TC)

    # GFS: fold fc-conv and GLU linear (exact: no nonlinearity in between)
    wfs = jnp.stack([f["wfc"] @ f["wglu"] for f in params["fs"]])        # (L+1, TC, 2C)
    bfs = jnp.stack([(f["bfc"] @ f["wglu"] + f["bglu"])[None, :] for f in params["fs"]])

    # output conv columns zero-padded to 128 lanes -> unmasked, lane-dense store
    wo_pad = jnp.zeros((C4, OUTW), f32).at[:, :P * NF].set(params["wo"])
    bo_pad = jnp.zeros((1, OUTW), f32).at[:, :P * NF].set(params["bo"])

    out = pl.pallas_call(
        _stpgcn_fused_kernel,
        out_shape=jax.ShapeDtypeStruct((BV, OUTW), f32),
    )(x_rep, wi_rep, bi_rep, esc, smask, wfs, bfs, wxblk, add, gmat,
      lng, lnb, params["wg"], params["bg"][None, :], wo_pad, bo_pad)

    # (BV, 128) -> PyTorch NCHW output (B, P*NF, V, 1).  NF==1 so no reshape branch.
    y = out[:, :P * NF].reshape(B, V, P * NF)
    return jnp.transpose(y, (0, 2, 1))[..., None]


def init_params(key):
    keys = iter(jax.random.split(key, 64))
    nrm = lambda shape, s=0.1: s * jax.random.normal(next(keys), shape, jnp.float32)

    fs_params = []
    for _ in range(L + 1):                 # GFS for input skip + one per layer
        fs_params.append(dict(wfc=nrm((T * C, C)), bfc=nrm((C,)),
                              wglu=nrm((C, 2 * C)), bglu=nrm((2 * C,))))
    gc_params, ri_params = [], []
    for _ in range(L):
        gc_params.append(dict(wx=nrm((C, 2 * C)), bx=nrm((2 * C,)),
                              wse=nrm((d, 2 * C)), wte=nrm((d, 2 * C)),
                              gamma=jnp.ones((2 * C,), jnp.float32),
                              beta=jnp.zeros((2 * C,), jnp.float32)))
        ri_params.append({"mu": jax.random.normal(next(keys), (6, d), jnp.float32),
                          "isg": jax.random.normal(next(keys), (6, d), jnp.float32)})
    return dict(wi=nrm((D, C)), bi=nrm((C,)),
                fs=fs_params, gc=gc_params, ri=ri_params,
                wg=nrm((C4, 2 * C4)), bg=nrm((2 * C4,)),
                wo=nrm((C4, P * NF)), bo=nrm((P * NF,)))


if __name__ == "__main__":
    key = jax.random.PRNGKey(0)
    kp, kx, ks, kt, ksr, ktr, km = jax.random.split(key, 7)
    params = init_params(kp)

    x = jax.random.normal(kx, (B, T, V, D), jnp.float32)
    sape = jax.random.normal(ks, (V, d), jnp.float32)
    tape = jax.random.normal(kt, (B, T, 1, d), jnp.float32)
    srpe = jax.random.normal(ksr, (V, V, d), jnp.float32)
    trpe = jax.random.normal(ktr, (t_size, 1, d), jnp.float32)
    # zeros_x must match hidden width C (it is concatenated with the hidden state)
    zeros_x = jnp.zeros((B, beta, V, C), jnp.float32)
    zeros_tape = jnp.zeros((B, beta, 1, d), jnp.float32)
    range_mask = (jax.random.uniform(km, (V, t_size * V)) < 0.7).astype(jnp.float32)

    out = jax.jit(stpgcns_forward)(params, x, sape, tape, srpe, trpe,
                                   zeros_x, zeros_tape, range_mask)
    out = jax.block_until_ready(out)
    assert out.shape == (B, P * NF, V, 1), out.shape
    print("KERNEL_OK")
</pallas_src>

<mosaic_0001>
module attributes {stable_mosaic.version = 11 : i64} {
  func.func @_stpgcn_fused_kernel(%arg0: memref<32x64xf32, #tpu.memory_space<vmem>>, %arg1: memref<1x64xf32, #tpu.memory_space<vmem>>, %arg2: memref<1x64xf32, #tpu.memory_space<vmem>>, %arg3: memref<3x3x32x64xf32, #tpu.memory_space<vmem>>, %arg4: memref<3x32x96xf32, #tpu.memory_space<vmem>>, %arg5: memref<4x64x16xf32, #tpu.memory_space<vmem>>, %arg6: memref<4x1x16xf32, #tpu.memory_space<vmem>>, %arg7: memref<3x64x128xf32, #tpu.memory_space<vmem>>, %arg8: memref<3x32x128xf32, #tpu.memory_space<vmem>>, %arg9: memref<128x128xf32, #tpu.memory_space<vmem>>, %arg10: memref<3x1x128xf32, #tpu.memory_space<vmem>>, %arg11: memref<3x1x128xf32, #tpu.memory_space<vmem>>, %arg12: memref<32x64xf32, #tpu.memory_space<vmem>>, %arg13: memref<1x64xf32, #tpu.memory_space<vmem>>, %arg14: memref<32x128xf32, #tpu.memory_space<vmem>>, %arg15: memref<1x128xf32, #tpu.memory_space<vmem>>, %arg16: memref<32x128xf32, #tpu.memory_space<vmem>>) attributes {dimension_semantics = [], scalar_prefetch = 0 : i64, scratch_operands = 0 : i64, tpu.core_type = #tpu.core_type<tc>} {
    %c0 = arith.constant 0 : index
    %c0_0 = arith.constant 0 : index
    %0 = vector.load %arg0[%c0, %c0_0] : memref<32x64xf32, #tpu.memory_space<vmem>>, vector<32x64xf32>
    %c0_1 = arith.constant 0 : index
    %c0_2 = arith.constant 0 : index
    %1 = vector.load %arg1[%c0_1, %c0_2] : memref<1x64xf32, #tpu.memory_space<vmem>>, vector<1x64xf32>
    %2 = vector.broadcast %1 : vector<1x64xf32> to vector<32x64xf32>
    %3 = arith.mulf %0, %2 : vector<32x64xf32>
    %c0_3 = arith.constant 0 : index
    %c0_4 = arith.constant 0 : index
    %4 = vector.load %arg2[%c0_3, %c0_4] : memref<1x64xf32, #tpu.memory_space<vmem>>, vector<1x64xf32>
    %5 = vector.broadcast %4 : vector<1x64xf32> to vector<32x64xf32>
    %6 = arith.addf %3, %5 : vector<32x64xf32>
    %c0_5 = arith.constant 0 : index
    %c0_6 = arith.constant 0 : index
    %c0_7 = arith.constant 0 : index
    %7 = vector.load %arg5[%c0_5, %c0_6, %c0_7] : memref<4x64x16xf32, #tpu.memory_space<vmem>>, vector<1x64x16xf32>
    %8 = vector.shape_cast %7 : vector<1x64x16xf32> to vector<64x16xf32>
    %cst = arith.constant dense<0.000000e+00> : vector<32x16xf32>
    %9 = tpu.matmul %6, %8, %cst {dimension_numbers = #tpu.dot_dimension_numbers<[1], [0], [0], [1], [0, 0, 1, 1], [], []>} : vector<32x64xf32>, vector<64x16xf32>, vector<32x16xf32> -> vector<32x16xf32>
    %c0_8 = arith.constant 0 : index
    %c0_9 = arith.constant 0 : index
    %c0_10 = arith.constant 0 : index
    %10 = vector.load %arg6[%c0_8, %c0_9, %c0_10] : memref<4x1x16xf32, #tpu.memory_space<vmem>>, vector<1x1x16xf32>
    %11 = vector.shape_cast %10 : vector<1x1x16xf32> to vector<1x16xf32>
    %12 = vector.broadcast %11 : vector<1x16xf32> to vector<32x16xf32>
    %13 = arith.addf %9, %12 : vector<32x16xf32>
    %14 = vector.extract_strided_slice %13 {offsets = [0, 0], sizes = [32, 8], strides = [1, 1]} : vector<32x16xf32> to vector<32x8xf32>
    %15 = vector.extract_strided_slice %13 {offsets = [0, 8], sizes = [32, 8], strides = [1, 1]} : vector<32x16xf32> to vector<32x8xf32>
    %16 = arith.negf %15 : vector<32x8xf32>
    %17 = math.exp %16 : vector<32x8xf32>
    %cst_11 = arith.constant 1.000000e+00 : f32
    %18 = vector.broadcast %cst_11 : f32 to vector<32x8xf32>
    %19 = arith.addf %18, %17 : vector<32x8xf32>
    %20 = arith.divf %18, %19 : vector<32x8xf32>
    %21 = arith.mulf %14, %20 : vector<32x8xf32>
    %c0_12 = arith.constant 0 : index
    %c0_13 = arith.constant 0 : index
    %22 = vector.load %arg9[%c0_12, %c0_13] : memref<128x128xf32, #tpu.memory_space<vmem>>, vector<128x128xf32>
    %cst_14 = arith.constant 0.000000e+00 : f32
    %23 = vector.broadcast %cst_14 : f32 to vector<32x16xf32>
    %24 = vector.extract_strided_slice %6 {offsets = [0, 0], sizes = [32, 48], strides = [1, 1]} : vector<32x64xf32> to vector<32x48xf32>
    %25 = tpu.concatenate %23, %24 in 1 : vector<32x16xf32>, vector<32x48xf32> -> vector<32x64xf32>
    %c0_15 = arith.constant 0 : index
    %c0_16 = arith.constant 0 : index
    %c0_17 = arith.constant 0 : index
    %c0_18 = arith.constant 0 : index
    %26 = vector.load %arg3[%c0_15, %c0_16, %c0_17, %c0_18] : memref<3x3x32x64xf32, #tpu.memory_space<vmem>>, vector<1x1x32x64xf32>
    %27 = vector.shape_cast %26 : vector<1x1x32x64xf32> to vector<32x64xf32>
    %28 = arith.mulf %25, %27 : vector<32x64xf32>
    %cst_19 = arith.constant 0.000000e+00 : f32
    %29 = vector.broadcast %cst_19 : f32 to vector<32x8xf32>
    %30 = vector.extract_strided_slice %6 {offsets = [0, 0], sizes = [32, 56], strides = [1, 1]} : vector<32x64xf32> to vector<32x56xf32>
    %31 = tpu.concatenate %29, %30 in 1 : vector<32x8xf32>, vector<32x56xf32> -> vector<32x64xf32>
    %c0_20 = arith.constant 0 : index
    %c1 = arith.constant 1 : index
    %c0_21 = arith.constant 0 : index
    %c0_22 = arith.constant 0 : index
    %32 = vector.load %arg3[%c0_20, %c1, %c0_21, %c0_22] : memref<3x3x32x64xf32, #tpu.memory_space<vmem>>, vector<1x1x32x64xf32>
    %33 = vector.shape_cast %32 : vector<1x1x32x64xf32> to vector<32x64xf32>
    %34 = arith.mulf %31, %33 : vector<32x64xf32>
    %c0_23 = arith.constant 0 : index
    %c2 = arith.constant 2 : index
    %c0_24 = arith.constant 0 : index
    %c0_25 = arith.constant 0 : index
    %35 = vector.load %arg3[%c0_23, %c2, %c0_24, %c0_25] : memref<3x3x32x64xf32, #tpu.memory_space<vmem>>, vector<1x1x32x64xf32>
    %36 = vector.shape_cast %35 : vector<1x1x32x64xf32> to vector<32x64xf32>
    %37 = arith.mulf %6, %36 : vector<32x64xf32>
    %38 = tpu.concatenate %28, %34, %37 in 0 : vector<32x64xf32>, vector<32x64xf32>, vector<32x64xf32> -> vector<96x64xf32>
    %c0_26 = arith.constant 0 : index
    %c0_27 = arith.constant 0 : index
    %c0_28 = arith.constant 0 : index
    %39 = vector.load %arg4[%c0_26, %c0_27, %c0_28] : memref<3x32x96xf32, #tpu.memory_space<vmem>>, vector<1x32x96xf32>
    %40 = vector.shape_cast %39 : vector<1x32x96xf32> to vector<32x96xf32>
    %cst_29 = arith.constant dense<0.000000e+00> : vector<32x64xf32>
    %41 = tpu.matmul %40, %38, %cst_29 {dimension_numbers = #tpu.dot_dimension_numbers<[1], [0], [0], [1], [0, 0, 1, 1], [], []>} : vector<32x96xf32>, vector<96x64xf32>, vector<32x64xf32> -> vector<32x64xf32>
    %c0_30 = arith.constant 0 : index
    %c0_31 = arith.constant 0 : index
    %c0_32 = arith.constant 0 : index
    %42 = vector.load %arg7[%c0_30, %c0_31, %c0_32] : memref<3x64x128xf32, #tpu.memory_space<vmem>>, vector<1x64x128xf32>
    %43 = vector.shape_cast %42 : vector<1x64x128xf32> to vector<64x128xf32>
    %cst_33 = arith.constant dense<0.000000e+00> : vector<32x128xf32>
    %44 = tpu.matmul %41, %43, %cst_33 {dimension_numbers = #tpu.dot_dimension_numbers<[1], [0], [0], [1], [0, 0, 1, 1], [], []>} : vector<32x64xf32>, vector<64x128xf32>, vector<32x128xf32> -> vector<32x128xf32>
    %c0_34 = arith.constant 0 : index
    %c0_35 = arith.constant 0 : index
    %c0_36 = arith.constant 0 : index
    %45 = vector.load %arg8[%c0_34, %c0_35, %c0_36] : memref<3x32x128xf32, #tpu.memory_space<vmem>>, vector<1x32x128xf32>
    %46 = vector.shape_cast %45 : vector<1x32x128xf32> to vector<32x128xf32>
    %47 = arith.addf %44, %46 : vector<32x128xf32>
    %48 = arith.mulf %47, %47 : vector<32x128xf32>
    %49 = tpu.concatenate %47, %48 in 0 : vector<32x128xf32>, vector<32x128xf32> -> vector<64x128xf32>
    %cst_37 = arith.constant dense<0.000000e+00> : vector<64x128xf32>
    %50 = tpu.matmul %49, %22, %cst_37 {dimension_numbers = #tpu.dot_dimension_numbers<[1], [0], [0], [1], [0, 0, 1, 1], [], []>} : vector<64x128xf32>, vector<128x128xf32>, vector<64x128xf32> -> vector<64x128xf32>
    %51 = vector.extract_strided_slice %50 {offsets = [0, 0], sizes = [32, 128], strides = [1, 1]} : vector<64x128xf32> to vector<32x128xf32>
    %52 = vector.extract_strided_slice %50 {offsets = [32, 0], sizes = [32, 128], strides = [1, 1]} : vector<64x128xf32> to vector<32x128xf32>
    %53 = arith.mulf %51, %51 : vector<32x128xf32>
    %54 = arith.subf %52, %53 : vector<32x128xf32>
    %55 = arith.subf %47, %51 : vector<32x128xf32>
    %cst_38 = arith.constant 9.99999974E-6 : f32
    %56 = vector.broadcast %cst_38 : f32 to vector<32x128xf32>
    %57 = arith.addf %54, %56 : vector<32x128xf32>
    %58 = math.rsqrt %57 : vector<32x128xf32>
    %59 = arith.mulf %55, %58 : vector<32x128xf32>
    %c0_39 = arith.constant 0 : index
    %c0_40 = arith.constant 0 : index
    %c0_41 = arith.constant 0 : index
    %60 = vector.load %arg10[%c0_39, %c0_40, %c0_41] : memref<3x1x128xf32, #tpu.memory_space<vmem>>, vector<1x1x128xf32>
    %61 = vector.shape_cast %60 : vector<1x1x128xf32> to vector<1x128xf32>
    %62 = vector.broadcast %61 : vector<1x128xf32> to vector<32x128xf32>
    %63 = arith.mulf %59, %62 : vector<32x128xf32>
    %c0_42 = arith.constant 0 : index
    %c0_43 = arith.constant 0 : index
    %c0_44 = arith.constant 0 : index
    %64 = vector.load %arg11[%c0_42, %c0_43, %c0_44] : memref<3x1x128xf32, #tpu.memory_space<vmem>>, vector<1x1x128xf32>
    %65 = vector.shape_cast %64 : vector<1x1x128xf32> to vector<1x128xf32>
    %66 = vector.broadcast %65 : vector<1x128xf32> to vector<32x128xf32>
    %67 = arith.addf %63, %66 : vector<32x128xf32>
    %68 = vector.extract_strided_slice %67 {offsets = [0, 0], sizes = [32, 64], strides = [1, 1]} : vector<32x128xf32> to vector<32x64xf32>
    %69 = vector.extract_strided_slice %67 {offsets = [0, 64], sizes = [32, 64], strides = [1, 1]} : vector<32x128xf32> to vector<32x64xf32>
    %70 = arith.negf %69 : vector<32x64xf32>
    %71 = math.exp %70 : vector<32x64xf32>
    %cst_45 = arith.constant 1.000000e+00 : f32
    %72 = vector.broadcast %cst_45 : f32 to vector<32x64xf32>
    %73 = arith.addf %72, %71 : vector<32x64xf32>
    %74 = arith.divf %72, %73 : vector<32x64xf32>
    %75 = arith.mulf %68, %74 : vector<32x64xf32>
    %c1_46 = arith.constant 1 : index
    %c0_47 = arith.constant 0 : index
    %c0_48 = arith.constant 0 : index
    %76 = vector.load %arg5[%c1_46, %c0_47, %c0_48] : memref<4x64x16xf32, #tpu.memory_space<vmem>>, vector<1x64x16xf32>
    %77 = vector.shape_cast %76 : vector<1x64x16xf32> to vector<64x16xf32>
    %cst_49 = arith.constant dense<0.000000e+00> : vector<32x16xf32>
    %78 = tpu.matmul %75, %77, %cst_49 {dimension_numbers = #tpu.dot_dimension_numbers<[1], [0], [0], [1], [0, 0, 1, 1], [], []>} : vector<32x64xf32>, vector<64x16xf32>, vector<32x16xf32> -> vector<32x16xf32>
    %c1_50 = arith.constant 1 : index
    %c0_51 = arith.constant 0 : index
    %c0_52 = arith.constant 0 : index
    %79 = vector.load %arg6[%c1_50, %c0_51, %c0_52] : memref<4x1x16xf32, #tpu.memory_space<vmem>>, vector<1x1x16xf32>
    %80 = vector.shape_cast %79 : vector<1x1x16xf32> to vector<1x16xf32>
    %81 = vector.broadcast %80 : vector<1x16xf32> to vector<32x16xf32>
    %82 = arith.addf %78, %81 : vector<32x16xf32>
    %83 = vector.extract_strided_slice %82 {offsets = [0, 0], sizes = [32, 8], strides = [1, 1]} : vector<32x16xf32> to vector<32x8xf32>
    %84 = vector.extract_strided_slice %82 {offsets = [0, 8], sizes = [32, 8], strides = [1, 1]} : vector<32x16xf32> to vector<32x8xf32>
    %85 = arith.negf %84 : vector<32x8xf32>
    %86 = math.exp %85 : vector<32x8xf32>
    %cst_53 = arith.constant 1.000000e+00 : f32
    %87 = vector.broadcast %cst_53 : f32 to vector<32x8xf32>
    %88 = arith.addf %87, %86 : vector<32x8xf32>
    %89 = arith.divf %87, %88 : vector<32x8xf32>
    %90 = arith.mulf %83, %89 : vector<32x8xf32>
    %cst_54 = arith.constant 0.000000e+00 : f32
    %91 = vector.broadcast %cst_54 : f32 to vector<32x16xf32>
    %92 = vector.extract_strided_slice %75 {offsets = [0, 0], sizes = [32, 48], strides = [1, 1]} : vector<32x64xf32> to vector<32x48xf32>
    %93 = tpu.concatenate %91, %92 in 1 : vector<32x16xf32>, vector<32x48xf32> -> vector<32x64xf32>
    %c1_55 = arith.constant 1 : index
    %c0_56 = arith.constant 0 : index
    %c0_57 = arith.constant 0 : index
    %c0_58 = arith.constant 0 : index
    %94 = vector.load %arg3[%c1_55, %c0_56, %c0_57, %c0_58] : memref<3x3x32x64xf32, #tpu.memory_space<vmem>>, vector<1x1x32x64xf32>
    %95 = vector.shape_cast %94 : vector<1x1x32x64xf32> to vector<32x64xf32>
    %96 = arith.mulf %93, %95 : vector<32x64xf32>
    %cst_59 = arith.constant 0.000000e+00 : f32
    %97 = vector.broadcast %cst_59 : f32 to vector<32x8xf32>
    %98 = vector.extract_strided_slice %75 {offsets = [0, 0], sizes = [32, 56], strides = [1, 1]} : vector<32x64xf32> to vector<32x56xf32>
    %99 = tpu.concatenate %97, %98 in 1 : vector<32x8xf32>, vector<32x56xf32> -> vector<32x64xf32>
    %c1_60 = arith.constant 1 : index
    %c1_61 = arith.constant 1 : index
    %c0_62 = arith.constant 0 : index
    %c0_63 = arith.constant 0 : index
    %100 = vector.load %arg3[%c1_60, %c1_61, %c0_62, %c0_63] : memref<3x3x32x64xf32, #tpu.memory_space<vmem>>, vector<1x1x32x64xf32>
    %101 = vector.shape_cast %100 : vector<1x1x32x64xf32> to vector<32x64xf32>
    %102 = arith.mulf %99, %101 : vector<32x64xf32>
    %c1_64 = arith.constant 1 : index
    %c2_65 = arith.constant 2 : index
    %c0_66 = arith.constant 0 : index
    %c0_67 = arith.constant 0 : index
    %103 = vector.load %arg3[%c1_64, %c2_65, %c0_66, %c0_67] : memref<3x3x32x64xf32, #tpu.memory_space<vmem>>, vector<1x1x32x64xf32>
    %104 = vector.shape_cast %103 : vector<1x1x32x64xf32> to vector<32x64xf32>
    %105 = arith.mulf %75, %104 : vector<32x64xf32>
    %106 = tpu.concatenate %96, %102, %105 in 0 : vector<32x64xf32>, vector<32x64xf32>, vector<32x64xf32> -> vector<96x64xf32>
    %c1_68 = arith.constant 1 : index
    %c0_69 = arith.constant 0 : index
    %c0_70 = arith.constant 0 : index
    %107 = vector.load %arg4[%c1_68, %c0_69, %c0_70] : memref<3x32x96xf32, #tpu.memory_space<vmem>>, vector<1x32x96xf32>
    %108 = vector.shape_cast %107 : vector<1x32x96xf32> to vector<32x96xf32>
    %cst_71 = arith.constant dense<0.000000e+00> : vector<32x64xf32>
    %109 = tpu.matmul %108, %106, %cst_71 {dimension_numbers = #tpu.dot_dimension_numbers<[1], [0], [0], [1], [0, 0, 1, 1], [], []>} : vector<32x96xf32>, vector<96x64xf32>, vector<32x64xf32> -> vector<32x64xf32>
    %c1_72 = arith.constant 1 : index
    %c0_73 = arith.constant 0 : index
    %c0_74 = arith.constant 0 : index
    %110 = vector.load %arg7[%c1_72, %c0_73, %c0_74] : memref<3x64x128xf32, #tpu.memory_space<vmem>>, vector<1x64x128xf32>
    %111 = vector.shape_cast %110 : vector<1x64x128xf32> to vector<64x128xf32>
    %cst_75 = arith.constant dense<0.000000e+00> : vector<32x128xf32>
    %112 = tpu.matmul %109, %111, %cst_75 {dimension_numbers = #tpu.dot_dimension_numbers<[1], [0], [0], [1], [0, 0, 1, 1], [], []>} : vector<32x64xf32>, vector<64x128xf32>, vector<32x128xf32> -> vector<32x128xf32>
    %c1_76 = arith.constant 1 : index
    %c0_77 = arith.constant 0 : index
    %c0_78 = arith.constant 0 : index
    %113 = vector.load %arg8[%c1_76, %c0_77, %c0_78] : memref<3x32x128xf32, #tpu.memory_space<vmem>>, vector<1x32x128xf32>
    %114 = vector.shape_cast %113 : vector<1x32x128xf32> to vector<32x128xf32>
    %115 = arith.addf %112, %114 : vector<32x128xf32>
    %116 = arith.mulf %115, %115 : vector<32x128xf32>
    %117 = tpu.concatenate %115, %116 in 0 : vector<32x128xf32>, vector<32x128xf32> -> vector<64x128xf32>
    %cst_79 = arith.constant dense<0.000000e+00> : vector<64x128xf32>
    %118 = tpu.matmul %117, %22, %cst_79 {dimension_numbers = #tpu.dot_dimension_numbers<[1], [0], [0], [1], [0, 0, 1, 1], [], []>} : vector<64x128xf32>, vector<128x128xf32>, vector<64x128xf32> -> vector<64x128xf32>
    %119 = vector.extract_strided_slice %118 {offsets = [0, 0], sizes = [32, 128], strides = [1, 1]} : vector<64x128xf32> to vector<32x128xf32>
    %120 = vector.extract_strided_slice %118 {offsets = [32, 0], sizes = [32, 128], strides = [1, 1]} : vector<64x128xf32> to vector<32x128xf32>
    %121 = arith.mulf %119, %119 : vector<32x128xf32>
    %122 = arith.subf %120, %121 : vector<32x128xf32>
    %123 = arith.subf %115, %119 : vector<32x128xf32>
    %cst_80 = arith.constant 9.99999974E-6 : f32
    %124 = vector.broadcast %cst_80 : f32 to vector<32x128xf32>
    %125 = arith.addf %122, %124 : vector<32x128xf32>
    %126 = math.rsqrt %125 : vector<32x128xf32>
    %127 = arith.mulf %123, %126 : vector<32x128xf32>
    %c1_81 = arith.constant 1 : index
    %c0_82 = arith.constant 0 : index
    %c0_83 = arith.constant 0 : index
    %128 = vector.load %arg10[%c1_81, %c0_82, %c0_83] : memref<3x1x128xf32, #tpu.memory_space<vmem>>, vector<1x1x128xf32>
    %129 = vector.shape_cast %128 : vector<1x1x128xf32> to vector<1x128xf32>
    %130 = vector.broadcast %129 : vector<1x128xf32> to vector<32x128xf32>
    %131 = arith.mulf %127, %130 : vector<32x128xf32>
    %c1_84 = arith.constant 1 : index
    %c0_85 = arith.constant 0 : index
    %c0_86 = arith.constant 0 : index
    %132 = vector.load %arg11[%c1_84, %c0_85, %c0_86] : memref<3x1x128xf32, #tpu.memory_space<vmem>>, vector<1x1x128xf32>
    %133 = vector.shape_cast %132 : vector<1x1x128xf32> to vector<1x128xf32>
    %134 = vector.broadcast %133 : vector<1x128xf32> to vector<32x128xf32>
    %135 = arith.addf %131, %134 : vector<32x128xf32>
    %136 = vector.extract_strided_slice %135 {offsets = [0, 0], sizes = [32, 64], strides = [1, 1]} : vector<32x128xf32> to vector<32x64xf32>
    %137 = vector.extract_strided_slice %135 {offsets = [0, 64], sizes = [32, 64], strides = [1, 1]} : vector<32x128xf32> to vector<32x64xf32>
    %138 = arith.negf %137 : vector<32x64xf32>
    %139 = math.exp %138 : vector<32x64xf32>
    %cst_87 = arith.constant 1.000000e+00 : f32
    %140 = vector.broadcast %cst_87 : f32 to vector<32x64xf32>
    %141 = arith.addf %140, %139 : vector<32x64xf32>
    %142 = arith.divf %140, %141 : vector<32x64xf32>
    %143 = arith.mulf %136, %142 : vector<32x64xf32>
    %c2_88 = arith.constant 2 : index
    %c0_89 = arith.constant 0 : index
    %c0_90 = arith.constant 0 : index
    %144 = vector.load %arg5[%c2_88, %c0_89, %c0_90] : memref<4x64x16xf32, #tpu.memory_space<vmem>>, vector<1x64x16xf32>
    %145 = vector.shape_cast %144 : vector<1x64x16xf32> to vector<64x16xf32>
    %cst_91 = arith.constant dense<0.000000e+00> : vector<32x16xf32>
    %146 = tpu.matmul %143, %145, %cst_91 {dimension_numbers = #tpu.dot_dimension_numbers<[1], [0], [0], [1], [0, 0, 1, 1], [], []>} : vector<32x64xf32>, vector<64x16xf32>, vector<32x16xf32> -> vector<32x16xf32>
    %c2_92 = arith.constant 2 : index
    %c0_93 = arith.constant 0 : index
    %c0_94 = arith.constant 0 : index
    %147 = vector.load %arg6[%c2_92, %c0_93, %c0_94] : memref<4x1x16xf32, #tpu.memory_space<vmem>>, vector<1x1x16xf32>
    %148 = vector.shape_cast %147 : vector<1x1x16xf32> to vector<1x16xf32>
    %149 = vector.broadcast %148 : vector<1x16xf32> to vector<32x16xf32>
    %150 = arith.addf %146, %149 : vector<32x16xf32>
    %151 = vector.extract_strided_slice %150 {offsets = [0, 0], sizes = [32, 8], strides = [1, 1]} : vector<32x16xf32> to vector<32x8xf32>
    %152 = vector.extract_strided_slice %150 {offsets = [0, 8], sizes = [32, 8], strides = [1, 1]} : vector<32x16xf32> to vector<32x8xf32>
    %153 = arith.negf %152 : vector<32x8xf32>
    %154 = math.exp %153 : vector<32x8xf32>
    %cst_95 = arith.constant 1.000000e+00 : f32
    %155 = vector.broadcast %cst_95 : f32 to vector<32x8xf32>
    %156 = arith.addf %155, %154 : vector<32x8xf32>
    %157 = arith.divf %155, %156 : vector<32x8xf32>
    %158 = arith.mulf %151, %157 : vector<32x8xf32>
    %cst_96 = arith.constant 0.000000e+00 : f32
    %159 = vector.broadcast %cst_96 : f32 to vector<32x16xf32>
    %160 = vector.extract_strided_slice %143 {offsets = [0, 0], sizes = [32, 48], strides = [1, 1]} : vector<32x64xf32> to vector<32x48xf32>
    %161 = tpu.concatenate %159, %160 in 1 : vector<32x16xf32>, vector<32x48xf32> -> vector<32x64xf32>
    %c2_97 = arith.constant 2 : index
    %c0_98 = arith.constant 0 : index
    %c0_99 = arith.constant 0 : index
    %c0_100 = arith.constant 0 : index
    %162 = vector.load %arg3[%c2_97, %c0_98, %c0_99, %c0_100] : memref<3x3x32x64xf32, #tpu.memory_space<vmem>>, vector<1x1x32x64xf32>
    %163 = vector.shape_cast %162 : vector<1x1x32x64xf32> to vector<32x64xf32>
    %164 = arith.mulf %161, %163 : vector<32x64xf32>
    %cst_101 = arith.constant 0.000000e+00 : f32
    %165 = vector.broadcast %cst_101 : f32 to vector<32x8xf32>
    %166 = vector.extract_strided_slice %143 {offsets = [0, 0], sizes = [32, 56], strides = [1, 1]} : vector<32x64xf32> to vector<32x56xf32>
    %167 = tpu.concatenate %165, %166 in 1 : vector<32x8xf32>, vector<32x56xf32> -> vector<32x64xf32>
    %c2_102 = arith.constant 2 : index
    %c1_103 = arith.constant 1 : index
    %c0_104 = arith.constant 0 : index
    %c0_105 = arith.constant 0 : index
    %168 = vector.load %arg3[%c2_102, %c1_103, %c0_104, %c0_105] : memref<3x3x32x64xf32, #tpu.memory_space<vmem>>, vector<1x1x32x64xf32>
    %169 = vector.shape_cast %168 : vector<1x1x32x64xf32> to vector<32x64xf32>
    %170 = arith.mulf %167, %169 : vector<32x64xf32>
    %c2_106 = arith.constant 2 : index
    %c2_107 = arith.constant 2 : index
    %c0_108 = arith.constant 0 : index
    %c0_109 = arith.constant 0 : index
    %171 = vector.load %arg3[%c2_106, %c2_107, %c0_108, %c0_109] : memref<3x3x32x64xf32, #tpu.memory_space<vmem>>, vector<1x1x32x64xf32>
    %172 = vector.shape_cast %171 : vector<1x1x32x64xf32> to vector<32x64xf32>
    %173 = arith.mulf %143, %172 : vector<32x64xf32>
    %174 = tpu.concatenate %164, %170, %173 in 0 : vector<32x64xf32>, vector<32x64xf32>, vector<32x64xf32> -> vector<96x64xf32>
    %c2_110 = arith.constant 2 : index
    %c0_111 = arith.constant 0 : index
    %c0_112 = arith.constant 0 : index
    %175 = vector.load %arg4[%c2_110, %c0_111, %c0_112] : memref<3x32x96xf32, #tpu.memory_space<vmem>>, vector<1x32x96xf32>
    %176 = vector.shape_cast %175 : vector<1x32x96xf32> to vector<32x96xf32>
    %cst_113 = arith.constant dense<0.000000e+00> : vector<32x64xf32>
    %177 = tpu.matmul %176, %174, %cst_113 {dimension_numbers = #tpu.dot_dimension_numbers<[1], [0], [0], [1], [0, 0, 1, 1], [], []>} : vector<32x96xf32>, vector<96x64xf32>, vector<32x64xf32> -> vector<32x64xf32>
    %c2_114 = arith.constant 2 : index
    %c0_115 = arith.constant 0 : index
    %c0_116 = arith.constant 0 : index
    %178 = vector.load %arg7[%c2_114, %c0_115, %c0_116] : memref<3x64x128xf32, #tpu.memory_space<vmem>>, vector<1x64x128xf32>
    %179 = vector.shape_cast %178 : vector<1x64x128xf32> to vector<64x128xf32>
    %cst_117 = arith.constant dense<0.000000e+00> : vector<32x128xf32>
    %180 = tpu.matmul %177, %179, %cst_117 {dimension_numbers = #tpu.dot_dimension_numbers<[1], [0], [0], [1], [0, 0, 1, 1], [], []>} : vector<32x64xf32>, vector<64x128xf32>, vector<32x128xf32> -> vector<32x128xf32>
    %c2_118 = arith.constant 2 : index
    %c0_119 = arith.constant 0 : index
    %c0_120 = arith.constant 0 : index
    %181 = vector.load %arg8[%c2_118, %c0_119, %c0_120] : memref<3x32x128xf32, #tpu.memory_space<vmem>>, vector<1x32x128xf32>
    %182 = vector.shape_cast %181 : vector<1x32x128xf32> to vector<32x128xf32>
    %183 = arith.addf %180, %182 : vector<32x128xf32>
    %184 = arith.mulf %183, %183 : vector<32x128xf32>
    %185 = tpu.concatenate %183, %184 in 0 : vector<32x128xf32>, vector<32x128xf32> -> vector<64x128xf32>
    %cst_121 = arith.constant dense<0.000000e+00> : vector<64x128xf32>
    %186 = tpu.matmul %185, %22, %cst_121 {dimension_numbers = #tpu.dot_dimension_numbers<[1], [0], [0], [1], [0, 0, 1, 1], [], []>} : vector<64x128xf32>, vector<128x128xf32>, vector<64x128xf32> -> vector<64x128xf32>
    %187 = vector.extract_strided_slice %186 {offsets = [0, 0], sizes = [32, 128], strides = [1, 1]} : vector<64x128xf32> to vector<32x128xf32>
    %188 = vector.extract_strided_slice %186 {offsets = [32, 0], sizes = [32, 128], strides = [1, 1]} : vector<64x128xf32> to vector<32x128xf32>
    %189 = arith.mulf %187, %187 : vector<32x128xf32>
    %190 = arith.subf %188, %189 : vector<32x128xf32>
    %191 = arith.subf %183, %187 : vector<32x128xf32>
    %cst_122 = arith.constant 9.99999974E-6 : f32
    %192 = vector.broadcast %cst_122 : f32 to vector<32x128xf32>
    %193 = arith.addf %190, %192 : vector<32x128xf32>
    %194 = math.rsqrt %193 : vector<32x128xf32>
    %195 = arith.mulf %191, %194 : vector<32x128xf32>
    %c2_123 = arith.constant 2 : index
    %c0_124 = arith.constant 0 : index
    %c0_125 = arith.constant 0 : index
    %196 = vector.load %arg10[%c2_123, %c0_124, %c0_125] : memref<3x1x128xf32, #tpu.memory_space<vmem>>, vector<1x1x128xf32>
    %197 = vector.shape_cast %196 : vector<1x1x128xf32> to vector<1x128xf32>
    %198 = vector.broadcast %197 : vector<1x128xf32> to vector<32x128xf32>
    %199 = arith.mulf %195, %198 : vector<32x128xf32>
    %c2_126 = arith.constant 2 : index
    %c0_127 = arith.constant 0 : index
    %c0_128 = arith.constant 0 : index
    %200 = vector.load %arg11[%c2_126, %c0_127, %c0_128] : memref<3x1x128xf32, #tpu.memory_space<vmem>>, vector<1x1x128xf32>
    %201 = vector.shape_cast %200 : vector<1x1x128xf32> to vector<1x128xf32>
    %202 = vector.broadcast %201 : vector<1x128xf32> to vector<32x128xf32>
    %203 = arith.addf %199, %202 : vector<32x128xf32>
    %204 = vector.extract_strided_slice %203 {offsets = [0, 0], sizes = [32, 64], strides = [1, 1]} : vector<32x128xf32> to vector<32x64xf32>
    %205 = vector.extract_strided_slice %203 {offsets = [0, 64], sizes = [32, 64], strides = [1, 1]} : vector<32x128xf32> to vector<32x64xf32>
    %206 = arith.negf %205 : vector<32x64xf32>
    %207 = math.exp %206 : vector<32x64xf32>
    %cst_129 = arith.constant 1.000000e+00 : f32
    %208 = vector.broadcast %cst_129 : f32 to vector<32x64xf32>
    %209 = arith.addf %208, %207 : vector<32x64xf32>
    %210 = arith.divf %208, %209 : vector<32x64xf32>
    %211 = arith.mulf %204, %210 : vector<32x64xf32>
    %c3 = arith.constant 3 : index
    %c0_130 = arith.constant 0 : index
    %c0_131 = arith.constant 0 : index
    %212 = vector.load %arg5[%c3, %c0_130, %c0_131] : memref<4x64x16xf32, #tpu.memory_space<vmem>>, vector<1x64x16xf32>
    %213 = vector.shape_cast %212 : vector<1x64x16xf32> to vector<64x16xf32>
    %cst_132 = arith.constant dense<0.000000e+00> : vector<32x16xf32>
    %214 = tpu.matmul %211, %213, %cst_132 {dimension_numbers = #tpu.dot_dimension_numbers<[1], [0], [0], [1], [0, 0, 1, 1], [], []>} : vector<32x64xf32>, vector<64x16xf32>, vector<32x16xf32> -> vector<32x16xf32>
    %c3_133 = arith.constant 3 : index
    %c0_134 = arith.constant 0 : index
    %c0_135 = arith.constant 0 : index
    %215 = vector.load %arg6[%c3_133, %c0_134, %c0_135] : memref<4x1x16xf32, #tpu.memory_space<vmem>>, vector<1x1x16xf32>
    %216 = vector.shape_cast %215 : vector<1x1x16xf32> to vector<1x16xf32>
    %217 = vector.broadcast %216 : vector<1x16xf32> to vector<32x16xf32>
    %218 = arith.addf %214, %217 : vector<32x16xf32>
    %219 = vector.extract_strided_slice %218 {offsets = [0, 0], sizes = [32, 8], strides = [1, 1]} : vector<32x16xf32> to vector<32x8xf32>
    %220 = vector.extract_strided_slice %218 {offsets = [0, 8], sizes = [32, 8], strides = [1, 1]} : vector<32x16xf32> to vector<32x8xf32>
    %221 = arith.negf %220 : vector<32x8xf32>
    %222 = math.exp %221 : vector<32x8xf32>
    %cst_136 = arith.constant 1.000000e+00 : f32
    %223 = vector.broadcast %cst_136 : f32 to vector<32x8xf32>
    %224 = arith.addf %223, %222 : vector<32x8xf32>
    %225 = arith.divf %223, %224 : vector<32x8xf32>
    %226 = arith.mulf %219, %225 : vector<32x8xf32>
    %227 = tpu.concatenate %21, %90, %158, %226 in 1 : vector<32x8xf32>, vector<32x8xf32>, vector<32x8xf32>, vector<32x8xf32> -> vector<32x32xf32>
    %c0_137 = arith.constant 0 : index
    %c0_138 = arith.constant 0 : index
    %228 = vector.load %arg12[%c0_137, %c0_138] : memref<32x64xf32, #tpu.memory_space<vmem>>, vector<32x64xf32>
    %cst_139 = arith.constant dense<0.000000e+00> : vector<32x64xf32>
    %229 = tpu.matmul %227, %228, %cst_139 {dimension_numbers = #tpu.dot_dimension_numbers<[1], [0], [0], [1], [0, 0, 1, 1], [], []>} : vector<32x32xf32>, vector<32x64xf32>, vector<32x64xf32> -> vector<32x64xf32>
    %c0_140 = arith.constant 0 : index
    %c0_141 = arith.constant 0 : index
    %230 = vector.load %arg13[%c0_140, %c0_141] : memref<1x64xf32, #tpu.memory_space<vmem>>, vector<1x64xf32>
    %231 = vector.broadcast %230 : vector<1x64xf32> to vector<32x64xf32>
    %232 = arith.addf %229, %231 : vector<32x64xf32>
    %233 = vector.extract_strided_slice %232 {offsets = [0, 0], sizes = [32, 32], strides = [1, 1]} : vector<32x64xf32> to vector<32x32xf32>
    %234 = vector.extract_strided_slice %232 {offsets = [0, 32], sizes = [32, 32], strides = [1, 1]} : vector<32x64xf32> to vector<32x32xf32>
    %235 = arith.negf %234 : vector<32x32xf32>
    %236 = math.exp %235 : vector<32x32xf32>
    %cst_142 = arith.constant 1.000000e+00 : f32
    %237 = vector.broadcast %cst_142 : f32 to vector<32x32xf32>
    %238 = arith.addf %237, %236 : vector<32x32xf32>
    %239 = arith.divf %237, %238 : vector<32x32xf32>
    %240 = arith.mulf %233, %239 : vector<32x32xf32>
    %c0_143 = arith.constant 0 : index
    %c0_144 = arith.constant 0 : index
    %241 = vector.load %arg14[%c0_143, %c0_144] : memref<32x128xf32, #tpu.memory_space<vmem>>, vector<32x128xf32>
    %cst_145 = arith.constant dense<0.000000e+00> : vector<32x128xf32>
    %242 = tpu.matmul %240, %241, %cst_145 {dimension_numbers = #tpu.dot_dimension_numbers<[1], [0], [0], [1], [0, 0, 1, 1], [], []>} : vector<32x32xf32>, vector<32x128xf32>, vector<32x128xf32> -> vector<32x128xf32>
    %c0_146 = arith.constant 0 : index
    %c0_147 = arith.constant 0 : index
    %243 = vector.load %arg15[%c0_146, %c0_147] : memref<1x128xf32, #tpu.memory_space<vmem>>, vector<1x128xf32>
    %244 = vector.broadcast %243 : vector<1x128xf32> to vector<32x128xf32>
    %245 = arith.addf %242, %244 : vector<32x128xf32>
    %c0_148 = arith.constant 0 : index
    %c0_149 = arith.constant 0 : index
    %246 = vector.load %arg16[%c0_148, %c0_149] : memref<32x128xf32, #tpu.memory_space<vmem>>, vector<32x128xf32>
    tpu.vector_store %arg16[%c0_148, %c0_149], %245 {strides = array<i32>} : memref<32x128xf32, #tpu.memory_space<vmem>>, vector<32x128xf32>,
    return
  }
}

</mosaic_0001>

<llo_original>
// kernel: tile.102
$region0: #{tile.102}
  #allocation0 [shape = 's32[1]{0}', space=sflag, size = 0x4, scoped, tag = 'scoped memory for tile.102']
  %s0 = inlined_call_operand.vmem [shape: f32[8], index: 0, kind: input, shape index: {}]
  %s1 = inlined_call_operand.vmem [shape: f32[8,8], index: 1, kind: output, shape index: {}]
  // Predicated region
  $region2: #{tile.102} parent=0 // pred_check
    _
  $region3: #{tile.102} parent=0 // pred_check_branch
    %3 = sbr.rel (0) target = $region5
  $region4: #{tile.102} parent=0 // pred_region
    _
  $region5: #{tile.102} parent=0 // pred_fallthru
    _
  %v4 = vld [vmem:[%s0] ss:$0 sm:$0xff]
  %5 = vst [vmem:[%s1] sm:$0xff] %v4

// kernel: tile.103
$region0: #{tile.103}
  %s0 = inlined_call_operand.vmem [shape: f32[8,8], index: 0, kind: input, shape index: {}]
  %s1 = inlined_call_operand.vmem [shape: f32[64], index: 1, kind: output, shape index: {}]
  $region1: #{tile.103} parent=0
    #allocation0 [shape = 'u8[4096]{0}', space=vmem, size = 0x1000, scoped, tag = 'scoped mem for output reshape']
    %v2 = vld [vmem:[%s0] sm:$0x1]
    %vm3 = vcmask 64512
    %4 = vst.msk [vmem:[#allocation0] sm:$0x1] %vm3, %v2
    %s5 = scalar_lea.vmem %s0, 7
    %v6 = vld [vmem:[%s5] sm:$0x1]
    %7 = vrot.lane.b32.xlu0 %v6, 56
    %v8 = vpop.permute.xlu0 %7
    %vm9 = vcmask 523712
    %10 = vst.msk [vmem:[#allocation0] sm:$0x1] %vm9, %v8
    %s11 = scalar_lea.vmem %s0, 6
    %v12 = vld [vmem:[%s11] sm:$0x1]
    %13 = vrot.lane.b32.xlu0 %v12, 48
    %v14 = vpop.permute.xlu0 %13
    %vm15 = vcmask 458112
    %16 = vst.msk [vmem:[#allocation0] sm:$0x1] %vm15, %v14
    %s17 = scalar_lea.vmem %s0, 5
    %v18 = vld [vmem:[%s17] sm:$0x1]
    %19 = vrot.lane.b32.xlu0 %v18, 40
    %v20 = vpop.permute.xlu0 %19
    %vm21 = vcmask 392512
    %22 = vst.msk [vmem:[#allocation0] sm:$0x1] %vm21, %v20
    %s23 = scalar_lea.vmem %s0, 4
    %v24 = vld [vmem:[%s23] sm:$0x1]
    %25 = vrot.lane.b32.xlu0 %v24, 32
    %v26 = vpop.permute.xlu0 %25
    %vm27 = vcmask 326912
    %28 = vst.msk [vmem:[#allocation0] sm:$0x1] %vm27, %v26
    %s29 = scalar_lea.vmem %s0, 3
    %v30 = vld [vmem:[%s29] sm:$0x1]
    %31 = vrot.lane.b32.xlu0 %v30, 24
    %v32 = vpop.permute.xlu0 %31
    %vm33 = vcmask 261312
    %34 = vst.msk [vmem:[#allocation0] sm:$0x1] %vm33, %v32
    %s35 = scalar_lea.vmem %s0, 2
    %v36 = vld [vmem:[%s35] sm:$0x1]
    %37 = vrot.lane.b32.xlu0 %v36, 16
    %v38 = vpop.permute.xlu0 %37
    %vm39 = vcmask 195712
    %40 = vst.msk [vmem:[#allocation0] sm:$0x1] %vm39, %v38
    %s41 = scalar_lea.vmem %s0, 1
    %v42 = vld [vmem:[%s41] sm:$0x1]
    %43 = vrot.lane.b32.xlu0 %v42, 8
    %v44 = vpop.permute.xlu0 %43
    %vm45 = vcmask 130112
    %46 = vst.msk [vmem:[#allocation0] sm:$0x1] %vm45, %v44
    %s48 = sshll.u32 1, 1
    %s49 = ssub.s32 %s48, 1
    %v51 = vld [vmem:[#allocation0] sm:%s49]
    %s52 = sshll.u32 1, 1
    %s53 = ssub.s32 %s52, 1
    %54 = vst [vmem:[%s1] sm:%s53] %v51

// kernel: tile.135
$region0: #{tile.135}
  %s0 = inlined_call_operand.vmem [shape: s32[8,8], index: 0, kind: input, shape index: {}]
  %s1 = inlined_call_operand.vmem [shape: s32[64], index: 1, kind: output, shape index: {}]
  $region1: #{tile.135} parent=0
    #allocation0 [shape = 'u8[4096]{0}', space=vmem, size = 0x1000, scoped, tag = 'scoped mem for output reshape']
    %v2 = vld [vmem:[%s0] sm:$0x1]
    %vm3 = vcmask 64512
    %4 = vst.msk [vmem:[#allocation0] sm:$0x1] %vm3, %v2
    %s5 = scalar_lea.vmem %s0, 7
    %v6 = vld [vmem:[%s5] sm:$0x1]
    %7 = vrot.lane.b32.xlu0 %v6, 56
    %v8 = vpop.permute.xlu0 %7
    %vm9 = vcmask 523712
    %10 = vst.msk [vmem:[#allocation0] sm:$0x1] %vm9, %v8
    %s11 = scalar_lea.vmem %s0, 6
    %v12 = vld [vmem:[%s11] sm:$0x1]
    %13 = vrot.lane.b32.xlu0 %v12, 48
    %v14 = vpop.permute.xlu0 %13
    %vm15 = vcmask 458112
    %16 = vst.msk [vmem:[#allocation0] sm:$0x1] %vm15, %v14
    %s17 = scalar_lea.vmem %s0, 5
    %v18 = vld [vmem:[%s17] sm:$0x1]
    %19 = vrot.lane.b32.xlu0 %v18, 40
    %v20 = vpop.permute.xlu0 %19
    %vm21 = vcmask 392512
    %22 = vst.msk [vmem:[#allocation0] sm:$0x1] %vm21, %v20
    %s23 = scalar_lea.vmem %s0, 4
    %v24 = vld [vmem:[%s23] sm:$0x1]
    %25 = vrot.lane.b32.xlu0 %v24, 32
    %v26 = vpop.permute.xlu0 %25
    %vm27 = vcmask 326912
    %28 = vst.msk [vmem:[#allocation0] sm:$0x1] %vm27, %v26
    %s29 = scalar_lea.vmem %s0, 3
    %v30 = vld [vmem:[%s29] sm:$0x1]
    %31 = vrot.lane.b32.xlu0 %v30, 24
    %v32 = vpop.permute.xlu0 %31
    %vm33 = vcmask 261312
    %34 = vst.msk [vmem:[#allocation0] sm:$0x1] %vm33, %v32
    %s35 = scalar_lea.vmem %s0, 2
    %v36 = vld [vmem:[%s35] sm:$0x1]
    %37 = vrot.lane.b32.xlu0 %v36, 16
    %v38 = vpop.permute.xlu0 %37
    %vm39 = vcmask 195712
    %40 = vst.msk [vmem:[#allocation0] sm:$0x1] %vm39, %v38
    %s41 = scalar_lea.vmem %s0, 1
    %v42 = vld [vmem:[%s41] sm:$0x1]
    %43 = vrot.lane.b32.xlu0 %v42, 8
    %v44 = vpop.permute.xlu0 %43
    %vm45 = vcmask 130112
    %46 = vst.msk [vmem:[#allocation0] sm:$0x1] %vm45, %v44
    %s48 = sshll.u32 1, 1
    %s49 = ssub.s32 %s48, 1
    %v51 = vld [vmem:[#allocation0] sm:%s49]
    %s52 = sshll.u32 1, 1
    %s53 = ssub.s32 %s52, 1
    %54 = vst [vmem:[%s1] sm:%s53] %v51

// kernel: tile.136
$region0: #{tile.136}
  #allocation0 [shape = 's32[1]{0}', space=sflag, size = 0x4, scoped, tag = 'scoped memory for tile.136']
  %s0 = inlined_call_operand.vmem [shape: s32[64], index: 0, kind: input, shape index: {}]
  %s1 = inlined_call_operand.vmem [shape: s32[2,64], index: 1, kind: output, shape index: {}]
  // Predicated region
  $region2: #{tile.136} parent=0 // pred_check
    _
  $region3: #{tile.136} parent=0 // pred_check_branch
    %3 = sbr.rel (0) target = $region5
  $region4: #{tile.136} parent=0 // pred_region
    _
  $region5: #{tile.136} parent=0 // pred_fallthru
    _
  %v4 = vld [vmem:[%s0] ss:$0 sm:$0xff]
  %5 = vst [vmem:[%s1] sm:$0x3] %v4

// kernel: eq.12
$region0: #{eq.12}
  %s0 = inlined_call_operand.vmem [shape: s32[2,64], index: 0, kind: input, shape index: {}]
  %s1 = inlined_call_operand.vmem [shape: s32[128], index: 1, kind: output, shape index: {}]
  $region1: #{eq.12} parent=0
    #allocation0 [shape = 'u8[4096]{0}', space=vmem, size = 0x1000, scoped, tag = 'scoped mem for output reshape']
    #allocation1 [shape = 'u8[4096]{0}', space=vmem, size = 0x1000, scoped, tag = 'scoped mem for input reshape']
    %s3 = sshll.u32 1, 2
    %s4 = ssub.s32 %s3, 1
    %v5 = vld [vmem:[%s0] sm:%s4]
    %6 = vst [vmem:[#allocation1] sm:%s4] %v5
    %v7 = vld [vmem:[#allocation1] sm:$0x1]
    %vm8 = vcmask 523264
    %9 = vst.msk [vmem:[#allocation0] sm:$0x1] %vm8, %v7
    %s10 = scalar_lea.vmem [#allocation1], 1
    %v11 = vld [vmem:[%s10] sm:$0x1]
    %12 = vrot.lane.b32.xlu0 %v11, 64
    %v13 = vpop.permute.xlu0 %12
    %vm14 = vcmask 1048064
    %15 = vst.msk [vmem:[#allocation0] sm:$0x1] %vm14, %v13
    %s17 = sshll.u32 1, 1
    %s18 = ssub.s32 %s17, 1
    %v20 = vld [vmem:[#allocation0] sm:%s18]
    %s21 = sshll.u32 1, 1
    %s22 = ssub.s32 %s21, 1
    %23 = vst [vmem:[%s1] sm:%s22] %v20

// kernel: tile.142
$region0: #{tile.142}
  %s0 = inlined_call_operand.vmem [shape: f32[8,8], index: 0, kind: input, shape index: {}]
  %s1 = inlined_call_operand.vmem [shape: f32[1,64], index: 1, kind: output, shape index: {}]
  $region1: #{tile.142} parent=0
    #allocation0 [shape = 'u8[4096]{0}', space=vmem, size = 0x1000, scoped, tag = 'scoped mem for output reshape']
    %v2 = vld [vmem:[%s0] sm:$0x1]
    %vm3 = vcmask 64512
    %4 = vst.msk [vmem:[#allocation0] sm:$0x1] %vm3, %v2
    %s5 = scalar_lea.vmem %s0, 7
    %v6 = vld [vmem:[%s5] sm:$0x1]
    %7 = vrot.lane.b32.xlu0 %v6, 56
    %v8 = vpop.permute.xlu0 %7
    %vm9 = vcmask 523712
    %10 = vst.msk [vmem:[#allocation0] sm:$0x1] %vm9, %v8
    %s11 = scalar_lea.vmem %s0, 6
    %v12 = vld [vmem:[%s11] sm:$0x1]
    %13 = vrot.lane.b32.xlu0 %v12, 48
    %v14 = vpop.permute.xlu0 %13
    %vm15 = vcmask 458112
    %16 = vst.msk [vmem:[#allocation0] sm:$0x1] %vm15, %v14
    %s17 = scalar_lea.vmem %s0, 5
    %v18 = vld [vmem:[%s17] sm:$0x1]
    %19 = vrot.lane.b32.xlu0 %v18, 40
    %v20 = vpop.permute.xlu0 %19
    %vm21 = vcmask 392512
    %22 = vst.msk [vmem:[#allocation0] sm:$0x1] %vm21, %v20
    %s23 = scalar_lea.vmem %s0, 4
    %v24 = vld [vmem:[%s23] sm:$0x1]
    %25 = vrot.lane.b32.xlu0 %v24, 32
    %v26 = vpop.permute.xlu0 %25
    %vm27 = vcmask 326912
    %28 = vst.msk [vmem:[#allocation0] sm:$0x1] %vm27, %v26
    %s29 = scalar_lea.vmem %s0, 3
    %v30 = vld [vmem:[%s29] sm:$0x1]
    %31 = vrot.lane.b32.xlu0 %v30, 24
    %v32 = vpop.permute.xlu0 %31
    %vm33 = vcmask 261312
    %34 = vst.msk [vmem:[#allocation0] sm:$0x1] %vm33, %v32
    %s35 = scalar_lea.vmem %s0, 2
    %v36 = vld [vmem:[%s35] sm:$0x1]
    %37 = vrot.lane.b32.xlu0 %v36, 16
    %v38 = vpop.permute.xlu0 %37
    %vm39 = vcmask 195712
    %40 = vst.msk [vmem:[#allocation0] sm:$0x1] %vm39, %v38
    %s41 = scalar_lea.vmem %s0, 1
    %v42 = vld [vmem:[%s41] sm:$0x1]
    %43 = vrot.lane.b32.xlu0 %v42, 8
    %v44 = vpop.permute.xlu0 %43
    %vm45 = vcmask 130112
    %46 = vst.msk [vmem:[#allocation0] sm:$0x1] %vm45, %v44
    %s48 = sshll.u32 1, 1
    %s49 = ssub.s32 %s48, 1
    %v51 = vld [vmem:[#allocation0] sm:%s49]
    %s52 = sshll.u32 1, 1
    %s53 = ssub.s32 %s52, 1
    %54 = vst [vmem:[%s1] sm:%s53] %v51

// kernel: stpgcns_forward.1
$region0: #{stpgcns_forward.1}
  #allocation0 [shape = 'u32[]', space=smem, size = 0x4, offset = 0x4, fixed_abs, tag = 'smem constant byte address 0x4 - core index']
  #allocation1 [shape = 'u32[144,128]{1,0:T(1,128)}', space=vmem, size = 0x12000, scoped, tag = 'internal scratch']
  %s0 = inlined_call_operand.vmem [shape: f32[32,64], index: 0, kind: input, shape index: {}]
  %s1 = inlined_call_operand.vmem [shape: f32[1,64], index: 1, kind: input, shape index: {}]
  %s2 = inlined_call_operand.vmem [shape: f32[1,64], index: 2, kind: input, shape index: {}]
  %s3 = inlined_call_operand.vmem [shape: f32[3,3,32,64], index: 3, kind: input, shape index: {}]
  %s4 = inlined_call_operand.vmem [shape: f32[3,32,96], index: 4, kind: input, shape index: {}]
  %s5 = inlined_call_operand.vmem [shape: f32[4,64,16], index: 5, kind: input, shape index: {}]
  %s6 = inlined_call_operand.vmem [shape: f32[4,1,16], index: 6, kind: input, shape index: {}]
  %s7 = inlined_call_operand.vmem [shape: f32[3,64,128], index: 7, kind: input, shape index: {}]
  %s8 = inlined_call_operand.vmem [shape: f32[3,32,128], index: 8, kind: input, shape index: {}]
  %s9 = inlined_call_operand.vmem [shape: f32[128,128], index: 9, kind: input, shape index: {}]
  %s10 = inlined_call_operand.vmem [shape: f32[3,1,128], index: 10, kind: input, shape index: {}]
  %s11 = inlined_call_operand.vmem [shape: f32[3,1,128], index: 11, kind: input, shape index: {}]
  %s12 = inlined_call_operand.vmem [shape: f32[32,64], index: 12, kind: input, shape index: {}]
  %s13 = inlined_call_operand.vmem [shape: f32[1,64], index: 13, kind: input, shape index: {}]
  %s14 = inlined_call_operand.vmem [shape: f32[32,128], index: 14, kind: input, shape index: {}]
  %s15 = inlined_call_operand.vmem [shape: f32[1,128], index: 15, kind: input, shape index: {}]
  %s16 = inlined_call_operand.vmem [shape: f32[32,128], index: 16, kind: output, shape index: {}]
  %s17 = sld [smem:[#allocation0]]
  $region74: #{stpgcns_forward.1} parent=0
    _
  %s19 = ssub.s32 1, %s17
  %s20 = scalar_select 0, %s19, %s17
  // Predicated region
  $region2: #{stpgcns_forward.1} parent=0 // pred_check
    _
  $region3: #{stpgcns_forward.1} parent=0 // pred_check_branch
    %22 = sbr.rel (0) target = $region5
  $region4: #{stpgcns_forward.1} parent=0 // pred_region
    _
  $region5: #{stpgcns_forward.1} parent=0 // pred_fallthru
    _
  // Predicated region
  $region6: #{stpgcns_forward.1} parent=0 // pred_check
    _
  $region7: #{stpgcns_forward.1} parent=0 // pred_check_branch
    %24 = sbr.rel (0) target = $region9
  $region8: #{stpgcns_forward.1} parent=0 // pred_region
    _
  $region9: #{stpgcns_forward.1} parent=0 // pred_fallthru
    _
  // Predicated region
  $region10: #{stpgcns_forward.1} parent=0 // pred_check
    _
  $region11: #{stpgcns_forward.1} parent=0 // pred_check_branch
    %26 = sbr.rel (0) target = $region13
  $region12: #{stpgcns_forward.1} parent=0 // pred_region
    _
  $region13: #{stpgcns_forward.1} parent=0 // pred_fallthru
    _
  // Predicated region
  $region14: #{stpgcns_forward.1} parent=0 // pred_check
    _
  $region15: #{stpgcns_forward.1} parent=0 // pred_check_branch
    %28 = sbr.rel (0) target = $region17
  $region16: #{stpgcns_forward.1} parent=0 // pred_region
    _
  $region17: #{stpgcns_forward.1} parent=0 // pred_fallthru
    _
  // Predicated region
  $region18: #{stpgcns_forward.1} parent=0 // pred_check
    _
  $region19: #{stpgcns_forward.1} parent=0 // pred_check_branch
    %30 = sbr.rel (0) target = $region21
  $region20: #{stpgcns_forward.1} parent=0 // pred_region
    _
  $region21: #{stpgcns_forward.1} parent=0 // pred_fallthru
    _
  // Predicated region
  $region22: #{stpgcns_forward.1} parent=0 // pred_check
    _
  $region23: #{stpgcns_forward.1} parent=0 // pred_check_branch
    %32 = sbr.rel (0) target = $region25
  $region24: #{stpgcns_forward.1} parent=0 // pred_region
    _
  $region25: #{stpgcns_forward.1} parent=0 // pred_fallthru
    _
  // Predicated region
  $region26: #{stpgcns_forward.1} parent=0 // pred_check
    _
  $region27: #{stpgcns_forward.1} parent=0 // pred_check_branch
    %34 = sbr.rel (0) target = $region29
  $region28: #{stpgcns_forward.1} parent=0 // pred_region
    _
  $region29: #{stpgcns_forward.1} parent=0 // pred_fallthru
    _
  // Predicated region
  $region30: #{stpgcns_forward.1} parent=0 // pred_check
    _
  $region31: #{stpgcns_forward.1} parent=0 // pred_check_branch
    %36 = sbr.rel (0) target = $region33
  $region32: #{stpgcns_forward.1} parent=0 // pred_region
    _
  $region33: #{stpgcns_forward.1} parent=0 // pred_fallthru
    _
  // Predicated region
  $region34: #{stpgcns_forward.1} parent=0 // pred_check
    _
  $region35: #{stpgcns_forward.1} parent=0 // pred_check_branch
    %38 = sbr.rel (0) target = $region37
  $region36: #{stpgcns_forward.1} parent=0 // pred_region
    _
  $region37: #{stpgcns_forward.1} parent=0 // pred_fallthru
    _
  // Predicated region
  $region38: #{stpgcns_forward.1} parent=0 // pred_check
    _
  $region39: #{stpgcns_forward.1} parent=0 // pred_check_branch
    %40 = sbr.rel (0) target = $region41
  $region40: #{stpgcns_forward.1} parent=0 // pred_region
    _
  $region41: #{stpgcns_forward.1} parent=0 // pred_fallthru
    _
  // Predicated region
  $region42: #{stpgcns_forward.1} parent=0 // pred_check
    _
  $region43: #{stpgcns_forward.1} parent=0 // pred_check_branch
    %42 = sbr.rel (0) target = $region45
  $region44: #{stpgcns_forward.1} parent=0 // pred_region
    _
  $region45: #{stpgcns_forward.1} parent=0 // pred_fallthru
    _
  // Predicated region
  $region46: #{stpgcns_forward.1} parent=0 // pred_check
    _
  $region47: #{stpgcns_forward.1} parent=0 // pred_check_branch
    %44 = sbr.rel (0) target = $region49
  $region48: #{stpgcns_forward.1} parent=0 // pred_region
    _
  $region49: #{stpgcns_forward.1} parent=0 // pred_fallthru
    _
  // Predicated region
  $region50: #{stpgcns_forward.1} parent=0 // pred_check
    _
  $region51: #{stpgcns_forward.1} parent=0 // pred_check_branch
    %46 = sbr.rel (0) target = $region53
  $region52: #{stpgcns_forward.1} parent=0 // pred_region
    _
  $region53: #{stpgcns_forward.1} parent=0 // pred_fallthru
    _
  // Predicated region
  $region54: #{stpgcns_forward.1} parent=0 // pred_check
    _
  $region55: #{stpgcns_forward.1} parent=0 // pred_check_branch
    %48 = sbr.rel (0) target = $region57
  $region56: #{stpgcns_forward.1} parent=0 // pred_region
    _
  $region57: #{stpgcns_forward.1} parent=0 // pred_fallthru
    _
  // Predicated region
  $region58: #{stpgcns_forward.1} parent=0 // pred_check
    _
  $region59: #{stpgcns_forward.1} parent=0 // pred_check_branch
    %50 = sbr.rel (0) target = $region61
  $region60: #{stpgcns_forward.1} parent=0 // pred_region
    _
  $region61: #{stpgcns_forward.1} parent=0 // pred_fallthru
    _
  // Predicated region
  $region62: #{stpgcns_forward.1} parent=0 // pred_check
    _
  $region63: #{stpgcns_forward.1} parent=0 // pred_check_branch
    %52 = sbr.rel (0) target = $region65
  $region64: #{stpgcns_forward.1} parent=0 // pred_region
    _
  $region65: #{stpgcns_forward.1} parent=0 // pred_fallthru
    _
  %v53 = vld [vmem:[%s0] sm:$0xff]
  %v54 = vld [vmem:[%s0 + $0x8] sm:$0xff]
  %v55 = vld [vmem:[%s0 + $0x10] sm:$0xff]
  %v56 = vld [vmem:[%s0 + $0x18] sm:$0xff]
  %v57 = vld [vmem:[%s1] sm:$0x1]
  %v59 = vlaneseq
  %v60 = vshrl.u32 %v59, 7
  %v61 = vsub.s32 0, %v60
  %v62 = vrot.slane %v57, %v61
  %v64 = vmul.f32 %v53, %v62
  %v65 = vmul.f32 %v54, %v62
  %v66 = vmul.f32 %v55, %v62
  %v67 = vmul.f32 %v56, %v62
  %v68 = vld [vmem:[%s2] sm:$0x1]
  %v70 = vlaneseq
  %v71 = vshrl.u32 %v70, 7
  %v72 = vsub.s32 0, %v71
  %v73 = vrot.slane %v68, %v72
  %v75 = vadd.f32 %v64, %v73
  %v76 = vadd.f32 %v65, %v73
  %v77 = vadd.f32 %v66, %v73
  %v78 = vadd.f32 %v67, %v73
  %v79 = vld [vmem:[%s5] sm:$0xff]
  %v80 = vld [vmem:[%s5 + $0x8] sm:$0xff]
  %v81 = vld [vmem:[%s5 + $0x10] sm:$0xff]
  %v82 = vld [vmem:[%s5 + $0x18] sm:$0xff]
  %v83 = vld [vmem:[%s5 + $0x20] sm:$0xff]
  %v84 = vld [vmem:[%s5 + $0x28] sm:$0xff]
  %v85 = vld [vmem:[%s5 + $0x30] sm:$0xff]
  %v86 = vld [vmem:[%s5 + $0x38] sm:$0xff]
  %v87 = vld [vmem:[%s6] sm:$0x1]
  %v89 = vlaneseq
  %v90 = vshrl.u32 %v89, 7
  %v91 = vsub.s32 0, %v90
  %v92 = vrot.slane %v87, %v91
  %vm94 = vcmask 523264
  %v96 = vsel %vm94, %v75, 0
  %v99 = vsel %vm94, %v76, 0
  %v102 = vsel %vm94, %v77, 0
  %v105 = vsel %vm94, %v78, 0
  %107 = vmatprep.subr.mxu0 0.0
  %108 = vmatpush1.msra.mxu0 0.0
  %109 = vmatprep.subr.mxu0 0.0
  %110 = vmatpush1.msra.mxu0 0.0
  %111 = vmatprep.subr.mxu0 0.0
  %112 = vmatpush1.msra.mxu0 0.0
  %113 = vmatprep.subr.mxu0 0.0
  %114 = vmatpush1.msra.mxu0 0.0
  %115 = vmatprep.subr.mxu0 0.0
  %116 = vmatpush1.msra.mxu0 0.0
  %117 = vmatprep.subr.mxu0 0.0
  %118 = vmatpush1.msra.mxu0 0.0
  %119 = vmatprep.subr.mxu0 0.0
  %120 = vmatpush1.msra.mxu0 0.0
  %121 = vmatprep.subr.mxu0 0.0
  %122 = vmatpush1.msra.mxu0 0.0
  %123 = vmatprep.subr.mxu0 0.0
  %124 = vmatpush1.msra.mxu0 %v86
  %125 = vmatprep.subr.mxu0 0.0
  %126 = vmatpush1.msra.mxu0 %v85
  %127 = vmatprep.subr.mxu0 0.0
  %128 = vmatpush1.msra.mxu0 %v84
  %129 = vmatprep.subr.mxu0 0.0
  %130 = vmatpush1.msra.mxu0 %v83
  %131 = vmatprep.subr.mxu0 0.0
  %132 = vmatpush1.msra.mxu0 %v82
  %133 = vmatprep.subr.mxu0 0.0
  %134 = vmatpush1.msra.mxu0 %v81
  %135 = vmatprep.subr.mxu0 0.0
  %136 = vmatpush1.msra.mxu0 %v80
  %137 = vmatprep.subr.mxu0 0.0
  %138 = vmatpush1.msra.mxu0 %v79
  %139 = vmatprep.subr.mxu0 0.0
  %140 = vmatpush2.msra.mxu0 0.0
  %141 = vmatprep.subr.mxu0 0.0
  %142 = vmatpush2.msra.mxu0 0.0
  %143 = vmatprep.subr.mxu0 0.0
  %144 = vmatpush2.msra.mxu0 0.0
  %145 = vmatprep.subr.mxu0 0.0
  %146 = vmatpush2.msra.mxu0 0.0
  %147 = vmatprep.subr.mxu0 0.0
  %148 = vmatpush2.msra.mxu0 0.0
  %149 = vmatprep.subr.mxu0 0.0
  %150 = vmatpush2.msra.mxu0 0.0
  %151 = vmatprep.subr.mxu0 0.0
  %152 = vmatpush2.msra.mxu0 0.0
  %153 = vmatprep.subr.mxu0 0.0
  %154 = vmatpush2.msra.mxu0 0.0
  %155 = vmatprep.subr.mxu0 0.0
  %156 = vmatpush2.msra.mxu0 0.0
  %157 = vmatprep.subr.mxu0 0.0
  %158 = vmatpush2.msra.mxu0 0.0
  %159 = vmatprep.subr.mxu0 0.0
  %160 = vmatpush2.msra.mxu0 0.0
  %161 = vmatprep.subr.mxu0 0.0
  %162 = vmatpush2.msra.mxu0 0.0
  %163 = vmatprep.subr.mxu0 0.0
  %164 = vmatpush2.msra.mxu0 0.0
  %165 = vmatprep.subr.mxu0 0.0
  %166 = vmatpush2.msra.mxu0 0.0
  %167 = vmatprep.subr.mxu0 0.0
  %168 = vmatpush2.msra.mxu0 0.0
  %169 = vmatprep.subr.mxu0 0.0
  %170 = vmatpush2.msra.mxu0 0.0
  %171 = vmatprep.mubr.f32.mxu0 0.0
  %172 = vmatmul.mubr.f32.gmra.mxu0 %v96
  %v173 = vpop.f32.mrf.mxu0
  %v174 = vadd.f32 %v92, %v173
  %v175 = vpop.f32.mrf.mxu0
  %176 = vmatprep.mubr.f32.mxu0 0.0
  %177 = vmatmul.mubr.f32.gmra.mxu0 %v99
  %v178 = vpop.f32.mrf.mxu0
  %v179 = vadd.f32 %v92, %v178
  %v180 = vpop.f32.mrf.mxu0
  %181 = vmatprep.mubr.f32.mxu0 0.0
  %182 = vmatmul.mubr.f32.gmra.mxu0 %v102
  %v183 = vpop.f32.mrf.mxu0
  %v184 = vadd.f32 %v92, %v183
  %v185 = vpop.f32.mrf.mxu0
  %186 = vmatprep.mubr.f32.mxu0 0.0
  %187 = vmatmul.mubr.f32.gmra.mxu0 %v105
  %v188 = vpop.f32.mrf.mxu0
  %v189 = vadd.f32 %v92, %v188
  %v190 = vpop.f32.mrf.mxu0
  %191 = vdwg.mxu0
  %v192 = vxor.u32 %v174, 2147483648
  %v193 = vxor.u32 %v179, 2147483648
  %v194 = vxor.u32 %v184, 2147483648
  %v195 = vxor.u32 %v189, 2147483648
  %v196 = vmul.f32 %v192, 1.442695
  %v197 = vpow.pop %v196
  %v198 = vmul.f32 %v193, 1.442695
  %v199 = vpow.pop %v198
  %v200 = vmul.f32 %v194, 1.442695
  %v201 = vpow.pop %v200
  %v202 = vmul.f32 %v195, 1.442695
  %v203 = vpow.pop %v202
  %v204 = vadd.f32 %v197, 1.0
  %v205 = vadd.f32 %v199, 1.0
  %v206 = vadd.f32 %v201, 1.0
  %v207 = vadd.f32 %v203, 1.0
  %v208 = vrcp.pop %v204
  %v209 = vmul.f32 1.0, %v208
  %v210 = vrcp.pop %v205
  %v211 = vmul.f32 1.0, %v210
  %v212 = vrcp.pop %v206
  %v213 = vmul.f32 1.0, %v212
  %v214 = vrcp.pop %v207
  %v215 = vmul.f32 1.0, %v214
  %220 = vrot.lane.b32.xlu0 %v209, 120
  %v221 = vpop.permute.xlu0 %220
  %222 = vrot.lane.b32.xlu0 %v211, 120
  %v223 = vpop.permute.xlu0 %222
  %224 = vrot.lane.b32.xlu0 %v213, 120
  %v225 = vpop.permute.xlu0 %224
  %226 = vrot.lane.b32.xlu0 %v215, 120
  %v227 = vpop.permute.xlu0 %226
  %v232 = vmul.f32 %v174, %v221
  %v233 = vmul.f32 %v179, %v223
  %v234 = vmul.f32 %v184, %v225
  %v235 = vmul.f32 %v189, %v227
  %v236 = vld [vmem:[%s9] sm:$0xff]
  %v237 = vld [vmem:[%s9 + $0x8] sm:$0xff]
  %v238 = vld [vmem:[%s9 + $0x10] sm:$0xff]
  %v239 = vld [vmem:[%s9 + $0x18] sm:$0xff]
  %v240 = vld [vmem:[%s9 + $0x20] sm:$0xff]
  %v241 = vld [vmem:[%s9 + $0x28] sm:$0xff]
  %v242 = vld [vmem:[%s9 + $0x30] sm:$0xff]
  %v243 = vld [vmem:[%s9 + $0x38] sm:$0xff]
  %v244 = vld [vmem:[%s9 + $0x40] sm:$0xff]
  %v245 = vld [vmem:[%s9 + $0x48] sm:$0xff]
  %v246 = vld [vmem:[%s9 + $0x50] sm:$0xff]
  %v247 = vld [vmem:[%s9 + $0x58] sm:$0xff]
  %v248 = vld [vmem:[%s9 + $0x60] sm:$0xff]
  %v249 = vld [vmem:[%s9 + $0x68] sm:$0xff]
  %v250 = vld [vmem:[%s9 + $0x70] sm:$0xff]
  %v251 = vld [vmem:[%s9 + $0x78] sm:$0xff]
  %252 = vrot.lane.b32.xlu0 %v75, 16
  %v253 = vpop.permute.xlu0 %252
  %254 = vrot.lane.b32.xlu0 %v76, 16
  %v255 = vpop.permute.xlu0 %254
  %256 = vrot.lane.b32.xlu0 %v77, 16
  %v257 = vpop.permute.xlu0 %256
  %258 = vrot.lane.b32.xlu0 %v78, 16
  %v259 = vpop.permute.xlu0 %258
  %vm264 = vcmask 130048
  %v265 = vsel %vm264, 0.0, %v253
  %v266 = vsel %vm264, 0.0, %v255
  %v267 = vsel %vm264, 0.0, %v257
  %v268 = vsel %vm264, 0.0, %v259
  %v269 = vld [vmem:[%s3] sm:$0xff]
  %v270 = vld [vmem:[%s3 + $0x8] sm:$0xff]
  %v271 = vld [vmem:[%s3 + $0x10] sm:$0xff]
  %v272 = vld [vmem:[%s3 + $0x18] sm:$0xff]
  %v273 = vmul.f32 %v265, %v269
  %v274 = vmul.f32 %v266, %v270
  %v275 = vmul.f32 %v267, %v271
  %v276 = vmul.f32 %v268, %v272
  %277 = vrot.lane.b32.xlu0 %v75, 8
  %v278 = vpop.permute.xlu0 %277
  %279 = vrot.lane.b32.xlu0 %v76, 8
  %v280 = vpop.permute.xlu0 %279
  %281 = vrot.lane.b32.xlu0 %v77, 8
  %v282 = vpop.permute.xlu0 %281
  %283 = vrot.lane.b32.xlu0 %v78, 8
  %v284 = vpop.permute.xlu0 %283
  %vm289 = vcmask 64512
  %v290 = vsel %vm289, 0.0, %v278
  %v291 = vsel %vm289, 0.0, %v280
  %v292 = vsel %vm289, 0.0, %v282
  %v293 = vsel %vm289, 0.0, %v284
  %s294 = scalar_lea.vmem %s3, 32
  %v295 = vld [vmem:[%s294] sm:$0xff]
  %v296 = vld [vmem:[%s294 + $0x8] sm:$0xff]
  %v297 = vld [vmem:[%s294 + $0x10] sm:$0xff]
  %v298 = vld [vmem:[%s294 + $0x18] sm:$0xff]
  %v299 = vmul.f32 %v290, %v295
  %v300 = vmul.f32 %v291, %v296
  %v301 = vmul.f32 %v292, %v297
  %v302 = vmul.f32 %v293, %v298
  %s303 = scalar_lea.vmem %s3, 64
  %v304 = vld [vmem:[%s303] sm:$0xff]
  %v305 = vld [vmem:[%s303 + $0x8] sm:$0xff]
  %v306 = vld [vmem:[%s303 + $0x10] sm:$0xff]
  %v307 = vld [vmem:[%s303 + $0x18] sm:$0xff]
  %v308 = vmul.f32 %v75, %v304
  %v309 = vmul.f32 %v76, %v305
  %v310 = vmul.f32 %v77, %v306
  %v311 = vmul.f32 %v78, %v307
  %v312 = vld [vmem:[%s4] sm:$0xff]
  %v313 = vld [vmem:[%s4 + $0x8] sm:$0xff]
  %v314 = vld [vmem:[%s4 + $0x10] sm:$0xff]
  %v315 = vld [vmem:[%s4 + $0x18] sm:$0xff]
  %vm316 = vcmask 785408
  %v318 = vsel %vm316, %v312, 0
  %v321 = vsel %vm316, %v313, 0
  %v324 = vsel %vm316, %v314, 0
  %v327 = vsel %vm316, %v315, 0
  %329 = vmatprep.subr.mxu0 0.0
  %330 = vmatpush1.msra.mxu0 0.0
  %331 = vmatprep.subr.mxu0 0.0
  %332 = vmatpush1.msra.mxu0 0.0
  %333 = vmatprep.subr.mxu0 0.0
  %334 = vmatpush1.msra.mxu0 0.0
  %335 = vmatprep.subr.mxu0 0.0
  %336 = vmatpush1.msra.mxu0 0.0
  %337 = vmatprep.subr.mxu0 0.0
  %338 = vmatpush1.msra.mxu0 %v311
  %339 = vmatprep.subr.mxu0 0.0
  %340 = vmatpush1.msra.mxu0 %v310
  %341 = vmatprep.subr.mxu0 0.0
  %342 = vmatpush1.msra.mxu0 %v309
  %343 = vmatprep.subr.mxu0 0.0
  %344 = vmatpush1.msra.mxu0 %v308
  %345 = vmatprep.subr.mxu0 0.0
  %346 = vmatpush1.msra.mxu0 %v302
  %347 = vmatprep.subr.mxu0 0.0
  %348 = vmatpush1.msra.mxu0 %v301
  %349 = vmatprep.subr.mxu0 0.0
  %350 = vmatpush1.msra.mxu0 %v300
  %351 = vmatprep.subr.mxu0 0.0
  %352 = vmatpush1.msra.mxu0 %v299
  %353 = vmatprep.subr.mxu0 0.0
  %354 = vmatpush1.msra.mxu0 %v276
  %355 = vmatprep.subr.mxu0 0.0
  %356 = vmatpush1.msra.mxu0 %v275
  %357 = vmatprep.subr.mxu0 0.0
  %358 = vmatpush1.msra.mxu0 %v274
  %359 = vmatprep.subr.mxu0 0.0
  %360 = vmatpush1.msra.mxu0 %v273
  %361 = vmatprep.subr.mxu0 0.0
  %362 = vmatpush2.msra.mxu0 0.0
  %363 = vmatprep.subr.mxu0 0.0
  %364 = vmatpush2.msra.mxu0 0.0
  %365 = vmatprep.subr.mxu0 0.0
  %366 = vmatpush2.msra.mxu0 0.0
  %367 = vmatprep.subr.mxu0 0.0
  %368 = vmatpush2.msra.mxu0 0.0
  %369 = vmatprep.subr.mxu0 0.0
  %370 = vmatpush2.msra.mxu0 0.0
  %371 = vmatprep.subr.mxu0 0.0
  %372 = vmatpush2.msra.mxu0 0.0
  %373 = vmatprep.subr.mxu0 0.0
  %374 = vmatpush2.msra.mxu0 0.0
  %375 = vmatprep.subr.mxu0 0.0
  %376 = vmatpush2.msra.mxu0 0.0
  %377 = vmatprep.subr.mxu0 0.0
  %378 = vmatpush2.msra.mxu0 0.0
  %379 = vmatprep.subr.mxu0 0.0
  %380 = vmatpush2.msra.mxu0 0.0
  %381 = vmatprep.subr.mxu0 0.0
  %382 = vmatpush2.msra.mxu0 0.0
  %383 = vmatprep.subr.mxu0 0.0
  %384 = vmatpush2.msra.mxu0 0.0
  %385 = vmatprep.subr.mxu0 0.0
  %386 = vmatpush2.msra.mxu0 0.0
  %387 = vmatprep.subr.mxu0 0.0
  %388 = vmatpush2.msra.mxu0 0.0
  %389 = vmatprep.subr.mxu0 0.0
  %390 = vmatpush2.msra.mxu0 0.0
  %391 = vmatprep.subr.mxu0 0.0
  %392 = vmatpush2.msra.mxu0 0.0
  %393 = vmatprep.mubr.f32.mxu0 0.0
  %394 = vmatmul.mubr.f32.gmra.mxu0 %v318
  %v395 = vpop.f32.mrf.mxu0
  %v396 = vadd.f32 0.0, %v395
  %v397 = vpop.f32.mrf.mxu0
  %398 = vmatprep.mubr.f32.mxu0 0.0
  %399 = vmatmul.mubr.f32.gmra.mxu0 %v321
  %v400 = vpop.f32.mrf.mxu0
  %v401 = vadd.f32 0.0, %v400
  %v402 = vpop.f32.mrf.mxu0
  %403 = vmatprep.mubr.f32.mxu0 0.0
  %404 = vmatmul.mubr.f32.gmra.mxu0 %v324
  %v405 = vpop.f32.mrf.mxu0
  %v406 = vadd.f32 0.0, %v405
  %v407 = vpop.f32.mrf.mxu0
  %408 = vmatprep.mubr.f32.mxu0 0.0
  %409 = vmatmul.mubr.f32.gmra.mxu0 %v327
  %v410 = vpop.f32.mrf.mxu0
  %v411 = vadd.f32 0.0, %v410
  %v412 = vpop.f32.mrf.mxu0
  %413 = vdwg.mxu0
  %v414 = vld [vmem:[%s7] sm:$0xff]
  %v415 = vld [vmem:[%s7 + $0x8] sm:$0xff]
  %v416 = vld [vmem:[%s7 + $0x10] sm:$0xff]
  %v417 = vld [vmem:[%s7 + $0x18] sm:$0xff]
  %v418 = vld [vmem:[%s7 + $0x20] sm:$0xff]
  %v419 = vld [vmem:[%s7 + $0x28] sm:$0xff]
  %v420 = vld [vmem:[%s7 + $0x30] sm:$0xff]
  %v421 = vld [vmem:[%s7 + $0x38] sm:$0xff]
  %v422 = vld [vmem:[%s8] sm:$0xff]
  %v423 = vld [vmem:[%s8 + $0x8] sm:$0xff]
  %v424 = vld [vmem:[%s8 + $0x10] sm:$0xff]
  %v425 = vld [vmem:[%s8 + $0x18] sm:$0xff]
  %v427 = vsel %vm94, %v396, 0
  %v430 = vsel %vm94, %v401, 0
  %v433 = vsel %vm94, %v406, 0
  %v436 = vsel %vm94, %v411, 0
  %438 = vmatprep.subr.mxu0 0.0
  %439 = vmatpush1.msra.mxu0 0.0
  %440 = vmatprep.subr.mxu0 0.0
  %441 = vmatpush1.msra.mxu0 0.0
  %442 = vmatprep.subr.mxu0 0.0
  %443 = vmatpush1.msra.mxu0 0.0
  %444 = vmatprep.subr.mxu0 0.0
  %445 = vmatpush1.msra.mxu0 0.0
  %446 = vmatprep.subr.mxu0 0.0
  %447 = vmatpush1.msra.mxu0 0.0
  %448 = vmatprep.subr.mxu0 0.0
  %449 = vmatpush1.msra.mxu0 0.0
  %450 = vmatprep.subr.mxu0 0.0
  %451 = vmatpush1.msra.mxu0 0.0
  %452 = vmatprep.subr.mxu0 0.0
  %453 = vmatpush1.msra.mxu0 0.0
  %454 = vmatprep.subr.mxu0 0.0
  %455 = vmatpush1.msra.mxu0 %v421
  %456 = vmatprep.subr.mxu0 0.0
  %457 = vmatpush1.msra.mxu0 %v420
  %458 = vmatprep.subr.mxu0 0.0
  %459 = vmatpush1.msra.mxu0 %v419
  %460 = vmatprep.subr.mxu0 0.0
  %461 = vmatpush1.msra.mxu0 %v418
  %462 = vmatprep.subr.mxu0 0.0
  %463 = vmatpush1.msra.mxu0 %v417
  %464 = vmatprep.subr.mxu0 0.0
  %465 = vmatpush1.msra.mxu0 %v416
  %466 = vmatprep.subr.mxu0 0.0
  %467 = vmatpush1.msra.mxu0 %v415
  %468 = vmatprep.subr.mxu0 0.0
  %469 = vmatpush1.msra.mxu0 %v414
  %470 = vmatprep.subr.mxu0 0.0
  %471 = vmatpush2.msra.mxu0 0.0
  %472 = vmatprep.subr.mxu0 0.0
  %473 = vmatpush2.msra.mxu0 0.0
  %474 = vmatprep.subr.mxu0 0.0
  %475 = vmatpush2.msra.mxu0 0.0
  %476 = vmatprep.subr.mxu0 0.0
  %477 = vmatpush2.msra.mxu0 0.0
  %478 = vmatprep.subr.mxu0 0.0
  %479 = vmatpush2.msra.mxu0 0.0
  %480 = vmatprep.subr.mxu0 0.0
  %481 = vmatpush2.msra.mxu0 0.0
  %482 = vmatprep.subr.mxu0 0.0
  %483 = vmatpush2.msra.mxu0 0.0
  %484 = vmatprep.subr.mxu0 0.0
  %485 = vmatpush2.msra.mxu0 0.0
  %486 = vmatprep.subr.mxu0 0.0
  %487 = vmatpush2.msra.mxu0 0.0
  %488 = vmatprep.subr.mxu0 0.0
  %489 = vmatpush2.msra.mxu0 0.0
  %490 = vmatprep.subr.mxu0 0.0
  %491 = vmatpush2.msra.mxu0 0.0
  %492 = vmatprep.subr.mxu0 0.0
  %493 = vmatpush2.msra.mxu0 0.0
  %494 = vmatprep.subr.mxu0 0.0
  %495 = vmatpush2.msra.mxu0 0.0
  %496 = vmatprep.subr.mxu0 0.0
  %497 = vmatpush2.msra.mxu0 0.0
  %498 = vmatprep.subr.mxu0 0.0
  %499 = vmatpush2.msra.mxu0 0.0
  %500 = vmatprep.subr.mxu0 0.0
  %501 = vmatpush2.msra.mxu0 0.0
  %502 = vmatprep.mubr.f32.mxu0 0.0
  %503 = vmatmul.mubr.f32.gmra.mxu0 %v427
  %v504 = vpop.f32.mrf.mxu0
  %v505 = vadd.f32 %v422, %v504
  %v506 = vpop.f32.mrf.mxu0
  %507 = vmatprep.mubr.f32.mxu0 0.0
  %508 = vmatmul.mubr.f32.gmra.mxu0 %v430
  %v509 = vpop.f32.mrf.mxu0
  %v510 = vadd.f32 %v423, %v509
  %v511 = vpop.f32.mrf.mxu0
  %512 = vmatprep.mubr.f32.mxu0 0.0
  %513 = vmatmul.mubr.f32.gmra.mxu0 %v433
  %v514 = vpop.f32.mrf.mxu0
  %v515 = vadd.f32 %v424, %v514
  %v516 = vpop.f32.mrf.mxu0
  %517 = vmatprep.mubr.f32.mxu0 0.0
  %518 = vmatmul.mubr.f32.gmra.mxu0 %v436
  %v519 = vpop.f32.mrf.mxu0
  %v520 = vadd.f32 %v425, %v519
  %v521 = vpop.f32.mrf.mxu0
  %522 = vdwg.mxu0
  %v523 = vmul.f32 %v505, %v505
  %v524 = vmul.f32 %v510, %v510
  %v525 = vmul.f32 %v515, %v515
  %v526 = vmul.f32 %v520, %v520
  %527 = vmatprep.subr.mxu0 0.0
  %528 = vmatpush1.msra.mxu0 %v251
  %529 = vmatprep.subr.mxu0 0.0
  %530 = vmatpush1.msra.mxu0 %v250
  %531 = vmatprep.subr.mxu0 0.0
  %532 = vmatpush1.msra.mxu0 %v249
  %533 = vmatprep.subr.mxu0 0.0
  %534 = vmatpush1.msra.mxu0 %v248
  %535 = vmatprep.subr.mxu0 0.0
  %536 = vmatpush1.msra.mxu0 %v247
  %537 = vmatprep.subr.mxu0 0.0
  %538 = vmatpush1.msra.mxu0 %v246
  %539 = vmatprep.subr.mxu0 0.0
  %540 = vmatpush1.msra.mxu0 %v245
  %541 = vmatprep.subr.mxu0 0.0
  %542 = vmatpush1.msra.mxu0 %v244
  %543 = vmatprep.subr.mxu0 0.0
  %544 = vmatpush1.msra.mxu0 %v243
  %545 = vmatprep.subr.mxu0 0.0
  %546 = vmatpush1.msra.mxu0 %v242
  %547 = vmatprep.subr.mxu0 0.0
  %548 = vmatpush1.msra.mxu0 %v241
  %549 = vmatprep.subr.mxu0 0.0
  %550 = vmatpush1.msra.mxu0 %v240
  %551 = vmatprep.subr.mxu0 0.0
  %552 = vmatpush1.msra.mxu0 %v239
  %553 = vmatprep.subr.mxu0 0.0
  %554 = vmatpush1.msra.mxu0 %v238
  %555 = vmatprep.subr.mxu0 0.0
  %556 = vmatpush1.msra.mxu0 %v237
  %557 = vmatprep.subr.mxu0 0.0
  %558 = vmatpush1.msra.mxu0 %v236
  %559 = vmatprep.subr.mxu0 0.0
  %560 = vmatpush2.msra.mxu0 0.0
  %561 = vmatprep.subr.mxu0 0.0
  %562 = vmatpush2.msra.mxu0 0.0
  %563 = vmatprep.subr.mxu0 0.0
  %564 = vmatpush2.msra.mxu0 0.0
  %565 = vmatprep.subr.mxu0 0.0
  %566 = vmatpush2.msra.mxu0 0.0
  %567 = vmatprep.subr.mxu0 0.0
  %568 = vmatpush2.msra.mxu0 0.0
  %569 = vmatprep.subr.mxu0 0.0
  %570 = vmatpush2.msra.mxu0 0.0
  %571 = vmatprep.subr.mxu0 0.0
  %572 = vmatpush2.msra.mxu0 0.0
  %573 = vmatprep.subr.mxu0 0.0
  %574 = vmatpush2.msra.mxu0 0.0
  %575 = vmatprep.subr.mxu0 0.0
  %576 = vmatpush2.msra.mxu0 0.0
  %577 = vmatprep.subr.mxu0 0.0
  %578 = vmatpush2.msra.mxu0 0.0
  %579 = vmatprep.subr.mxu0 0.0
  %580 = vmatpush2.msra.mxu0 0.0
  %581 = vmatprep.subr.mxu0 0.0
  %582 = vmatpush2.msra.mxu0 0.0
  %583 = vmatprep.subr.mxu0 0.0
  %584 = vmatpush2.msra.mxu0 0.0
  %585 = vmatprep.subr.mxu0 0.0
  %586 = vmatpush2.msra.mxu0 0.0
  %587 = vmatprep.subr.mxu0 0.0
  %588 = vmatpush2.msra.mxu0 0.0
  %589 = vmatprep.subr.mxu0 0.0
  %590 = vmatpush2.msra.mxu0 0.0
  %591 = vmatprep.mubr.f32.mxu0 0.0
  %592 = vmatmul.mubr.f32.gmra.mxu0 %v505
  %v593 = vpop.f32.mrf.mxu0
  %v594 = vadd.f32 0.0, %v593
  %v595 = vpop.f32.mrf.mxu0
  %596 = vmatprep.mubr.f32.mxu0 0.0
  %597 = vmatmul.mubr.f32.gmra.mxu0 %v510
  %v598 = vpop.f32.mrf.mxu0
  %v599 = vadd.f32 0.0, %v598
  %v600 = vpop.f32.mrf.mxu0
  %601 = vmatprep.mubr.f32.mxu0 0.0
  %602 = vmatmul.mubr.f32.gmra.mxu0 %v515
  %v603 = vpop.f32.mrf.mxu0
  %v604 = vadd.f32 0.0, %v603
  %v605 = vpop.f32.mrf.mxu0
  %606 = vmatprep.mubr.f32.mxu0 0.0
  %607 = vmatmul.mubr.f32.gmra.mxu0 %v520
  %v608 = vpop.f32.mrf.mxu0
  %v609 = vadd.f32 0.0, %v608
  %v610 = vpop.f32.mrf.mxu0
  %611 = vmatprep.mubr.f32.mxu0 0.0
  %612 = vmatmul.mubr.f32.gmra.mxu0 %v523
  %v613 = vpop.f32.mrf.mxu0
  %v614 = vadd.f32 0.0, %v613
  %v615 = vpop.f32.mrf.mxu0
  %616 = vmatprep.mubr.f32.mxu0 0.0
  %617 = vmatmul.mubr.f32.gmra.mxu0 %v524
  %v618 = vpop.f32.mrf.mxu0
  %v619 = vadd.f32 0.0, %v618
  %v620 = vpop.f32.mrf.mxu0
  %621 = vmatprep.mubr.f32.mxu0 0.0
  %622 = vmatmul.mubr.f32.gmra.mxu0 %v525
  %v623 = vpop.f32.mrf.mxu0
  %v624 = vadd.f32 0.0, %v623
  %v625 = vpop.f32.mrf.mxu0
  %626 = vmatprep.mubr.f32.mxu0 0.0
  %627 = vmatmul.mubr.f32.gmra.mxu0 %v526
  %v628 = vpop.f32.mrf.mxu0
  %v629 = vadd.f32 0.0, %v628
  %v630 = vpop.f32.mrf.mxu0
  %631 = vdwg.mxu0
  %v632 = vmul.f32 %v594, %v594
  %v633 = vmul.f32 %v599, %v599
  %v634 = vmul.f32 %v604, %v604
  %v635 = vmul.f32 %v609, %v609
  %v636 = vsub.f32 %v614, %v632
  %v637 = vsub.f32 %v619, %v633
  %v638 = vsub.f32 %v624, %v634
  %v639 = vsub.f32 %v629, %v635
  %v640 = vsub.f32 %v505, %v594
  %v641 = vsub.f32 %v510, %v599
  %v642 = vsub.f32 %v515, %v604
  %v643 = vsub.f32 %v520, %v609
  %v644 = vadd.f32 %v636, 1e-05
  %v645 = vadd.f32 %v637, 1e-05
  %v646 = vadd.f32 %v638, 1e-05
  %v647 = vadd.f32 %v639, 1e-05
  %v648 = vrsqrt.pop %v644
  %v649 = vrsqrt.pop %v645
  %v650 = vrsqrt.pop %v646
  %v651 = vrsqrt.pop %v647
  %v652 = vmul.f32 %v640, %v648
  %v653 = vmul.f32 %v641, %v649
  %v654 = vmul.f32 %v642, %v650
  %v655 = vmul.f32 %v643, %v651
  %v656 = vld [vmem:[%s10] sm:$0x1]
  %v658 = vlaneseq
  %v659 = vshrl.u32 %v658, 7
  %v660 = vsub.s32 0, %v659
  %v661 = vrot.slane %v656, %v660
  %v663 = vmul.f32 %v652, %v661
  %v664 = vmul.f32 %v653, %v661
  %v665 = vmul.f32 %v654, %v661
  %v666 = vmul.f32 %v655, %v661
  %v667 = vld [vmem:[%s11] sm:$0x1]
  %v669 = vlaneseq
  %v670 = vshrl.u32 %v669, 7
  %v671 = vsub.s32 0, %v670
  %v672 = vrot.slane %v667, %v671
  %v674 = vadd.f32 %v663, %v672
  %v675 = vadd.f32 %v664, %v672
  %v676 = vadd.f32 %v665, %v672
  %v677 = vadd.f32 %v666, %v672
  %v678 = vxor.u32 %v674, 2147483648
  %v679 = vxor.u32 %v675, 2147483648
  %v680 = vxor.u32 %v676, 2147483648
  %v681 = vxor.u32 %v677, 2147483648
  %v682 = vmul.f32 %v678, 1.442695
  %v683 = vpow.pop %v682
  %v684 = vmul.f32 %v679, 1.442695
  %v685 = vpow.pop %v684
  %v686 = vmul.f32 %v680, 1.442695
  %v687 = vpow.pop %v686
  %v688 = vmul.f32 %v681, 1.442695
  %v689 = vpow.pop %v688
  %v690 = vadd.f32 %v683, 1.0
  %v691 = vadd.f32 %v685, 1.0
  %v692 = vadd.f32 %v687, 1.0
  %v693 = vadd.f32 %v689, 1.0
  %v694 = vrcp.pop %v690
  %v695 = vmul.f32 1.0, %v694
  %v696 = vrcp.pop %v691
  %v697 = vmul.f32 1.0, %v696
  %v698 = vrcp.pop %v692
  %v699 = vmul.f32 1.0, %v698
  %v700 = vrcp.pop %v693
  %v701 = vmul.f32 1.0, %v700
  %706 = vrot.lane.b32.xlu0 %v695, 64
  %v707 = vpop.permute.xlu0 %706
  %708 = vrot.lane.b32.xlu0 %v697, 64
  %v709 = vpop.permute.xlu0 %708
  %710 = vrot.lane.b32.xlu0 %v699, 64
  %v711 = vpop.permute.xlu0 %710
  %712 = vrot.lane.b32.xlu0 %v701, 64
  %v713 = vpop.permute.xlu0 %712
  %v718 = vmul.f32 %v674, %v707
  %v719 = vmul.f32 %v675, %v709
  %v720 = vmul.f32 %v676, %v711
  %v721 = vmul.f32 %v677, %v713
  %s722 = scalar_lea.vmem %s5, 64
  %v723 = vld [vmem:[%s722] sm:$0xff]
  %v724 = vld [vmem:[%s722 + $0x8] sm:$0xff]
  %v725 = vld [vmem:[%s722 + $0x10] sm:$0xff]
  %v726 = vld [vmem:[%s722 + $0x18] sm:$0xff]
  %v727 = vld [vmem:[%s722 + $0x20] sm:$0xff]
  %v728 = vld [vmem:[%s722 + $0x28] sm:$0xff]
  %v729 = vld [vmem:[%s722 + $0x30] sm:$0xff]
  %v730 = vld [vmem:[%s722 + $0x38] sm:$0xff]
  %s731 = scalar_lea.vmem %s6, 1
  %v732 = vld [vmem:[%s731] sm:$0x1]
  %v734 = vlaneseq
  %v735 = vshrl.u32 %v734, 7
  %v736 = vsub.s32 0, %v735
  %v737 = vrot.slane %v732, %v736
  %v740 = vsel %vm94, %v718, 0
  %v743 = vsel %vm94, %v719, 0
  %v746 = vsel %vm94, %v720, 0
  %v749 = vsel %vm94, %v721, 0
  %751 = vmatprep.subr.mxu0 0.0
  %752 = vmatpush1.msra.mxu0 0.0
  %753 = vmatprep.subr.mxu0 0.0
  %754 = vmatpush1.msra.mxu0 0.0
  %755 = vmatprep.subr.mxu0 0.0
  %756 = vmatpush1.msra.mxu0 0.0
  %757 = vmatprep.subr.mxu0 0.0
  %758 = vmatpush1.msra.mxu0 0.0
  %759 = vmatprep.subr.mxu0 0.0
  %760 = vmatpush1.msra.mxu0 0.0
  %761 = vmatprep.subr.mxu0 0.0
  %762 = vmatpush1.msra.mxu0 0.0
  %763 = vmatprep.subr.mxu0 0.0
  %764 = vmatpush1.msra.mxu0 0.0
  %765 = vmatprep.subr.mxu0 0.0
  %766 = vmatpush1.msra.mxu0 0.0
  %767 = vmatprep.subr.mxu0 0.0
  %768 = vmatpush1.msra.mxu0 %v730
  %769 = vmatprep.subr.mxu0 0.0
  %770 = vmatpush1.msra.mxu0 %v729
  %771 = vmatprep.subr.mxu0 0.0
  %772 = vmatpush1.msra.mxu0 %v728
  %773 = vmatprep.subr.mxu0 0.0
  %774 = vmatpush1.msra.mxu0 %v727
  %775 = vmatprep.subr.mxu0 0.0
  %776 = vmatpush1.msra.mxu0 %v726
  %777 = vmatprep.subr.mxu0 0.0
  %778 = vmatpush1.msra.mxu0 %v725
  %779 = vmatprep.subr.mxu0 0.0
  %780 = vmatpush1.msra.mxu0 %v724
  %781 = vmatprep.subr.mxu0 0.0
  %782 = vmatpush1.msra.mxu0 %v723
  %783 = vmatprep.subr.mxu0 0.0
  %784 = vmatpush2.msra.mxu0 0.0
  %785 = vmatprep.subr.mxu0 0.0
  %786 = vmatpush2.msra.mxu0 0.0
  %787 = vmatprep.subr.mxu0 0.0
  %788 = vmatpush2.msra.mxu0 0.0
  %789 = vmatprep.subr.mxu0 0.0
  %790 = vmatpush2.msra.mxu0 0.0
  %791 = vmatprep.subr.mxu0 0.0
  %792 = vmatpush2.msra.mxu0 0.0
  %793 = vmatprep.subr.mxu0 0.0
  %794 = vmatpush2.msra.mxu0 0.0
  %795 = vmatprep.subr.mxu0 0.0
  %796 = vmatpush2.msra.mxu0 0.0
  %797 = vmatprep.subr.mxu0 0.0
  %798 = vmatpush2.msra.mxu0 0.0
  %799 = vmatprep.subr.mxu0 0.0
  %800 = vmatpush2.msra.mxu0 0.0
  %801 = vmatprep.subr.mxu0 0.0
  %802 = vmatpush2.msra.mxu0 0.0
  %803 = vmatprep.subr.mxu0 0.0
  %804 = vmatpush2.msra.mxu0 0.0
  %805 = vmatprep.subr.mxu0 0.0
  %806 = vmatpush2.msra.mxu0 0.0
  %807 = vmatprep.subr.mxu0 0.0
  %808 = vmatpush2.msra.mxu0 0.0
  %809 = vmatprep.subr.mxu0 0.0
  %810 = vmatpush2.msra.mxu0 0.0
  %811 = vmatprep.subr.mxu0 0.0
  %812 = vmatpush2.msra.mxu0 0.0
  %813 = vmatprep.subr.mxu0 0.0
  %814 = vmatpush2.msra.mxu0 0.0
  %815 = vmatprep.mubr.f32.mxu0 0.0
  %816 = vmatmul.mubr.f32.gmra.mxu0 %v740
  %v817 = vpop.f32.mrf.mxu0
  %v818 = vadd.f32 %v737, %v817
  %v819 = vpop.f32.mrf.mxu0
  %820 = vmatprep.mubr.f32.mxu0 0.0
  %821 = vmatmul.mubr.f32.gmra.mxu0 %v743
  %v822 = vpop.f32.mrf.mxu0
  %v823 = vadd.f32 %v737, %v822
  %v824 = vpop.f32.mrf.mxu0
  %825 = vmatprep.mubr.f32.mxu0 0.0
  %826 = vmatmul.mubr.f32.gmra.mxu0 %v746
  %v827 = vpop.f32.mrf.mxu0
  %v828 = vadd.f32 %v737, %v827
  %v829 = vpop.f32.mrf.mxu0
  %830 = vmatprep.mubr.f32.mxu0 0.0
  %831 = vmatmul.mubr.f32.gmra.mxu0 %v749
  %v832 = vpop.f32.mrf.mxu0
  %v833 = vadd.f32 %v737, %v832
  %v834 = vpop.f32.mrf.mxu0
  %835 = vdwg.mxu0
  %v836 = vxor.u32 %v818, 2147483648
  %v837 = vxor.u32 %v823, 2147483648
  %v838 = vxor.u32 %v828, 2147483648
  %v839 = vxor.u32 %v833, 2147483648
  %v840 = vmul.f32 %v836, 1.442695
  %v841 = vpow.pop %v840
  %v842 = vmul.f32 %v837, 1.442695
  %v843 = vpow.pop %v842
  %v844 = vmul.f32 %v838, 1.442695
  %v845 = vpow.pop %v844
  %v846 = vmul.f32 %v839, 1.442695
  %v847 = vpow.pop %v846
  %v848 = vadd.f32 %v841, 1.0
  %v849 = vadd.f32 %v843, 1.0
  %v850 = vadd.f32 %v845, 1.0
  %v851 = vadd.f32 %v847, 1.0
  %v852 = vrcp.pop %v848
  %v853 = vmul.f32 1.0, %v852
  %v854 = vrcp.pop %v849
  %v855 = vmul.f32 1.0, %v854
  %v856 = vrcp.pop %v850
  %v857 = vmul.f32 1.0, %v856
  %v858 = vrcp.pop %v851
  %v859 = vmul.f32 1.0, %v858
  %864 = vrot.lane.b32.xlu0 %v853, 120
  %v865 = vpop.permute.xlu0 %864
  %866 = vrot.lane.b32.xlu0 %v855, 120
  %v867 = vpop.permute.xlu0 %866
  %868 = vrot.lane.b32.xlu0 %v857, 120
  %v869 = vpop.permute.xlu0 %868
  %870 = vrot.lane.b32.xlu0 %v859, 120
  %v871 = vpop.permute.xlu0 %870
  %v876 = vmul.f32 %v818, %v865
  %v877 = vmul.f32 %v823, %v867
  %v878 = vmul.f32 %v828, %v869
  %v879 = vmul.f32 %v833, %v871
  %880 = vrot.lane.b32.xlu0 %v718, 16
  %v881 = vpop.permute.xlu0 %880
  %882 = vrot.lane.b32.xlu0 %v719, 16
  %v883 = vpop.permute.xlu0 %882
  %884 = vrot.lane.b32.xlu0 %v720, 16
  %v885 = vpop.permute.xlu0 %884
  %886 = vrot.lane.b32.xlu0 %v721, 16
  %v887 = vpop.permute.xlu0 %886
  %v892 = vsel %vm264, 0.0, %v881
  %v893 = vsel %vm264, 0.0, %v883
  %v894 = vsel %vm264, 0.0, %v885
  %v895 = vsel %vm264, 0.0, %v887
  %s896 = scalar_lea.vmem %s3, 96
  %v897 = vld [vmem:[%s896] sm:$0xff]
  %v898 = vld [vmem:[%s896 + $0x8] sm:$0xff]
  %v899 = vld [vmem:[%s896 + $0x10] sm:$0xff]
  %v900 = vld [vmem:[%s896 + $0x18] sm:$0xff]
  %v901 = vmul.f32 %v892, %v897
  %v902 = vmul.f32 %v893, %v898
  %v903 = vmul.f32 %v894, %v899
  %v904 = vmul.f32 %v895, %v900
  %905 = vrot.lane.b32.xlu0 %v718, 8
  %v906 = vpop.permute.xlu0 %905
  %907 = vrot.lane.b32.xlu0 %v719, 8
  %v908 = vpop.permute.xlu0 %907
  %909 = vrot.lane.b32.xlu0 %v720, 8
  %v910 = vpop.permute.xlu0 %909
  %911 = vrot.lane.b32.xlu0 %v721, 8
  %v912 = vpop.permute.xlu0 %911
  %v917 = vsel %vm289, 0.0, %v906
  %v918 = vsel %vm289, 0.0, %v908
  %v919 = vsel %vm289, 0.0, %v910
  %v920 = vsel %vm289, 0.0, %v912
  %s921 = scalar_lea.vmem %s3, 128
  %v922 = vld [vmem:[%s921] sm:$0xff]
  %v923 = vld [vmem:[%s921 + $0x8] sm:$0xff]
  %v924 = vld [vmem:[%s921 + $0x10] sm:$0xff]
  %v925 = vld [vmem:[%s921 + $0x18] sm:$0xff]
  %v926 = vmul.f32 %v917, %v922
  %v927 = vmul.f32 %v918, %v923
  %v928 = vmul.f32 %v919, %v924
  %v929 = vmul.f32 %v920, %v925
  %s930 = scalar_lea.vmem %s3, 160
  %v931 = vld [vmem:[%s930] sm:$0xff]
  %v932 = vld [vmem:[%s930 + $0x8] sm:$0xff]
  %v933 = vld [vmem:[%s930 + $0x10] sm:$0xff]
  %v934 = vld [vmem:[%s930 + $0x18] sm:$0xff]
  %v935 = vmul.f32 %v718, %v931
  %v936 = vmul.f32 %v719, %v932
  %v937 = vmul.f32 %v720, %v933
  %v938 = vmul.f32 %v721, %v934
  %s939 = scalar_lea.vmem %s4, 32
  %v940 = vld [vmem:[%s939] sm:$0xff]
  %v941 = vld [vmem:[%s939 + $0x8] sm:$0xff]
  %v942 = vld [vmem:[%s939 + $0x10] sm:$0xff]
  %v943 = vld [vmem:[%s939 + $0x18] sm:$0xff]
  %v945 = vsel %vm316, %v940, 0
  %v948 = vsel %vm316, %v941, 0
  %v951 = vsel %vm316, %v942, 0
  %v954 = vsel %vm316, %v943, 0
  %956 = vmatprep.subr.mxu0 0.0
  %957 = vmatpush1.msra.mxu0 0.0
  %958 = vmatprep.subr.mxu0 0.0
  %959 = vmatpush1.msra.mxu0 0.0
  %960 = vmatprep.subr.mxu0 0.0
  %961 = vmatpush1.msra.mxu0 0.0
  %962 = vmatprep.subr.mxu0 0.0
  %963 = vmatpush1.msra.mxu0 0.0
  %964 = vmatprep.subr.mxu0 0.0
  %965 = vmatpush1.msra.mxu0 %v938
  %966 = vmatprep.subr.mxu0 0.0
  %967 = vmatpush1.msra.mxu0 %v937
  %968 = vmatprep.subr.mxu0 0.0
  %969 = vmatpush1.msra.mxu0 %v936
  %970 = vmatprep.subr.mxu0 0.0
  %971 = vmatpush1.msra.mxu0 %v935
  %972 = vmatprep.subr.mxu0 0.0
  %973 = vmatpush1.msra.mxu0 %v929
  %974 = vmatprep.subr.mxu0 0.0
  %975 = vmatpush1.msra.mxu0 %v928
  %976 = vmatprep.subr.mxu0 0.0
  %977 = vmatpush1.msra.mxu0 %v927
  %978 = vmatprep.subr.mxu0 0.0
  %979 = vmatpush1.msra.mxu0 %v926
  %980 = vmatprep.subr.mxu0 0.0
  %981 = vmatpush1.msra.mxu0 %v904
  %982 = vmatprep.subr.mxu0 0.0
  %983 = vmatpush1.msra.mxu0 %v903
  %984 = vmatprep.subr.mxu0 0.0
  %985 = vmatpush1.msra.mxu0 %v902
  %986 = vmatprep.subr.mxu0 0.0
  %987 = vmatpush1.msra.mxu0 %v901
  %988 = vmatprep.subr.mxu0 0.0
  %989 = vmatpush2.msra.mxu0 0.0
  %990 = vmatprep.subr.mxu0 0.0
  %991 = vmatpush2.msra.mxu0 0.0
  %992 = vmatprep.subr.mxu0 0.0
  %993 = vmatpush2.msra.mxu0 0.0
  %994 = vmatprep.subr.mxu0 0.0
  %995 = vmatpush2.msra.mxu0 0.0
  %996 = vmatprep.subr.mxu0 0.0
  %997 = vmatpush2.msra.mxu0 0.0
  %998 = vmatprep.subr.mxu0 0.0
  %999 = vmatpush2.msra.mxu0 0.0
  %1000 = vmatprep.subr.mxu0 0.0
  %1001 = vmatpush2.msra.mxu0 0.0
  %1002 = vmatprep.subr.mxu0 0.0
  %1003 = vmatpush2.msra.mxu0 0.0
  %1004 = vmatprep.subr.mxu0 0.0
  %1005 = vmatpush2.msra.mxu0 0.0
  %1006 = vmatprep.subr.mxu0 0.0
  %1007 = vmatpush2.msra.mxu0 0.0
  %1008 = vmatprep.subr.mxu0 0.0
  %1009 = vmatpush2.msra.mxu0 0.0
  %1010 = vmatprep.subr.mxu0 0.0
  %1011 = vmatpush2.msra.mxu0 0.0
  %1012 = vmatprep.subr.mxu0 0.0
  %1013 = vmatpush2.msra.mxu0 0.0
  %1014 = vmatprep.subr.mxu0 0.0
  %1015 = vmatpush2.msra.mxu0 0.0
  %1016 = vmatprep.subr.mxu0 0.0
  %1017 = vmatpush2.msra.mxu0 0.0
  %1018 = vmatprep.subr.mxu0 0.0
  %1019 = vmatpush2.msra.mxu0 0.0
  %1020 = vmatprep.mubr.f32.mxu0 0.0
  %1021 = vmatmul.mubr.f32.gmra.mxu0 %v945
  %v1022 = vpop.f32.mrf.mxu0
  %v1023 = vadd.f32 0.0, %v1022
  %v1024 = vpop.f32.mrf.mxu0
  %1025 = vmatprep.mubr.f32.mxu0 0.0
  %1026 = vmatmul.mubr.f32.gmra.mxu0 %v948
  %v1027 = vpop.f32.mrf.mxu0
  %v1028 = vadd.f32 0.0, %v1027
  %v1029 = vpop.f32.mrf.mxu0
  %1030 = vmatprep.mubr.f32.mxu0 0.0
  %1031 = vmatmul.mubr.f32.gmra.mxu0 %v951
  %v1032 = vpop.f32.mrf.mxu0
  %v1033 = vadd.f32 0.0, %v1032
  %v1034 = vpop.f32.mrf.mxu0
  %1035 = vmatprep.mubr.f32.mxu0 0.0
  %1036 = vmatmul.mubr.f32.gmra.mxu0 %v954
  %v1037 = vpop.f32.mrf.mxu0
  %v1038 = vadd.f32 0.0, %v1037
  %v1039 = vpop.f32.mrf.mxu0
  %1040 = vdwg.mxu0
  %s1041 = scalar_lea.vmem %s7, 64
  %v1042 = vld [vmem:[%s1041] sm:$0xff]
  %v1043 = vld [vmem:[%s1041 + $0x8] sm:$0xff]
  %v1044 = vld [vmem:[%s1041 + $0x10] sm:$0xff]
  %v1045 = vld [vmem:[%s1041 + $0x18] sm:$0xff]
  %v1046 = vld [vmem:[%s1041 + $0x20] sm:$0xff]
  %v1047 = vld [vmem:[%s1041 + $0x28] sm:$0xff]
  %v1048 = vld [vmem:[%s1041 + $0x30] sm:$0xff]
  %v1049 = vld [vmem:[%s1041 + $0x38] sm:$0xff]
  %s1050 = scalar_lea.vmem %s8, 32
  %v1051 = vld [vmem:[%s1050] sm:$0xff]
  %v1052 = vld [vmem:[%s1050 + $0x8] sm:$0xff]
  %v1053 = vld [vmem:[%s1050 + $0x10] sm:$0xff]
  %v1054 = vld [vmem:[%s1050 + $0x18] sm:$0xff]
  %v1056 = vsel %vm94, %v1023, 0
  %v1059 = vsel %vm94, %v1028, 0
  %v1062 = vsel %vm94, %v1033, 0
  %v1065 = vsel %vm94, %v1038, 0
  %1067 = vmatprep.subr.mxu0 0.0
  %1068 = vmatpush1.msra.mxu0 0.0
  %1069 = vmatprep.subr.mxu0 0.0
  %1070 = vmatpush1.msra.mxu0 0.0
  %1071 = vmatprep.subr.mxu0 0.0
  %1072 = vmatpush1.msra.mxu0 0.0
  %1073 = vmatprep.subr.mxu0 0.0
  %1074 = vmatpush1.msra.mxu0 0.0
  %1075 = vmatprep.subr.mxu0 0.0
  %1076 = vmatpush1.msra.mxu0 0.0
  %1077 = vmatprep.subr.mxu0 0.0
  %1078 = vmatpush1.msra.mxu0 0.0
  %1079 = vmatprep.subr.mxu0 0.0
  %1080 = vmatpush1.msra.mxu0 0.0
  %1081 = vmatprep.subr.mxu0 0.0
  %1082 = vmatpush1.msra.mxu0 0.0
  %1083 = vmatprep.subr.mxu0 0.0
  %1084 = vmatpush1.msra.mxu0 %v1049
  %1085 = vmatprep.subr.mxu0 0.0
  %1086 = vmatpush1.msra.mxu0 %v1048
  %1087 = vmatprep.subr.mxu0 0.0
  %1088 = vmatpush1.msra.mxu0 %v1047
  %1089 = vmatprep.subr.mxu0 0.0
  %1090 = vmatpush1.msra.mxu0 %v1046
  %1091 = vmatprep.subr.mxu0 0.0
  %1092 = vmatpush1.msra.mxu0 %v1045
  %1093 = vmatprep.subr.mxu0 0.0
  %1094 = vmatpush1.msra.mxu0 %v1044
  %1095 = vmatprep.subr.mxu0 0.0
  %1096 = vmatpush1.msra.mxu0 %v1043
  %1097 = vmatprep.subr.mxu0 0.0
  %1098 = vmatpush1.msra.mxu0 %v1042
  %1099 = vmatprep.subr.mxu0 0.0
  %1100 = vmatpush2.msra.mxu0 0.0
  %1101 = vmatprep.subr.mxu0 0.0
  %1102 = vmatpush2.msra.mxu0 0.0
  %1103 = vmatprep.subr.mxu0 0.0
  %1104 = vmatpush2.msra.mxu0 0.0
  %1105 = vmatprep.subr.mxu0 0.0
  %1106 = vmatpush2.msra.mxu0 0.0
  %1107 = vmatprep.subr.mxu0 0.0
  %1108 = vmatpush2.msra.mxu0 0.0
  %1109 = vmatprep.subr.mxu0 0.0
  %1110 = vmatpush2.msra.mxu0 0.0
  %1111 = vmatprep.subr.mxu0 0.0
  %1112 = vmatpush2.msra.mxu0 0.0
  %1113 = vmatprep.subr.mxu0 0.0
  %1114 = vmatpush2.msra.mxu0 0.0
  %1115 = vmatprep.subr.mxu0 0.0
  %1116 = vmatpush2.msra.mxu0 0.0
  %1117 = vmatprep.subr.mxu0 0.0
  %1118 = vmatpush2.msra.mxu0 0.0
  %1119 = vmatprep.subr.mxu0 0.0
  %1120 = vmatpush2.msra.mxu0 0.0
  %1121 = vmatprep.subr.mxu0 0.0
  %1122 = vmatpush2.msra.mxu0 0.0
  %1123 = vmatprep.subr.mxu0 0.0
  %1124 = vmatpush2.msra.mxu0 0.0
  %1125 = vmatprep.subr.mxu0 0.0
  %1126 = vmatpush2.msra.mxu0 0.0
  %1127 = vmatprep.subr.mxu0 0.0
  %1128 = vmatpush2.msra.mxu0 0.0
  %1129 = vmatprep.subr.mxu0 0.0
  %1130 = vmatpush2.msra.mxu0 0.0
  %1131 = vmatprep.mubr.f32.mxu0 0.0
  %1132 = vmatmul.mubr.f32.gmra.mxu0 %v1056
  %v1133 = vpop.f32.mrf.mxu0
  %v1134 = vadd.f32 %v1051, %v1133
  %v1135 = vpop.f32.mrf.mxu0
  %1136 = vmatprep.mubr.f32.mxu0 0.0
  %1137 = vmatmul.mubr.f32.gmra.mxu0 %v1059
  %v1138 = vpop.f32.mrf.mxu0
  %v1139 = vadd.f32 %v1052, %v1138
  %v1140 = vpop.f32.mrf.mxu0
  %1141 = vmatprep.mubr.f32.mxu0 0.0
  %1142 = vmatmul.mubr.f32.gmra.mxu0 %v1062
  %v1143 = vpop.f32.mrf.mxu0
  %v1144 = vadd.f32 %v1053, %v1143
  %v1145 = vpop.f32.mrf.mxu0
  %1146 = vmatprep.mubr.f32.mxu0 0.0
  %1147 = vmatmul.mubr.f32.gmra.mxu0 %v1065
  %v1148 = vpop.f32.mrf.mxu0
  %v1149 = vadd.f32 %v1054, %v1148
  %v1150 = vpop.f32.mrf.mxu0
  %1151 = vdwg.mxu0
  %v1152 = vmul.f32 %v1134, %v1134
  %v1153 = vmul.f32 %v1139, %v1139
  %v1154 = vmul.f32 %v1144, %v1144
  %v1155 = vmul.f32 %v1149, %v1149
  %1156 = vmatprep.subr.mxu0 0.0
  %1157 = vmatpush1.msra.mxu0 %v251
  %1158 = vmatprep.subr.mxu0 0.0
  %1159 = vmatpush1.msra.mxu0 %v250
  %1160 = vmatprep.subr.mxu0 0.0
  %1161 = vmatpush1.msra.mxu0 %v249
  %1162 = vmatprep.subr.mxu0 0.0
  %1163 = vmatpush1.msra.mxu0 %v248
  %1164 = vmatprep.subr.mxu0 0.0
  %1165 = vmatpush1.msra.mxu0 %v247
  %1166 = vmatprep.subr.mxu0 0.0
  %1167 = vmatpush1.msra.mxu0 %v246
  %1168 = vmatprep.subr.mxu0 0.0
  %1169 = vmatpush1.msra.mxu0 %v245
  %1170 = vmatprep.subr.mxu0 0.0
  %1171 = vmatpush1.msra.mxu0 %v244
  %1172 = vmatprep.subr.mxu0 0.0
  %1173 = vmatpush1.msra.mxu0 %v243
  %1174 = vmatprep.subr.mxu0 0.0
  %1175 = vmatpush1.msra.mxu0 %v242
  %1176 = vmatprep.subr.mxu0 0.0
  %1177 = vmatpush1.msra.mxu0 %v241
  %1178 = vmatprep.subr.mxu0 0.0
  %1179 = vmatpush1.msra.mxu0 %v240
  %1180 = vmatprep.subr.mxu0 0.0
  %1181 = vmatpush1.msra.mxu0 %v239
  %1182 = vmatprep.subr.mxu0 0.0
  %1183 = vmatpush1.msra.mxu0 %v238
  %1184 = vmatprep.subr.mxu0 0.0
  %1185 = vmatpush1.msra.mxu0 %v237
  %1186 = vmatprep.subr.mxu0 0.0
  %1187 = vmatpush1.msra.mxu0 %v236
  %1188 = vmatprep.subr.mxu0 0.0
  %1189 = vmatpush2.msra.mxu0 0.0
  %1190 = vmatprep.subr.mxu0 0.0
  %1191 = vmatpush2.msra.mxu0 0.0
  %1192 = vmatprep.subr.mxu0 0.0
  %1193 = vmatpush2.msra.mxu0 0.0
  %1194 = vmatprep.subr.mxu0 0.0
  %1195 = vmatpush2.msra.mxu0 0.0
  %1196 = vmatprep.subr.mxu0 0.0
  %1197 = vmatpush2.msra.mxu0 0.0
  %1198 = vmatprep.subr.mxu0 0.0
  %1199 = vmatpush2.msra.mxu0 0.0
  %1200 = vmatprep.subr.mxu0 0.0
  %1201 = vmatpush2.msra.mxu0 0.0
  %1202 = vmatprep.subr.mxu0 0.0
  %1203 = vmatpush2.msra.mxu0 0.0
  %1204 = vmatprep.subr.mxu0 0.0
  %1205 = vmatpush2.msra.mxu0 0.0
  %1206 = vmatprep.subr.mxu0 0.0
  %1207 = vmatpush2.msra.mxu0 0.0
  %1208 = vmatprep.subr.mxu0 0.0
  %1209 = vmatpush2.msra.mxu0 0.0
  %1210 = vmatprep.subr.mxu0 0.0
  %1211 = vmatpush2.msra.mxu0 0.0
  %1212 = vmatprep.subr.mxu0 0.0
  %1213 = vmatpush2.msra.mxu0 0.0
  %1214 = vmatprep.subr.mxu0 0.0
  %1215 = vmatpush2.msra.mxu0 0.0
  %1216 = vmatprep.subr.mxu0 0.0
  %1217 = vmatpush2.msra.mxu0 0.0
  %1218 = vmatprep.subr.mxu0 0.0
  %1219 = vmatpush2.msra.mxu0 0.0
  %1220 = vmatprep.mubr.f32.mxu0 0.0
  %1221 = vmatmul.mubr.f32.gmra.mxu0 %v1134
  %v1222 = vpop.f32.mrf.mxu0
  %v1223 = vadd.f32 0.0, %v1222
  %v1224 = vpop.f32.mrf.mxu0
  %1225 = vmatprep.mubr.f32.mxu0 0.0
  %1226 = vmatmul.mubr.f32.gmra.mxu0 %v1139
  %v1227 = vpop.f32.mrf.mxu0
  %v1228 = vadd.f32 0.0, %v1227
  %v1229 = vpop.f32.mrf.mxu0
  %1230 = vmatprep.mubr.f32.mxu0 0.0
  %1231 = vmatmul.mubr.f32.gmra.mxu0 %v1144
  %v1232 = vpop.f32.mrf.mxu0
  %v1233 = vadd.f32 0.0, %v1232
  %v1234 = vpop.f32.mrf.mxu0
  %1235 = vmatprep.mubr.f32.mxu0 0.0
  %1236 = vmatmul.mubr.f32.gmra.mxu0 %v1149
  %v1237 = vpop.f32.mrf.mxu0
  %v1238 = vadd.f32 0.0, %v1237
  %v1239 = vpop.f32.mrf.mxu0
  %1240 = vmatprep.mubr.f32.mxu0 0.0
  %1241 = vmatmul.mubr.f32.gmra.mxu0 %v1152
  %v1242 = vpop.f32.mrf.mxu0
  %v1243 = vadd.f32 0.0, %v1242
  %v1244 = vpop.f32.mrf.mxu0
  %1245 = vmatprep.mubr.f32.mxu0 0.0
  %1246 = vmatmul.mubr.f32.gmra.mxu0 %v1153
  %v1247 = vpop.f32.mrf.mxu0
  %v1248 = vadd.f32 0.0, %v1247
  %v1249 = vpop.f32.mrf.mxu0
  %1250 = vmatprep.mubr.f32.mxu0 0.0
  %1251 = vmatmul.mubr.f32.gmra.mxu0 %v1154
  %v1252 = vpop.f32.mrf.mxu0
  %v1253 = vadd.f32 0.0, %v1252
  %v1254 = vpop.f32.mrf.mxu0
  %1255 = vmatprep.mubr.f32.mxu0 0.0
  %1256 = vmatmul.mubr.f32.gmra.mxu0 %v1155
  %v1257 = vpop.f32.mrf.mxu0
  %v1258 = vadd.f32 0.0, %v1257
  %v1259 = vpop.f32.mrf.mxu0
  %1260 = vdwg.mxu0
  %v1261 = vmul.f32 %v1223, %v1223
  %v1262 = vmul.f32 %v1228, %v1228
  %v1263 = vmul.f32 %v1233, %v1233
  %v1264 = vmul.f32 %v1238, %v1238
  %v1265 = vsub.f32 %v1243, %v1261
  %v1266 = vsub.f32 %v1248, %v1262
  %v1267 = vsub.f32 %v1253, %v1263
  %v1268 = vsub.f32 %v1258, %v1264
  %v1269 = vsub.f32 %v1134, %v1223
  %v1270 = vsub.f32 %v1139, %v1228
  %v1271 = vsub.f32 %v1144, %v1233
  %v1272 = vsub.f32 %v1149, %v1238
  %v1273 = vadd.f32 %v1265, 1e-05
  %v1274 = vadd.f32 %v1266, 1e-05
  %v1275 = vadd.f32 %v1267, 1e-05
  %v1276 = vadd.f32 %v1268, 1e-05
  %v1277 = vrsqrt.pop %v1273
  %v1278 = vrsqrt.pop %v1274
  %v1279 = vrsqrt.pop %v1275
  %v1280 = vrsqrt.pop %v1276
  %v1281 = vmul.f32 %v1269, %v1277
  %v1282 = vmul.f32 %v1270, %v1278
  %v1283 = vmul.f32 %v1271, %v1279
  %v1284 = vmul.f32 %v1272, %v1280
  %s1285 = scalar_lea.vmem %s10, 1
  %v1286 = vld [vmem:[%s1285] sm:$0x1]
  %v1288 = vlaneseq
  %v1289 = vshrl.u32 %v1288, 7
  %v1290 = vsub.s32 0, %v1289
  %v1291 = vrot.slane %v1286, %v1290
  %v1293 = vmul.f32 %v1281, %v1291
  %v1294 = vmul.f32 %v1282, %v1291
  %v1295 = vmul.f32 %v1283, %v1291
  %v1296 = vmul.f32 %v1284, %v1291
  %s1297 = scalar_lea.vmem %s11, 1
  %v1298 = vld [vmem:[%s1297] sm:$0x1]
  %v1300 = vlaneseq
  %v1301 = vshrl.u32 %v1300, 7
  %v1302 = vsub.s32 0, %v1301
  %v1303 = vrot.slane %v1298, %v1302
  %v1305 = vadd.f32 %v1293, %v1303
  %v1306 = vadd.f32 %v1294, %v1303
  %v1307 = vadd.f32 %v1295, %v1303
  %v1308 = vadd.f32 %v1296, %v1303
  %v1309 = vxor.u32 %v1305, 2147483648
  %v1310 = vxor.u32 %v1306, 2147483648
  %v1311 = vxor.u32 %v1307, 2147483648
  %v1312 = vxor.u32 %v1308, 2147483648
  %v1313 = vmul.f32 %v1309, 1.442695
  %v1314 = vpow.pop %v1313
  %v1315 = vmul.f32 %v1310, 1.442695
  %v1316 = vpow.pop %v1315
  %v1317 = vmul.f32 %v1311, 1.442695
  %v1318 = vpow.pop %v1317
  %v1319 = vmul.f32 %v1312, 1.442695
  %v1320 = vpow.pop %v1319
  %v1321 = vadd.f32 %v1314, 1.0
  %v1322 = vadd.f32 %v1316, 1.0
  %v1323 = vadd.f32 %v1318, 1.0
  %v1324 = vadd.f32 %v1320, 1.0
  %v1325 = vrcp.pop %v1321
  %v1326 = vmul.f32 1.0, %v1325
  %v1327 = vrcp.pop %v1322
  %v1328 = vmul.f32 1.0, %v1327
  %v1329 = vrcp.pop %v1323
  %v1330 = vmul.f32 1.0, %v1329
  %v1331 = vrcp.pop %v1324
  %v1332 = vmul.f32 1.0, %v1331
  %1337 = vrot.lane.b32.xlu0 %v1326, 64
  %v1338 = vpop.permute.xlu0 %1337
  %1339 = vrot.lane.b32.xlu0 %v1328, 64
  %v1340 = vpop.permute.xlu0 %1339
  %1341 = vrot.lane.b32.xlu0 %v1330, 64
  %v1342 = vpop.permute.xlu0 %1341
  %1343 = vrot.lane.b32.xlu0 %v1332, 64
  %v1344 = vpop.permute.xlu0 %1343
  %v1349 = vmul.f32 %v1305, %v1338
  %v1350 = vmul.f32 %v1306, %v1340
  %v1351 = vmul.f32 %v1307, %v1342
  %v1352 = vmul.f32 %v1308, %v1344
  %s1353 = scalar_lea.vmem %s5, 128
  %v1354 = vld [vmem:[%s1353] sm:$0xff]
  %v1355 = vld [vmem:[%s1353 + $0x8] sm:$0xff]
  %v1356 = vld [vmem:[%s1353 + $0x10] sm:$0xff]
  %v1357 = vld [vmem:[%s1353 + $0x18] sm:$0xff]
  %v1358 = vld [vmem:[%s1353 + $0x20] sm:$0xff]
  %v1359 = vld [vmem:[%s1353 + $0x28] sm:$0xff]
  %v1360 = vld [vmem:[%s1353 + $0x30] sm:$0xff]
  %v1361 = vld [vmem:[%s1353 + $0x38] sm:$0xff]
  %s1362 = scalar_lea.vmem %s6, 2
  %v1363 = vld [vmem:[%s1362] sm:$0x1]
  %v1365 = vlaneseq
  %v1366 = vshrl.u32 %v1365, 7
  %v1367 = vsub.s32 0, %v1366
  %v1368 = vrot.slane %v1363, %v1367
  %v1371 = vsel %vm94, %v1349, 0
  %v1374 = vsel %vm94, %v1350, 0
  %v1377 = vsel %vm94, %v1351, 0
  %v1380 = vsel %vm94, %v1352, 0
  %1382 = vmatprep.subr.mxu0 0.0
  %1383 = vmatpush1.msra.mxu0 0.0
  %1384 = vmatprep.subr.mxu0 0.0
  %1385 = vmatpush1.msra.mxu0 0.0
  %1386 = vmatprep.subr.mxu0 0.0
  %1387 = vmatpush1.msra.mxu0 0.0
  %1388 = vmatprep.subr.mxu0 0.0
  %1389 = vmatpush1.msra.mxu0 0.0
  %1390 = vmatprep.subr.mxu0 0.0
  %1391 = vmatpush1.msra.mxu0 0.0
  %1392 = vmatprep.subr.mxu0 0.0
  %1393 = vmatpush1.msra.mxu0 0.0
  %1394 = vmatprep.subr.mxu0 0.0
  %1395 = vmatpush1.msra.mxu0 0.0
  %1396 = vmatprep.subr.mxu0 0.0
  %1397 = vmatpush1.msra.mxu0 0.0
  %1398 = vmatprep.subr.mxu0 0.0
  %1399 = vmatpush1.msra.mxu0 %v1361
  %1400 = vmatprep.subr.mxu0 0.0
  %1401 = vmatpush1.msra.mxu0 %v1360
  %1402 = vmatprep.subr.mxu0 0.0
  %1403 = vmatpush1.msra.mxu0 %v1359
  %1404 = vmatprep.subr.mxu0 0.0
  %1405 = vmatpush1.msra.mxu0 %v1358
  %1406 = vmatprep.subr.mxu0 0.0
  %1407 = vmatpush1.msra.mxu0 %v1357
  %1408 = vmatprep.subr.mxu0 0.0
  %1409 = vmatpush1.msra.mxu0 %v1356
  %1410 = vmatprep.subr.mxu0 0.0
  %1411 = vmatpush1.msra.mxu0 %v1355
  %1412 = vmatprep.subr.mxu0 0.0
  %1413 = vmatpush1.msra.mxu0 %v1354
  %1414 = vmatprep.subr.mxu0 0.0
  %1415 = vmatpush2.msra.mxu0 0.0
  %1416 = vmatprep.subr.mxu0 0.0
  %1417 = vmatpush2.msra.mxu0 0.0
  %1418 = vmatprep.subr.mxu0 0.0
  %1419 = vmatpush2.msra.mxu0 0.0
  %1420 = vmatprep.subr.mxu0 0.0
  %1421 = vmatpush2.msra.mxu0 0.0
  %1422 = vmatprep.subr.mxu0 0.0
  %1423 = vmatpush2.msra.mxu0 0.0
  %1424 = vmatprep.subr.mxu0 0.0
  %1425 = vmatpush2.msra.mxu0 0.0
  %1426 = vmatprep.subr.mxu0 0.0
  %1427 = vmatpush2.msra.mxu0 0.0
  %1428 = vmatprep.subr.mxu0 0.0
  %1429 = vmatpush2.msra.mxu0 0.0
  %1430 = vmatprep.subr.mxu0 0.0
  %1431 = vmatpush2.msra.mxu0 0.0
  %1432 = vmatprep.subr.mxu0 0.0
  %1433 = vmatpush2.msra.mxu0 0.0
  %1434 = vmatprep.subr.mxu0 0.0
  %1435 = vmatpush2.msra.mxu0 0.0
  %1436 = vmatprep.subr.mxu0 0.0
  %1437 = vmatpush2.msra.mxu0 0.0
  %1438 = vmatprep.subr.mxu0 0.0
  %1439 = vmatpush2.msra.mxu0 0.0
  %1440 = vmatprep.subr.mxu0 0.0
  %1441 = vmatpush2.msra.mxu0 0.0
  %1442 = vmatprep.subr.mxu0 0.0
  %1443 = vmatpush2.msra.mxu0 0.0
  %1444 = vmatprep.subr.mxu0 0.0
  %1445 = vmatpush2.msra.mxu0 0.0
  %1446 = vmatprep.mubr.f32.mxu0 0.0
  %1447 = vmatmul.mubr.f32.gmra.mxu0 %v1371
  %v1448 = vpop.f32.mrf.mxu0
  %v1449 = vadd.f32 %v1368, %v1448
  %v1450 = vpop.f32.mrf.mxu0
  %1451 = vmatprep.mubr.f32.mxu0 0.0
  %1452 = vmatmul.mubr.f32.gmra.mxu0 %v1374
  %v1453 = vpop.f32.mrf.mxu0
  %v1454 = vadd.f32 %v1368, %v1453
  %v1455 = vpop.f32.mrf.mxu0
  %1456 = vmatprep.mubr.f32.mxu0 0.0
  %1457 = vmatmul.mubr.f32.gmra.mxu0 %v1377
  %v1458 = vpop.f32.mrf.mxu0
  %v1459 = vadd.f32 %v1368, %v1458
  %v1460 = vpop.f32.mrf.mxu0
  %1461 = vmatprep.mubr.f32.mxu0 0.0
  %1462 = vmatmul.mubr.f32.gmra.mxu0 %v1380
  %v1463 = vpop.f32.mrf.mxu0
  %v1464 = vadd.f32 %v1368, %v1463
  %v1465 = vpop.f32.mrf.mxu0
  %1466 = vdwg.mxu0
  %v1467 = vxor.u32 %v1449, 2147483648
  %v1468 = vxor.u32 %v1454, 2147483648
  %v1469 = vxor.u32 %v1459, 2147483648
  %v1470 = vxor.u32 %v1464, 2147483648
  %v1471 = vmul.f32 %v1467, 1.442695
  %v1472 = vpow.pop %v1471
  %v1473 = vmul.f32 %v1468, 1.442695
  %v1474 = vpow.pop %v1473
  %v1475 = vmul.f32 %v1469, 1.442695
  %v1476 = vpow.pop %v1475
  %v1477 = vmul.f32 %v1470, 1.442695
  %v1478 = vpow.pop %v1477
  %v1479 = vadd.f32 %v1472, 1.0
  %v1480 = vadd.f32 %v1474, 1.0
  %v1481 = vadd.f32 %v1476, 1.0
  %v1482 = vadd.f32 %v1478, 1.0
  %v1483 = vrcp.pop %v1479
  %v1484 = vmul.f32 1.0, %v1483
  %v1485 = vrcp.pop %v1480
  %v1486 = vmul.f32 1.0, %v1485
  %v1487 = vrcp.pop %v1481
  %v1488 = vmul.f32 1.0, %v1487
  %v1489 = vrcp.pop %v1482
  %v1490 = vmul.f32 1.0, %v1489
  %1495 = vrot.lane.b32.xlu0 %v1484, 120
  %v1496 = vpop.permute.xlu0 %1495
  %1497 = vrot.lane.b32.xlu0 %v1486, 120
  %v1498 = vpop.permute.xlu0 %1497
  %1499 = vrot.lane.b32.xlu0 %v1488, 120
  %v1500 = vpop.permute.xlu0 %1499
  %1501 = vrot.lane.b32.xlu0 %v1490, 120
  %v1502 = vpop.permute.xlu0 %1501
  %v1507 = vmul.f32 %v1449, %v1496
  %v1508 = vmul.f32 %v1454, %v1498
  %v1509 = vmul.f32 %v1459, %v1500
  %v1510 = vmul.f32 %v1464, %v1502
  %1511 = vrot.lane.b32.xlu0 %v1349, 16
  %v1512 = vpop.permute.xlu0 %1511
  %1513 = vrot.lane.b32.xlu0 %v1350, 16
  %v1514 = vpop.permute.xlu0 %1513
  %1515 = vrot.lane.b32.xlu0 %v1351, 16
  %v1516 = vpop.permute.xlu0 %1515
  %1517 = vrot.lane.b32.xlu0 %v1352, 16
  %v1518 = vpop.permute.xlu0 %1517
  %v1523 = vsel %vm264, 0.0, %v1512
  %v1524 = vsel %vm264, 0.0, %v1514
  %v1525 = vsel %vm264, 0.0, %v1516
  %v1526 = vsel %vm264, 0.0, %v1518
  %s1527 = scalar_lea.vmem %s3, 192
  %v1528 = vld [vmem:[%s1527] sm:$0xff]
  %v1529 = vld [vmem:[%s1527 + $0x8] sm:$0xff]
  %v1530 = vld [vmem:[%s1527 + $0x10] sm:$0xff]
  %v1531 = vld [vmem:[%s1527 + $0x18] sm:$0xff]
  %v1532 = vmul.f32 %v1523, %v1528
  %v1533 = vmul.f32 %v1524, %v1529
  %v1534 = vmul.f32 %v1525, %v1530
  %v1535 = vmul.f32 %v1526, %v1531
  %1536 = vrot.lane.b32.xlu0 %v1349, 8
  %v1537 = vpop.permute.xlu0 %1536
  %1538 = vrot.lane.b32.xlu0 %v1350, 8
  %v1539 = vpop.permute.xlu0 %1538
  %1540 = vrot.lane.b32.xlu0 %v1351, 8
  %v1541 = vpop.permute.xlu0 %1540
  %1542 = vrot.lane.b32.xlu0 %v1352, 8
  %v1543 = vpop.permute.xlu0 %1542
  %v1548 = vsel %vm289, 0.0, %v1537
  %v1549 = vsel %vm289, 0.0, %v1539
  %v1550 = vsel %vm289, 0.0, %v1541
  %v1551 = vsel %vm289, 0.0, %v1543
  %s1552 = scalar_lea.vmem %s3, 224
  %v1553 = vld [vmem:[%s1552] sm:$0xff]
  %v1554 = vld [vmem:[%s1552 + $0x8] sm:$0xff]
  %v1555 = vld [vmem:[%s1552 + $0x10] sm:$0xff]
  %v1556 = vld [vmem:[%s1552 + $0x18] sm:$0xff]
  %v1557 = vmul.f32 %v1548, %v1553
  %v1558 = vmul.f32 %v1549, %v1554
  %v1559 = vmul.f32 %v1550, %v1555
  %v1560 = vmul.f32 %v1551, %v1556
  %s1561 = scalar_lea.vmem %s3, 256
  %v1562 = vld [vmem:[%s1561] sm:$0xff]
  %v1563 = vld [vmem:[%s1561 + $0x8] sm:$0xff]
  %v1564 = vld [vmem:[%s1561 + $0x10] sm:$0xff]
  %v1565 = vld [vmem:[%s1561 + $0x18] sm:$0xff]
  %v1566 = vmul.f32 %v1349, %v1562
  %v1567 = vmul.f32 %v1350, %v1563
  %v1568 = vmul.f32 %v1351, %v1564
  %v1569 = vmul.f32 %v1352, %v1565
  %s1570 = scalar_lea.vmem %s4, 64
  %v1571 = vld [vmem:[%s1570] sm:$0xff]
  %v1572 = vld [vmem:[%s1570 + $0x8] sm:$0xff]
  %v1573 = vld [vmem:[%s1570 + $0x10] sm:$0xff]
  %v1574 = vld [vmem:[%s1570 + $0x18] sm:$0xff]
  %v1576 = vsel %vm316, %v1571, 0
  %v1579 = vsel %vm316, %v1572, 0
  %v1582 = vsel %vm316, %v1573, 0
  %v1585 = vsel %vm316, %v1574, 0
  %1587 = vmatprep.subr.mxu0 0.0
  %1588 = vmatpush1.msra.mxu0 0.0
  %1589 = vmatprep.subr.mxu0 0.0
  %1590 = vmatpush1.msra.mxu0 0.0
  %1591 = vmatprep.subr.mxu0 0.0
  %1592 = vmatpush1.msra.mxu0 0.0
  %1593 = vmatprep.subr.mxu0 0.0
  %1594 = vmatpush1.msra.mxu0 0.0
  %1595 = vmatprep.subr.mxu0 0.0
  %1596 = vmatpush1.msra.mxu0 %v1569
  %1597 = vmatprep.subr.mxu0 0.0
  %1598 = vmatpush1.msra.mxu0 %v1568
  %1599 = vmatprep.subr.mxu0 0.0
  %1600 = vmatpush1.msra.mxu0 %v1567
  %1601 = vmatprep.subr.mxu0 0.0
  %1602 = vmatpush1.msra.mxu0 %v1566
  %1603 = vmatprep.subr.mxu0 0.0
  %1604 = vmatpush1.msra.mxu0 %v1560
  %1605 = vmatprep.subr.mxu0 0.0
  %1606 = vmatpush1.msra.mxu0 %v1559
  %1607 = vmatprep.subr.mxu0 0.0
  %1608 = vmatpush1.msra.mxu0 %v1558
  %1609 = vmatprep.subr.mxu0 0.0
  %1610 = vmatpush1.msra.mxu0 %v1557
  %1611 = vmatprep.subr.mxu0 0.0
  %1612 = vmatpush1.msra.mxu0 %v1535
  %1613 = vmatprep.subr.mxu0 0.0
  %1614 = vmatpush1.msra.mxu0 %v1534
  %1615 = vmatprep.subr.mxu0 0.0
  %1616 = vmatpush1.msra.mxu0 %v1533
  %1617 = vmatprep.subr.mxu0 0.0
  %1618 = vmatpush1.msra.mxu0 %v1532
  %1619 = vmatprep.subr.mxu0 0.0
  %1620 = vmatpush2.msra.mxu0 0.0
  %1621 = vmatprep.subr.mxu0 0.0
  %1622 = vmatpush2.msra.mxu0 0.0
  %1623 = vmatprep.subr.mxu0 0.0
  %1624 = vmatpush2.msra.mxu0 0.0
  %1625 = vmatprep.subr.mxu0 0.0
  %1626 = vmatpush2.msra.mxu0 0.0
  %1627 = vmatprep.subr.mxu0 0.0
  %1628 = vmatpush2.msra.mxu0 0.0
  %1629 = vmatprep.subr.mxu0 0.0
  %1630 = vmatpush2.msra.mxu0 0.0
  %1631 = vmatprep.subr.mxu0 0.0
  %1632 = vmatpush2.msra.mxu0 0.0
  %1633 = vmatprep.subr.mxu0 0.0
  %1634 = vmatpush2.msra.mxu0 0.0
  %1635 = vmatprep.subr.mxu0 0.0
  %1636 = vmatpush2.msra.mxu0 0.0
  %1637 = vmatprep.subr.mxu0 0.0
  %1638 = vmatpush2.msra.mxu0 0.0
  %1639 = vmatprep.subr.mxu0 0.0
  %1640 = vmatpush2.msra.mxu0 0.0
  %1641 = vmatprep.subr.mxu0 0.0
  %1642 = vmatpush2.msra.mxu0 0.0
  %1643 = vmatprep.subr.mxu0 0.0
  %1644 = vmatpush2.msra.mxu0 0.0
  %1645 = vmatprep.subr.mxu0 0.0
  %1646 = vmatpush2.msra.mxu0 0.0
  %1647 = vmatprep.subr.mxu0 0.0
  %1648 = vmatpush2.msra.mxu0 0.0
  %1649 = vmatprep.subr.mxu0 0.0
  %1650 = vmatpush2.msra.mxu0 0.0
  %1651 = vmatprep.mubr.f32.mxu0 0.0
  %1652 = vmatmul.mubr.f32.gmra.mxu0 %v1576
  %v1653 = vpop.f32.mrf.mxu0
  %v1654 = vadd.f32 0.0, %v1653
  %v1655 = vpop.f32.mrf.mxu0
  %1656 = vmatprep.mubr.f32.mxu0 0.0
  %1657 = vmatmul.mubr.f32.gmra.mxu0 %v1579
  %v1658 = vpop.f32.mrf.mxu0
  %v1659 = vadd.f32 0.0, %v1658
  %v1660 = vpop.f32.mrf.mxu0
  %1661 = vmatprep.mubr.f32.mxu0 0.0
  %1662 = vmatmul.mubr.f32.gmra.mxu0 %v1582
  %v1663 = vpop.f32.mrf.mxu0
  %v1664 = vadd.f32 0.0, %v1663
  %v1665 = vpop.f32.mrf.mxu0
  %1666 = vmatprep.mubr.f32.mxu0 0.0
  %1667 = vmatmul.mubr.f32.gmra.mxu0 %v1585
  %v1668 = vpop.f32.mrf.mxu0
  %v1669 = vadd.f32 0.0, %v1668
  %v1670 = vpop.f32.mrf.mxu0
  %1671 = vdwg.mxu0
  %s1672 = scalar_lea.vmem %s7, 128
  %v1673 = vld [vmem:[%s1672] sm:$0xff]
  %v1674 = vld [vmem:[%s1672 + $0x8] sm:$0xff]
  %v1675 = vld [vmem:[%s1672 + $0x10] sm:$0xff]
  %v1676 = vld [vmem:[%s1672 + $0x18] sm:$0xff]
  %v1677 = vld [vmem:[%s1672 + $0x20] sm:$0xff]
  %v1678 = vld [vmem:[%s1672 + $0x28] sm:$0xff]
  %v1679 = vld [vmem:[%s1672 + $0x30] sm:$0xff]
  %v1680 = vld [vmem:[%s1672 + $0x38] sm:$0xff]
  %s1681 = scalar_lea.vmem %s8, 64
  %v1682 = vld [vmem:[%s1681] sm:$0xff]
  %v1683 = vld [vmem:[%s1681 + $0x8] sm:$0xff]
  %v1684 = vld [vmem:[%s1681 + $0x10] sm:$0xff]
  %v1685 = vld [vmem:[%s1681 + $0x18] sm:$0xff]
  %v1687 = vsel %vm94, %v1654, 0
  %v1690 = vsel %vm94, %v1659, 0
  %v1693 = vsel %vm94, %v1664, 0
  %v1696 = vsel %vm94, %v1669, 0
  %1698 = vmatprep.subr.mxu0 0.0
  %1699 = vmatpush1.msra.mxu0 0.0
  %1700 = vmatprep.subr.mxu0 0.0
  %1701 = vmatpush1.msra.mxu0 0.0
  %1702 = vmatprep.subr.mxu0 0.0
  %1703 = vmatpush1.msra.mxu0 0.0
  %1704 = vmatprep.subr.mxu0 0.0
  %1705 = vmatpush1.msra.mxu0 0.0
  %1706 = vmatprep.subr.mxu0 0.0
  %1707 = vmatpush1.msra.mxu0 0.0
  %1708 = vmatprep.subr.mxu0 0.0
  %1709 = vmatpush1.msra.mxu0 0.0
  %1710 = vmatprep.subr.mxu0 0.0
  %1711 = vmatpush1.msra.mxu0 0.0
  %1712 = vmatprep.subr.mxu0 0.0
  %1713 = vmatpush1.msra.mxu0 0.0
  %1714 = vmatprep.subr.mxu0 0.0
  %1715 = vmatpush1.msra.mxu0 %v1680
  %1716 = vmatprep.subr.mxu0 0.0
  %1717 = vmatpush1.msra.mxu0 %v1679
  %1718 = vmatprep.subr.mxu0 0.0
  %1719 = vmatpush1.msra.mxu0 %v1678
  %1720 = vmatprep.subr.mxu0 0.0
  %1721 = vmatpush1.msra.mxu0 %v1677
  %1722 = vmatprep.subr.mxu0 0.0
  %1723 = vmatpush1.msra.mxu0 %v1676
  %1724 = vmatprep.subr.mxu0 0.0
  %1725 = vmatpush1.msra.mxu0 %v1675
  %1726 = vmatprep.subr.mxu0 0.0
  %1727 = vmatpush1.msra.mxu0 %v1674
  %1728 = vmatprep.subr.mxu0 0.0
  %1729 = vmatpush1.msra.mxu0 %v1673
  %1730 = vmatprep.subr.mxu0 0.0
  %1731 = vmatpush2.msra.mxu0 0.0
  %1732 = vmatprep.subr.mxu0 0.0
  %1733 = vmatpush2.msra.mxu0 0.0
  %1734 = vmatprep.subr.mxu0 0.0
  %1735 = vmatpush2.msra.mxu0 0.0
  %1736 = vmatprep.subr.mxu0 0.0
  %1737 = vmatpush2.msra.mxu0 0.0
  %1738 = vmatprep.subr.mxu0 0.0
  %1739 = vmatpush2.msra.mxu0 0.0
  %1740 = vmatprep.subr.mxu0 0.0
  %1741 = vmatpush2.msra.mxu0 0.0
  %1742 = vmatprep.subr.mxu0 0.0
  %1743 = vmatpush2.msra.mxu0 0.0
  %1744 = vmatprep.subr.mxu0 0.0
  %1745 = vmatpush2.msra.mxu0 0.0
  %1746 = vmatprep.subr.mxu0 0.0
  %1747 = vmatpush2.msra.mxu0 0.0
  %1748 = vmatprep.subr.mxu0 0.0
  %1749 = vmatpush2.msra.mxu0 0.0
  %1750 = vmatprep.subr.mxu0 0.0
  %1751 = vmatpush2.msra.mxu0 0.0
  %1752 = vmatprep.subr.mxu0 0.0
  %1753 = vmatpush2.msra.mxu0 0.0
  %1754 = vmatprep.subr.mxu0 0.0
  %1755 = vmatpush2.msra.mxu0 0.0
  %1756 = vmatprep.subr.mxu0 0.0
  %1757 = vmatpush2.msra.mxu0 0.0
  %1758 = vmatprep.subr.mxu0 0.0
  %1759 = vmatpush2.msra.mxu0 0.0
  %1760 = vmatprep.subr.mxu0 0.0
  %1761 = vmatpush2.msra.mxu0 0.0
  %1762 = vmatprep.mubr.f32.mxu0 0.0
  %1763 = vmatmul.mubr.f32.gmra.mxu0 %v1687
  %v1764 = vpop.f32.mrf.mxu0
  %v1765 = vadd.f32 %v1682, %v1764
  %v1766 = vpop.f32.mrf.mxu0
  %1767 = vmatprep.mubr.f32.mxu0 0.0
  %1768 = vmatmul.mubr.f32.gmra.mxu0 %v1690
  %v1769 = vpop.f32.mrf.mxu0
  %v1770 = vadd.f32 %v1683, %v1769
  %v1771 = vpop.f32.mrf.mxu0
  %1772 = vmatprep.mubr.f32.mxu0 0.0
  %1773 = vmatmul.mubr.f32.gmra.mxu0 %v1693
  %v1774 = vpop.f32.mrf.mxu0
  %v1775 = vadd.f32 %v1684, %v1774
  %v1776 = vpop.f32.mrf.mxu0
  %1777 = vmatprep.mubr.f32.mxu0 0.0
  %1778 = vmatmul.mubr.f32.gmra.mxu0 %v1696
  %v1779 = vpop.f32.mrf.mxu0
  %v1780 = vadd.f32 %v1685, %v1779
  %v1781 = vpop.f32.mrf.mxu0
  %1782 = vdwg.mxu0
  %v1783 = vmul.f32 %v1765, %v1765
  %v1784 = vmul.f32 %v1770, %v1770
  %v1785 = vmul.f32 %v1775, %v1775
  %v1786 = vmul.f32 %v1780, %v1780
  %1787 = vmatprep.subr.mxu0 0.0
  %1788 = vmatpush1.msra.mxu0 %v251
  %1789 = vmatprep.subr.mxu0 0.0
  %1790 = vmatpush1.msra.mxu0 %v250
  %1791 = vmatprep.subr.mxu0 0.0
  %1792 = vmatpush1.msra.mxu0 %v249
  %1793 = vmatprep.subr.mxu0 0.0
  %1794 = vmatpush1.msra.mxu0 %v248
  %1795 = vmatprep.subr.mxu0 0.0
  %1796 = vmatpush1.msra.mxu0 %v247
  %1797 = vmatprep.subr.mxu0 0.0
  %1798 = vmatpush1.msra.mxu0 %v246
  %1799 = vmatprep.subr.mxu0 0.0
  %1800 = vmatpush1.msra.mxu0 %v245
  %1801 = vmatprep.subr.mxu0 0.0
  %1802 = vmatpush1.msra.mxu0 %v244
  %1803 = vmatprep.subr.mxu0 0.0
  %1804 = vmatpush1.msra.mxu0 %v243
  %1805 = vmatprep.subr.mxu0 0.0
  %1806 = vmatpush1.msra.mxu0 %v242
  %1807 = vmatprep.subr.mxu0 0.0
  %1808 = vmatpush1.msra.mxu0 %v241
  %1809 = vmatprep.subr.mxu0 0.0
  %1810 = vmatpush1.msra.mxu0 %v240
  %1811 = vmatprep.subr.mxu0 0.0
  %1812 = vmatpush1.msra.mxu0 %v239
  %1813 = vmatprep.subr.mxu0 0.0
  %1814 = vmatpush1.msra.mxu0 %v238
  %1815 = vmatprep.subr.mxu0 0.0
  %1816 = vmatpush1.msra.mxu0 %v237
  %1817 = vmatprep.subr.mxu0 0.0
  %1818 = vmatpush1.msra.mxu0 %v236
  %1819 = vmatprep.subr.mxu0 0.0
  %1820 = vmatpush2.msra.mxu0 0.0
  %1821 = vmatprep.subr.mxu0 0.0
  %1822 = vmatpush2.msra.mxu0 0.0
  %1823 = vmatprep.subr.mxu0 0.0
  %1824 = vmatpush2.msra.mxu0 0.0
  %1825 = vmatprep.subr.mxu0 0.0
  %1826 = vmatpush2.msra.mxu0 0.0
  %1827 = vmatprep.subr.mxu0 0.0
  %1828 = vmatpush2.msra.mxu0 0.0
  %1829 = vmatprep.subr.mxu0 0.0
  %1830 = vmatpush2.msra.mxu0 0.0
  %1831 = vmatprep.subr.mxu0 0.0
  %1832 = vmatpush2.msra.mxu0 0.0
  %1833 = vmatprep.subr.mxu0 0.0
  %1834 = vmatpush2.msra.mxu0 0.0
  %1835 = vmatprep.subr.mxu0 0.0
  %1836 = vmatpush2.msra.mxu0 0.0
  %1837 = vmatprep.subr.mxu0 0.0
  %1838 = vmatpush2.msra.mxu0 0.0
  %1839 = vmatprep.subr.mxu0 0.0
  %1840 = vmatpush2.msra.mxu0 0.0
  %1841 = vmatprep.subr.mxu0 0.0
  %1842 = vmatpush2.msra.mxu0 0.0
  %1843 = vmatprep.subr.mxu0 0.0
  %1844 = vmatpush2.msra.mxu0 0.0
  %1845 = vmatprep.subr.mxu0 0.0
  %1846 = vmatpush2.msra.mxu0 0.0
  %1847 = vmatprep.subr.mxu0 0.0
  %1848 = vmatpush2.msra.mxu0 0.0
  %1849 = vmatprep.subr.mxu0 0.0
  %1850 = vmatpush2.msra.mxu0 0.0
  %1851 = vmatprep.mubr.f32.mxu0 0.0
  %1852 = vmatmul.mubr.f32.gmra.mxu0 %v1765
  %v1853 = vpop.f32.mrf.mxu0
  %v1854 = vadd.f32 0.0, %v1853
  %v1855 = vpop.f32.mrf.mxu0
  %1856 = vmatprep.mubr.f32.mxu0 0.0
  %1857 = vmatmul.mubr.f32.gmra.mxu0 %v1770
  %v1858 = vpop.f32.mrf.mxu0
  %v1859 = vadd.f32 0.0, %v1858
  %v1860 = vpop.f32.mrf.mxu0
  %1861 = vmatprep.mubr.f32.mxu0 0.0
  %1862 = vmatmul.mubr.f32.gmra.mxu0 %v1775
  %v1863 = vpop.f32.mrf.mxu0
  %v1864 = vadd.f32 0.0, %v1863
  %v1865 = vpop.f32.mrf.mxu0
  %1866 = vmatprep.mubr.f32.mxu0 0.0
  %1867 = vmatmul.mubr.f32.gmra.mxu0 %v1780
  %v1868 = vpop.f32.mrf.mxu0
  %v1869 = vadd.f32 0.0, %v1868
  %v1870 = vpop.f32.mrf.mxu0
  %1871 = vmatprep.mubr.f32.mxu0 0.0
  %1872 = vmatmul.mubr.f32.gmra.mxu0 %v1783
  %v1873 = vpop.f32.mrf.mxu0
  %v1874 = vadd.f32 0.0, %v1873
  %v1875 = vpop.f32.mrf.mxu0
  %1876 = vmatprep.mubr.f32.mxu0 0.0
  %1877 = vmatmul.mubr.f32.gmra.mxu0 %v1784
  %v1878 = vpop.f32.mrf.mxu0
  %v1879 = vadd.f32 0.0, %v1878
  %v1880 = vpop.f32.mrf.mxu0
  %1881 = vmatprep.mubr.f32.mxu0 0.0
  %1882 = vmatmul.mubr.f32.gmra.mxu0 %v1785
  %v1883 = vpop.f32.mrf.mxu0
  %v1884 = vadd.f32 0.0, %v1883
  %v1885 = vpop.f32.mrf.mxu0
  %1886 = vmatprep.mubr.f32.mxu0 0.0
  %1887 = vmatmul.mubr.f32.gmra.mxu0 %v1786
  %v1888 = vpop.f32.mrf.mxu0
  %v1889 = vadd.f32 0.0, %v1888
  %v1890 = vpop.f32.mrf.mxu0
  %1891 = vdwg.mxu0
  %v1892 = vmul.f32 %v1854, %v1854
  %v1893 = vmul.f32 %v1859, %v1859
  %v1894 = vmul.f32 %v1864, %v1864
  %v1895 = vmul.f32 %v1869, %v1869
  %v1896 = vsub.f32 %v1874, %v1892
  %v1897 = vsub.f32 %v1879, %v1893
  %v1898 = vsub.f32 %v1884, %v1894
  %v1899 = vsub.f32 %v1889, %v1895
  %v1900 = vsub.f32 %v1765, %v1854
  %v1901 = vsub.f32 %v1770, %v1859
  %v1902 = vsub.f32 %v1775, %v1864
  %v1903 = vsub.f32 %v1780, %v1869
  %v1904 = vadd.f32 %v1896, 1e-05
  %v1905 = vadd.f32 %v1897, 1e-05
  %v1906 = vadd.f32 %v1898, 1e-05
  %v1907 = vadd.f32 %v1899, 1e-05
  %v1908 = vrsqrt.pop %v1904
  %v1909 = vrsqrt.pop %v1905
  %v1910 = vrsqrt.pop %v1906
  %v1911 = vrsqrt.pop %v1907
  %v1912 = vmul.f32 %v1900, %v1908
  %v1913 = vmul.f32 %v1901, %v1909
  %v1914 = vmul.f32 %v1902, %v1910
  %v1915 = vmul.f32 %v1903, %v1911
  %s1916 = scalar_lea.vmem %s10, 2
  %v1917 = vld [vmem:[%s1916] sm:$0x1]
  %v1919 = vlaneseq
  %v1920 = vshrl.u32 %v1919, 7
  %v1921 = vsub.s32 0, %v1920
  %v1922 = vrot.slane %v1917, %v1921
  %v1924 = vmul.f32 %v1912, %v1922
  %v1925 = vmul.f32 %v1913, %v1922
  %v1926 = vmul.f32 %v1914, %v1922
  %v1927 = vmul.f32 %v1915, %v1922
  %s1928 = scalar_lea.vmem %s11, 2
  %v1929 = vld [vmem:[%s1928] sm:$0x1]
  %v1931 = vlaneseq
  %v1932 = vshrl.u32 %v1931, 7
  %v1933 = vsub.s32 0, %v1932
  %v1934 = vrot.slane %v1929, %v1933
  %v1936 = vadd.f32 %v1924, %v1934
  %v1937 = vadd.f32 %v1925, %v1934
  %v1938 = vadd.f32 %v1926, %v1934
  %v1939 = vadd.f32 %v1927, %v1934
  %v1940 = vxor.u32 %v1936, 2147483648
  %v1941 = vxor.u32 %v1937, 2147483648
  %v1942 = vxor.u32 %v1938, 2147483648
  %v1943 = vxor.u32 %v1939, 2147483648
  %v1944 = vmul.f32 %v1940, 1.442695
  %v1945 = vpow.pop %v1944
  %v1946 = vmul.f32 %v1941, 1.442695
  %v1947 = vpow.pop %v1946
  %v1948 = vmul.f32 %v1942, 1.442695
  %v1949 = vpow.pop %v1948
  %v1950 = vmul.f32 %v1943, 1.442695
  %v1951 = vpow.pop %v1950
  %v1952 = vadd.f32 %v1945, 1.0
  %v1953 = vadd.f32 %v1947, 1.0
  %v1954 = vadd.f32 %v1949, 1.0
  %v1955 = vadd.f32 %v1951, 1.0
  %v1956 = vrcp.pop %v1952
  %v1957 = vmul.f32 1.0, %v1956
  %v1958 = vrcp.pop %v1953
  %v1959 = vmul.f32 1.0, %v1958
  %v1960 = vrcp.pop %v1954
  %v1961 = vmul.f32 1.0, %v1960
  %v1962 = vrcp.pop %v1955
  %v1963 = vmul.f32 1.0, %v1962
  %1968 = vrot.lane.b32.xlu0 %v1957, 64
  %v1969 = vpop.permute.xlu0 %1968
  %1970 = vrot.lane.b32.xlu0 %v1959, 64
  %v1971 = vpop.permute.xlu0 %1970
  %1972 = vrot.lane.b32.xlu0 %v1961, 64
  %v1973 = vpop.permute.xlu0 %1972
  %1974 = vrot.lane.b32.xlu0 %v1963, 64
  %v1975 = vpop.permute.xlu0 %1974
  %v1980 = vmul.f32 %v1936, %v1969
  %v1981 = vmul.f32 %v1937, %v1971
  %v1982 = vmul.f32 %v1938, %v1973
  %v1983 = vmul.f32 %v1939, %v1975
  %s1984 = scalar_lea.vmem %s5, 192
  %v1985 = vld [vmem:[%s1984] sm:$0xff]
  %v1986 = vld [vmem:[%s1984 + $0x8] sm:$0xff]
  %v1987 = vld [vmem:[%s1984 + $0x10] sm:$0xff]
  %v1988 = vld [vmem:[%s1984 + $0x18] sm:$0xff]
  %v1989 = vld [vmem:[%s1984 + $0x20] sm:$0xff]
  %v1990 = vld [vmem:[%s1984 + $0x28] sm:$0xff]
  %v1991 = vld [vmem:[%s1984 + $0x30] sm:$0xff]
  %v1992 = vld [vmem:[%s1984 + $0x38] sm:$0xff]
  %s1993 = scalar_lea.vmem %s6, 3
  %v1994 = vld [vmem:[%s1993] sm:$0x1]
  %v1996 = vlaneseq
  %v1997 = vshrl.u32 %v1996, 7
  %v1998 = vsub.s32 0, %v1997
  %v1999 = vrot.slane %v1994, %v1998
  %v2002 = vsel %vm94, %v1980, 0
  %v2005 = vsel %vm94, %v1981, 0
  %v2008 = vsel %vm94, %v1982, 0
  %v2011 = vsel %vm94, %v1983, 0
  %2013 = vmatprep.subr.mxu0 0.0
  %2014 = vmatpush1.msra.mxu0 0.0
  %2015 = vmatprep.subr.mxu0 0.0
  %2016 = vmatpush1.msra.mxu0 0.0
  %2017 = vmatprep.subr.mxu0 0.0
  %2018 = vmatpush1.msra.mxu0 0.0
  %2019 = vmatprep.subr.mxu0 0.0
  %2020 = vmatpush1.msra.mxu0 0.0
  %2021 = vmatprep.subr.mxu0 0.0
  %2022 = vmatpush1.msra.mxu0 0.0
  %2023 = vmatprep.subr.mxu0 0.0
  %2024 = vmatpush1.msra.mxu0 0.0
  %2025 = vmatprep.subr.mxu0 0.0
  %2026 = vmatpush1.msra.mxu0 0.0
  %2027 = vmatprep.subr.mxu0 0.0
  %2028 = vmatpush1.msra.mxu0 0.0
  %2029 = vmatprep.subr.mxu0 0.0
  %2030 = vmatpush1.msra.mxu0 %v1992
  %2031 = vmatprep.subr.mxu0 0.0
  %2032 = vmatpush1.msra.mxu0 %v1991
  %2033 = vmatprep.subr.mxu0 0.0
  %2034 = vmatpush1.msra.mxu0 %v1990
  %2035 = vmatprep.subr.mxu0 0.0
  %2036 = vmatpush1.msra.mxu0 %v1989
  %2037 = vmatprep.subr.mxu0 0.0
  %2038 = vmatpush1.msra.mxu0 %v1988
  %2039 = vmatprep.subr.mxu0 0.0
  %2040 = vmatpush1.msra.mxu0 %v1987
  %2041 = vmatprep.subr.mxu0 0.0
  %2042 = vmatpush1.msra.mxu0 %v1986
  %2043 = vmatprep.subr.mxu0 0.0
  %2044 = vmatpush1.msra.mxu0 %v1985
  %2045 = vmatprep.subr.mxu0 0.0
  %2046 = vmatpush2.msra.mxu0 0.0
  %2047 = vmatprep.subr.mxu0 0.0
  %2048 = vmatpush2.msra.mxu0 0.0
  %2049 = vmatprep.subr.mxu0 0.0
  %2050 = vmatpush2.msra.mxu0 0.0
  %2051 = vmatprep.subr.mxu0 0.0
  %2052 = vmatpush2.msra.mxu0 0.0
  %2053 = vmatprep.subr.mxu0 0.0
  %2054 = vmatpush2.msra.mxu0 0.0
  %2055 = vmatprep.subr.mxu0 0.0
  %2056 = vmatpush2.msra.mxu0 0.0
  %2057 = vmatprep.subr.mxu0 0.0
  %2058 = vmatpush2.msra.mxu0 0.0
  %2059 = vmatprep.subr.mxu0 0.0
  %2060 = vmatpush2.msra.mxu0 0.0
  %2061 = vmatprep.subr.mxu0 0.0
  %2062 = vmatpush2.msra.mxu0 0.0
  %2063 = vmatprep.subr.mxu0 0.0
  %2064 = vmatpush2.msra.mxu0 0.0
  %2065 = vmatprep.subr.mxu0 0.0
  %2066 = vmatpush2.msra.mxu0 0.0
  %2067 = vmatprep.subr.mxu0 0.0
  %2068 = vmatpush2.msra.mxu0 0.0
  %2069 = vmatprep.subr.mxu0 0.0
  %2070 = vmatpush2.msra.mxu0 0.0
  %2071 = vmatprep.subr.mxu0 0.0
  %2072 = vmatpush2.msra.mxu0 0.0
  %2073 = vmatprep.subr.mxu0 0.0
  %2074 = vmatpush2.msra.mxu0 0.0
  %2075 = vmatprep.subr.mxu0 0.0
  %2076 = vmatpush2.msra.mxu0 0.0
  %2077 = vmatprep.mubr.f32.mxu0 0.0
  %2078 = vmatmul.mubr.f32.gmra.mxu0 %v2002
  %v2079 = vpop.f32.mrf.mxu0
  %v2080 = vadd.f32 %v1999, %v2079
  %v2081 = vpop.f32.mrf.mxu0
  %2082 = vmatprep.mubr.f32.mxu0 0.0
  %2083 = vmatmul.mubr.f32.gmra.mxu0 %v2005
  %v2084 = vpop.f32.mrf.mxu0
  %v2085 = vadd.f32 %v1999, %v2084
  %v2086 = vpop.f32.mrf.mxu0
  %2087 = vmatprep.mubr.f32.mxu0 0.0
  %2088 = vmatmul.mubr.f32.gmra.mxu0 %v2008
  %v2089 = vpop.f32.mrf.mxu0
  %v2090 = vadd.f32 %v1999, %v2089
  %v2091 = vpop.f32.mrf.mxu0
  %2092 = vmatprep.mubr.f32.mxu0 0.0
  %2093 = vmatmul.mubr.f32.gmra.mxu0 %v2011
  %v2094 = vpop.f32.mrf.mxu0
  %v2095 = vadd.f32 %v1999, %v2094
  %v2096 = vpop.f32.mrf.mxu0
  %2097 = vdwg.mxu0
  %v2098 = vxor.u32 %v2080, 2147483648
  %v2099 = vxor.u32 %v2085, 2147483648
  %v2100 = vxor.u32 %v2090, 2147483648
  %v2101 = vxor.u32 %v2095, 2147483648
  %v2102 = vmul.f32 %v2098, 1.442695
  %v2103 = vpow.pop %v2102
  %v2104 = vmul.f32 %v2099, 1.442695
  %v2105 = vpow.pop %v2104
  %v2106 = vmul.f32 %v2100, 1.442695
  %v2107 = vpow.pop %v2106
  %v2108 = vmul.f32 %v2101, 1.442695
  %v2109 = vpow.pop %v2108
  %v2110 = vadd.f32 %v2103, 1.0
  %v2111 = vadd.f32 %v2105, 1.0
  %v2112 = vadd.f32 %v2107, 1.0
  %v2113 = vadd.f32 %v2109, 1.0
  %v2114 = vrcp.pop %v2110
  %v2115 = vmul.f32 1.0, %v2114
  %v2116 = vrcp.pop %v2111
  %v2117 = vmul.f32 1.0, %v2116
  %v2118 = vrcp.pop %v2112
  %v2119 = vmul.f32 1.0, %v2118
  %v2120 = vrcp.pop %v2113
  %v2121 = vmul.f32 1.0, %v2120
  %2126 = vrot.lane.b32.xlu0 %v2115, 120
  %v2127 = vpop.permute.xlu0 %2126
  %2128 = vrot.lane.b32.xlu0 %v2117, 120
  %v2129 = vpop.permute.xlu0 %2128
  %2130 = vrot.lane.b32.xlu0 %v2119, 120
  %v2131 = vpop.permute.xlu0 %2130
  %2132 = vrot.lane.b32.xlu0 %v2121, 120
  %v2133 = vpop.permute.xlu0 %2132
  %v2138 = vmul.f32 %v2080, %v2127
  %v2139 = vmul.f32 %v2085, %v2129
  %v2140 = vmul.f32 %v2090, %v2131
  %v2141 = vmul.f32 %v2095, %v2133
  %2146 = vrot.lane.b32.xlu0 %v876, 8
  %v2147 = vpop.permute.xlu0 %2146
  %2148 = vrot.lane.b32.xlu0 %v877, 8
  %v2149 = vpop.permute.xlu0 %2148
  %2150 = vrot.lane.b32.xlu0 %v878, 8
  %v2151 = vpop.permute.xlu0 %2150
  %2152 = vrot.lane.b32.xlu0 %v879, 8
  %v2153 = vpop.permute.xlu0 %2152
  %2162 = vrot.lane.b32.xlu0 %v1507, 16
  %v2163 = vpop.permute.xlu0 %2162
  %2164 = vrot.lane.b32.xlu0 %v1508, 16
  %v2165 = vpop.permute.xlu0 %2164
  %2166 = vrot.lane.b32.xlu0 %v1509, 16
  %v2167 = vpop.permute.xlu0 %2166
  %2168 = vrot.lane.b32.xlu0 %v1510, 16
  %v2169 = vpop.permute.xlu0 %2168
  %2178 = vrot.lane.b32.xlu0 %v2138, 24
  %v2179 = vpop.permute.xlu0 %2178
  %2180 = vrot.lane.b32.xlu0 %v2139, 24
  %v2181 = vpop.permute.xlu0 %2180
  %2182 = vrot.lane.b32.xlu0 %v2140, 24
  %v2183 = vpop.permute.xlu0 %2182
  %2184 = vrot.lane.b32.xlu0 %v2141, 24
  %v2185 = vpop.permute.xlu0 %2184
  %v2190 = vsel %vm289, %v232, %v2147
  %v2191 = vsel %vm289, %v233, %v2149
  %v2192 = vsel %vm289, %v234, %v2151
  %v2193 = vsel %vm289, %v235, %v2153
  %v2194 = vsel %vm264, %v2190, %v2163
  %v2195 = vsel %vm264, %v2191, %v2165
  %v2196 = vsel %vm264, %v2192, %v2167
  %v2197 = vsel %vm264, %v2193, %v2169
  %vm2198 = vcmask 195584
  %v2199 = vsel %vm2198, %v2194, %v2179
  %v2200 = vsel %vm2198, %v2195, %v2181
  %v2201 = vsel %vm2198, %v2196, %v2183
  %v2202 = vsel %vm2198, %v2197, %v2185
  %v2203 = vld [vmem:[%s12] sm:$0xff]
  %v2204 = vld [vmem:[%s12 + $0x8] sm:$0xff]
  %v2205 = vld [vmem:[%s12 + $0x10] sm:$0xff]
  %v2206 = vld [vmem:[%s12 + $0x18] sm:$0xff]
  %v2207 = vld [vmem:[%s13] sm:$0x1]
  %v2209 = vlaneseq
  %v2210 = vshrl.u32 %v2209, 7
  %v2211 = vsub.s32 0, %v2210
  %v2212 = vrot.slane %v2207, %v2211
  %vm2214 = vcmask 261120
  %v2216 = vsel %vm2214, %v2199, 0
  %v2219 = vsel %vm2214, %v2200, 0
  %v2222 = vsel %vm2214, %v2201, 0
  %v2225 = vsel %vm2214, %v2202, 0
  %2227 = vmatprep.subr.mxu0 0.0
  %2228 = vmatpush1.msra.mxu0 0.0
  %2229 = vmatprep.subr.mxu0 0.0
  %2230 = vmatpush1.msra.mxu0 0.0
  %2231 = vmatprep.subr.mxu0 0.0
  %2232 = vmatpush1.msra.mxu0 0.0
  %2233 = vmatprep.subr.mxu0 0.0
  %2234 = vmatpush1.msra.mxu0 0.0
  %2235 = vmatprep.subr.mxu0 0.0
  %2236 = vmatpush1.msra.mxu0 0.0
  %2237 = vmatprep.subr.mxu0 0.0
  %2238 = vmatpush1.msra.mxu0 0.0
  %2239 = vmatprep.subr.mxu0 0.0
  %2240 = vmatpush1.msra.mxu0 0.0
  %2241 = vmatprep.subr.mxu0 0.0
  %2242 = vmatpush1.msra.mxu0 0.0
  %2243 = vmatprep.subr.mxu0 0.0
  %2244 = vmatpush1.msra.mxu0 0.0
  %2245 = vmatprep.subr.mxu0 0.0
  %2246 = vmatpush1.msra.mxu0 0.0
  %2247 = vmatprep.subr.mxu0 0.0
  %2248 = vmatpush1.msra.mxu0 0.0
  %2249 = vmatprep.subr.mxu0 0.0
  %2250 = vmatpush1.msra.mxu0 0.0
  %2251 = vmatprep.subr.mxu0 0.0
  %2252 = vmatpush1.msra.mxu0 %v2206
  %2253 = vmatprep.subr.mxu0 0.0
  %2254 = vmatpush1.msra.mxu0 %v2205
  %2255 = vmatprep.subr.mxu0 0.0
  %2256 = vmatpush1.msra.mxu0 %v2204
  %2257 = vmatprep.subr.mxu0 0.0
  %2258 = vmatpush1.msra.mxu0 %v2203
  %2259 = vmatprep.subr.mxu0 0.0
  %2260 = vmatpush2.msra.mxu0 0.0
  %2261 = vmatprep.subr.mxu0 0.0
  %2262 = vmatpush2.msra.mxu0 0.0
  %2263 = vmatprep.subr.mxu0 0.0
  %2264 = vmatpush2.msra.mxu0 0.0
  %2265 = vmatprep.subr.mxu0 0.0
  %2266 = vmatpush2.msra.mxu0 0.0
  %2267 = vmatprep.subr.mxu0 0.0
  %2268 = vmatpush2.msra.mxu0 0.0
  %2269 = vmatprep.subr.mxu0 0.0
  %2270 = vmatpush2.msra.mxu0 0.0
  %2271 = vmatprep.subr.mxu0 0.0
  %2272 = vmatpush2.msra.mxu0 0.0
  %2273 = vmatprep.subr.mxu0 0.0
  %2274 = vmatpush2.msra.mxu0 0.0
  %2275 = vmatprep.subr.mxu0 0.0
  %2276 = vmatpush2.msra.mxu0 0.0
  %2277 = vmatprep.subr.mxu0 0.0
  %2278 = vmatpush2.msra.mxu0 0.0
  %2279 = vmatprep.subr.mxu0 0.0
  %2280 = vmatpush2.msra.mxu0 0.0
  %2281 = vmatprep.subr.mxu0 0.0
  %2282 = vmatpush2.msra.mxu0 0.0
  %2283 = vmatprep.subr.mxu0 0.0
  %2284 = vmatpush2.msra.mxu0 0.0
  %2285 = vmatprep.subr.mxu0 0.0
  %2286 = vmatpush2.msra.mxu0 0.0
  %2287 = vmatprep.subr.mxu0 0.0
  %2288 = vmatpush2.msra.mxu0 0.0
  %2289 = vmatprep.subr.mxu0 0.0
  %2290 = vmatpush2.msra.mxu0 0.0
  %2291 = vmatprep.mubr.f32.mxu0 0.0
  %2292 = vmatmul.mubr.f32.gmra.mxu0 %v2216
  %v2293 = vpop.f32.mrf.mxu0
  %v2294 = vadd.f32 %v2212, %v2293
  %v2295 = vpop.f32.mrf.mxu0
  %2296 = vmatprep.mubr.f32.mxu0 0.0
  %2297 = vmatmul.mubr.f32.gmra.mxu0 %v2219
  %v2298 = vpop.f32.mrf.mxu0
  %v2299 = vadd.f32 %v2212, %v2298
  %v2300 = vpop.f32.mrf.mxu0
  %2301 = vmatprep.mubr.f32.mxu0 0.0
  %2302 = vmatmul.mubr.f32.gmra.mxu0 %v2222
  %v2303 = vpop.f32.mrf.mxu0
  %v2304 = vadd.f32 %v2212, %v2303
  %v2305 = vpop.f32.mrf.mxu0
  %2306 = vmatprep.mubr.f32.mxu0 0.0
  %2307 = vmatmul.mubr.f32.gmra.mxu0 %v2225
  %v2308 = vpop.f32.mrf.mxu0
  %v2309 = vadd.f32 %v2212, %v2308
  %v2310 = vpop.f32.mrf.mxu0
  %2311 = vdwg.mxu0
  %v2312 = vxor.u32 %v2294, 2147483648
  %v2313 = vxor.u32 %v2299, 2147483648
  %v2314 = vxor.u32 %v2304, 2147483648
  %v2315 = vxor.u32 %v2309, 2147483648
  %v2316 = vmul.f32 %v2312, 1.442695
  %v2317 = vpow.pop %v2316
  %v2318 = vmul.f32 %v2313, 1.442695
  %v2319 = vpow.pop %v2318
  %v2320 = vmul.f32 %v2314, 1.442695
  %v2321 = vpow.pop %v2320
  %v2322 = vmul.f32 %v2315, 1.442695
  %v2323 = vpow.pop %v2322
  %v2324 = vadd.f32 %v2317, 1.0
  %v2325 = vadd.f32 %v2319, 1.0
  %v2326 = vadd.f32 %v2321, 1.0
  %v2327 = vadd.f32 %v2323, 1.0
  %v2328 = vrcp.pop %v2324
  %v2329 = vmul.f32 1.0, %v2328
  %v2330 = vrcp.pop %v2325
  %v2331 = vmul.f32 1.0, %v2330
  %v2332 = vrcp.pop %v2326
  %v2333 = vmul.f32 1.0, %v2332
  %v2334 = vrcp.pop %v2327
  %v2335 = vmul.f32 1.0, %v2334
  %2340 = vrot.lane.b32.xlu0 %v2329, 96
  %v2341 = vpop.permute.xlu0 %2340
  %2342 = vrot.lane.b32.xlu0 %v2331, 96
  %v2343 = vpop.permute.xlu0 %2342
  %2344 = vrot.lane.b32.xlu0 %v2333, 96
  %v2345 = vpop.permute.xlu0 %2344
  %2346 = vrot.lane.b32.xlu0 %v2335, 96
  %v2347 = vpop.permute.xlu0 %2346
  %v2352 = vmul.f32 %v2294, %v2341
  %v2353 = vmul.f32 %v2299, %v2343
  %v2354 = vmul.f32 %v2304, %v2345
  %v2355 = vmul.f32 %v2309, %v2347
  %v2356 = vld [vmem:[%s14] sm:$0xff]
  %v2357 = vld [vmem:[%s14 + $0x8] sm:$0xff]
  %v2358 = vld [vmem:[%s14 + $0x10] sm:$0xff]
  %v2359 = vld [vmem:[%s14 + $0x18] sm:$0xff]
  %v2360 = vld [vmem:[%s15] sm:$0x1]
  %v2362 = vlaneseq
  %v2363 = vshrl.u32 %v2362, 7
  %v2364 = vsub.s32 0, %v2363
  %v2365 = vrot.slane %v2360, %v2364
  %v2368 = vsel %vm2214, %v2352, 0
  %v2371 = vsel %vm2214, %v2353, 0
  %v2374 = vsel %vm2214, %v2354, 0
  %v2377 = vsel %vm2214, %v2355, 0
  %2379 = vmatprep.subr.mxu0 0.0
  %2380 = vmatpush1.msra.mxu0 0.0
  %2381 = vmatprep.subr.mxu0 0.0
  %2382 = vmatpush1.msra.mxu0 0.0
  %2383 = vmatprep.subr.mxu0 0.0
  %2384 = vmatpush1.msra.mxu0 0.0
  %2385 = vmatprep.subr.mxu0 0.0
  %2386 = vmatpush1.msra.mxu0 0.0
  %2387 = vmatprep.subr.mxu0 0.0
  %2388 = vmatpush1.msra.mxu0 0.0
  %2389 = vmatprep.subr.mxu0 0.0
  %2390 = vmatpush1.msra.mxu0 0.0
  %2391 = vmatprep.subr.mxu0 0.0
  %2392 = vmatpush1.msra.mxu0 0.0
  %2393 = vmatprep.subr.mxu0 0.0
  %2394 = vmatpush1.msra.mxu0 0.0
  %2395 = vmatprep.subr.mxu0 0.0
  %2396 = vmatpush1.msra.mxu0 0.0
  %2397 = vmatprep.subr.mxu0 0.0
  %2398 = vmatpush1.msra.mxu0 0.0
  %2399 = vmatprep.subr.mxu0 0.0
  %2400 = vmatpush1.msra.mxu0 0.0
  %2401 = vmatprep.subr.mxu0 0.0
  %2402 = vmatpush1.msra.mxu0 0.0
  %2403 = vmatprep.subr.mxu0 0.0
  %2404 = vmatpush1.msra.mxu0 %v2359
  %2405 = vmatprep.subr.mxu0 0.0
  %2406 = vmatpush1.msra.mxu0 %v2358
  %2407 = vmatprep.subr.mxu0 0.0
  %2408 = vmatpush1.msra.mxu0 %v2357
  %2409 = vmatprep.subr.mxu0 0.0
  %2410 = vmatpush1.msra.mxu0 %v2356
  %2411 = vmatprep.subr.mxu0 0.0
  %2412 = vmatpush2.msra.mxu0 0.0
  %2413 = vmatprep.subr.mxu0 0.0
  %2414 = vmatpush2.msra.mxu0 0.0
  %2415 = vmatprep.subr.mxu0 0.0
  %2416 = vmatpush2.msra.mxu0 0.0
  %2417 = vmatprep.subr.mxu0 0.0
  %2418 = vmatpush2.msra.mxu0 0.0
  %2419 = vmatprep.subr.mxu0 0.0
  %2420 = vmatpush2.msra.mxu0 0.0
  %2421 = vmatprep.subr.mxu0 0.0
  %2422 = vmatpush2.msra.mxu0 0.0
  %2423 = vmatprep.subr.mxu0 0.0
  %2424 = vmatpush2.msra.mxu0 0.0
  %2425 = vmatprep.subr.mxu0 0.0
  %2426 = vmatpush2.msra.mxu0 0.0
  %2427 = vmatprep.subr.mxu0 0.0
  %2428 = vmatpush2.msra.mxu0 0.0
  %2429 = vmatprep.subr.mxu0 0.0
  %2430 = vmatpush2.msra.mxu0 0.0
  %2431 = vmatprep.subr.mxu0 0.0
  %2432 = vmatpush2.msra.mxu0 0.0
  %2433 = vmatprep.subr.mxu0 0.0
  %2434 = vmatpush2.msra.mxu0 0.0
  %2435 = vmatprep.subr.mxu0 0.0
  %2436 = vmatpush2.msra.mxu0 0.0
  %2437 = vmatprep.subr.mxu0 0.0
  %2438 = vmatpush2.msra.mxu0 0.0
  %2439 = vmatprep.subr.mxu0 0.0
  %2440 = vmatpush2.msra.mxu0 0.0
  %2441 = vmatprep.subr.mxu0 0.0
  %2442 = vmatpush2.msra.mxu0 0.0
  %2443 = vmatprep.mubr.f32.mxu0 0.0
  %2444 = vmatmul.mubr.f32.gmra.mxu0 %v2368
  %v2445 = vpop.f32.mrf.mxu0
  %v2446 = vadd.f32 %v2365, %v2445
  %v2447 = vpop.f32.mrf.mxu0
  %2448 = vmatprep.mubr.f32.mxu0 0.0
  %2449 = vmatmul.mubr.f32.gmra.mxu0 %v2371
  %v2450 = vpop.f32.mrf.mxu0
  %v2451 = vadd.f32 %v2365, %v2450
  %v2452 = vpop.f32.mrf.mxu0
  %2453 = vmatprep.mubr.f32.mxu0 0.0
  %2454 = vmatmul.mubr.f32.gmra.mxu0 %v2374
  %v2455 = vpop.f32.mrf.mxu0
  %v2456 = vadd.f32 %v2365, %v2455
  %v2457 = vpop.f32.mrf.mxu0
  %2458 = vmatprep.mubr.f32.mxu0 0.0
  %2459 = vmatmul.mubr.f32.gmra.mxu0 %v2377
  %v2460 = vpop.f32.mrf.mxu0
  %v2461 = vadd.f32 %v2365, %v2460
  %v2462 = vpop.f32.mrf.mxu0
  %2463 = vdwg.mxu0
  %2464 = vst [vmem:[%s16] sm:$0xff] %v2446
  %2465 = vst [vmem:[%s16 + $0x8] sm:$0xff] %v2451
  %2466 = vst [vmem:[%s16 + $0x10] sm:$0xff] %v2456
  %2467 = vst [vmem:[%s16 + $0x18] sm:$0xff] %v2461
  // Predicated region
  $region66: #{stpgcns_forward.1} parent=0 // pred_check
    _
  $region67: #{stpgcns_forward.1} parent=0 // pred_check_branch
    %2469 = sbr.rel (0) target = $region69
  $region68: #{stpgcns_forward.1} parent=0 // pred_region
    _
  $region69: #{stpgcns_forward.1} parent=0 // pred_fallthru
    _
  // Predicated region
  $region70: #{stpgcns_forward.1} parent=0 // pred_check
    _
  $region71: #{stpgcns_forward.1} parent=0 // pred_check_branch
    %2471 = sbr.rel (0) target = $region73
  $region72: #{stpgcns_forward.1} parent=0 // pred_region
    _
  $region73: #{stpgcns_forward.1} parent=0 // pred_fallthru
    _

</llo_original>
